<compile_context>
chip_gen: v7x
topology: tpu7x:2x2x1
jax: 0.10.0
libtpu: 0.0.40
codegen_flags: <defaults>
</compile_context>

<pallas_src>
import math

import jax
import jax.numpy as jnp
from jax import lax
from jax.experimental import pallas as pl
from jax.experimental.pallas import tpu as pltpu


# ----------------------------- configuration --------------------------------
B = 2          # batch
S = 8          # sequence length
D = 32         # num_hiddens == key/query/value size == norm_shape
H = 4          # num_heads
DH = D // H    # per-head dim
FFN_H = 64     # ffn_num_hiddens
N = B * H      # flattened (head, batch) attention batch dim
R = B * S      # flattened rows
LN_EPS = 1e-5
MASK_VALUE = -1000000.0  # matches masked_softmax's value=-1e6


def _layernorm(y, gamma, beta):
    # LayerNorm over the last dim (normalized_shape=[D]), biased var, eps=1e-5.
    mean = jnp.mean(y, axis=-1, keepdims=True)
    cent = y - mean
    var = jnp.mean(cent * cent, axis=-1, keepdims=True)
    return cent * lax.rsqrt(var + LN_EPS) * gamma + beta


def encoder_block_kernel(
    vl_ref,      # VMEM (B, 1)  int32 valid lengths
    x_ref,       # VMEM (R, D)  flattened input rows
    wqkv_ref,    # VMEM (3H, D, DH)  per-head [q-heads | k-heads | v-heads]
    wo_ref,      # VMEM (H, DH, D)   per-head row-blocks of Wo
    w1_ref,      # VMEM (D, FFN_H)
    w2_ref,      # VMEM (FFN_H, D)
    b1_ref,      # VMEM (1, FFN_H)
    b2_ref,      # VMEM (1, D)
    g1_ref, be1_ref, g2_ref, be2_ref,   # VMEM (1, D) LayerNorm params
    out_ref,     # VMEM (R, D)
):
    x = x_ref[...]                                               # (R, D)

    # ---- fused, head-batched Q/K/V projection (single 3-D batched matmul) ---
    # Same total MACs as the 2-D (R,D)@(D,3D) matmul, but the result is
    # already head-major: no lane slices / stacks afterwards.
    xb = jnp.broadcast_to(x[None], (3 * H, R, D))                # outer broadcast
    proj = jnp.einsum('grd,gdk->grk', xb, wqkv_ref[...],
                      preferred_element_type=jnp.float32)        # (3H, R, DH)

    def to_nsd(t):                       # (H, R, DH) -> (N, S, DH), n = h*B + b
        return t.reshape(H, B, S, DH).reshape(N, S, DH)

    q3 = to_nsd(proj[0:H])                                       # (N, S, DH)
    k3 = to_nsd(proj[H:2 * H])
    v3 = to_nsd(proj[2 * H:3 * H])

    # ---- additive key mask: 0 where valid, -1e6 where masked ----------------
    vl = vl_ref[...]                                             # (B, 1) int32
    vl_n = jnp.concatenate([vl] * H, axis=0)                     # (N, 1): vl[n % B]
    key_pos = lax.broadcasted_iota(jnp.int32, (N, 1, S), 2)      # key position
    bias = jnp.where(key_pos < vl_n.reshape(N, 1, 1), 0.0, MASK_VALUE)  # (N,1,S)

    # ---- head-batched scaled dot-product attention (3-D leading-batch) ------
    scores = jnp.einsum('nqd,nkd->nqk', q3, k3,
                        preferred_element_type=jnp.float32)      # (N, S, S)
    scores = scores * (1.0 / math.sqrt(DH)) + bias

    m = jnp.max(scores, axis=-1, keepdims=True)
    e = jnp.exp(scores - m)
    p = e / jnp.sum(e, axis=-1, keepdims=True)                   # exact divide

    att3 = jnp.einsum('nqk,nkd->nqd', p, v3,
                      preferred_element_type=jnp.float32)        # (N, S, DH)

    # ---- output projection with the head merge folded into Wo ---------------
    # att_concat @ Wo == sum_h att_h @ Wo[h*DH:(h+1)*DH, :]  -> no lane concat.
    att_h = att3.reshape(H, B, S, DH).reshape(H, R, DH)          # (H, R, DH)
    att_o = jnp.einsum('hrd,hdm->hrm', att_h, wo_ref[...],
                       preferred_element_type=jnp.float32)       # (H, R, D)
    att = jnp.sum(att_o, axis=0)                                 # (R, D)

    # ---- AddNorm 1 -----------------------------------------------------------
    y = _layernorm(x + att, g1_ref[...], be1_ref[...])           # (R, D)

    # ---- position-wise FFN ---------------------------------------------------
    h1 = jnp.dot(y, w1_ref[...], preferred_element_type=jnp.float32) + b1_ref[...]
    h1 = jnp.maximum(h1, 0.0)
    ffn = jnp.dot(h1, w2_ref[...], preferred_element_type=jnp.float32) + b2_ref[...]

    # ---- AddNorm 2 -----------------------------------------------------------
    # NOTE: output last dim is 32 (<128 lanes). Fine at this toy size; present a
    # lane-dense output view from the wrapper if this is ever scaled up.
    out_ref[...] = _layernorm(y + ffn, g2_ref[...], be2_ref[...])


def encoder_block(x, valid_lens, params):
    """x: (B, S, D) f32;  valid_lens: (B,) int;  params: dict of weights."""
    x2 = x.reshape(R, D)

    # Wrapper-side layout plumbing (free XLA ops, outside the kernel):
    # per-head column blocks of Wq/Wk/Wv -> (H, D, DH); stacked as (3H, D, DH).
    head_cols = lambda w: jnp.transpose(w.reshape(D, H, DH), (1, 0, 2))
    w_qkv_h = jnp.concatenate(
        [head_cols(params["wq"]), head_cols(params["wk"]), head_cols(params["wv"])],
        axis=0)                                                  # (3H, D, DH)
    # per-head row blocks of Wo -> (H, DH, D)
    w_o_h = params["wo"].reshape(H, DH, D)

    row = lambda v: v.reshape(1, -1)
    vmem = lambda: pl.BlockSpec(memory_space=pltpu.MemorySpace.VMEM)

    out = pl.pallas_call(
        encoder_block_kernel,
        out_shape=jax.ShapeDtypeStruct((R, D), jnp.float32),
        in_specs=[vmem()] * 12,
        out_specs=vmem(),
        # Whole problem (~40 KB resident) handled in one invocation: no grid,
        # no pipelining, no megacore split — correct choice on v5e/v6e/v7x at
        # this size (per-step overhead would exceed the saved compute).
    )(
        valid_lens.reshape(B, 1).astype(jnp.int32),
        x2, w_qkv_h, w_o_h,
        params["w1"], params["w2"],
        row(params["b1"]), row(params["b2"]),
        row(params["g1"]), row(params["be1"]),
        row(params["g2"]), row(params["be2"]),
    )
    return out.reshape(B, S, D)


def init_params(key):
    ks = jax.random.split(key, 8)
    scale = 0.02
    return {
        # attention projections, bias=False (use_bias=False default path)
        "wq": scale * jax.random.normal(ks[0], (D, D), jnp.float32),
        "wk": scale * jax.random.normal(ks[1], (D, D), jnp.float32),
        "wv": scale * jax.random.normal(ks[2], (D, D), jnp.float32),
        "wo": scale * jax.random.normal(ks[3], (D, D), jnp.float32),
        # FFN (nn.Linear has bias by default)
        "w1": scale * jax.random.normal(ks[4], (D, FFN_H), jnp.float32),
        "b1": scale * jax.random.normal(ks[5], (FFN_H,), jnp.float32),
        "w2": scale * jax.random.normal(ks[6], (FFN_H, D), jnp.float32),
        "b2": scale * jax.random.normal(ks[7], (D,), jnp.float32),
        # LayerNorms initialize to gamma=1, beta=0 (as in PyTorch)
        "g1": jnp.ones((D,), jnp.float32),
        "be1": jnp.zeros((D,), jnp.float32),
        "g2": jnp.ones((D,), jnp.float32),
        "be2": jnp.zeros((D,), jnp.float32),
    }


if __name__ == "__main__":
    key = jax.random.PRNGKey(0)
    k_x, k_p = jax.random.split(key)
    x = jax.random.normal(k_x, (B, S, D), jnp.float32)
    valid_lens = jnp.array([5, 8], dtype=jnp.int32)   # per-batch valid key lengths
    params = init_params(k_p)

    out = encoder_block(x, valid_lens, params)
    jax.block_until_ready(out)
    assert out.shape == (B, S, D) and out.dtype == jnp.float32
    assert bool(jnp.all(jnp.isfinite(out)))
    print("KERNEL_OK")
</pallas_src>

<mosaic_0001>
module attributes {stable_mosaic.version = 11 : i64} {
  func.func @encoder_block_kernel(%arg0: memref<2x1xi32, #tpu.memory_space<vmem>>, %arg1: memref<16x32xf32, #tpu.memory_space<vmem>>, %arg2: memref<12x32x8xf32, #tpu.memory_space<vmem>>, %arg3: memref<4x8x32xf32, #tpu.memory_space<vmem>>, %arg4: memref<32x64xf32, #tpu.memory_space<vmem>>, %arg5: memref<64x32xf32, #tpu.memory_space<vmem>>, %arg6: memref<1x64xf32, #tpu.memory_space<vmem>>, %arg7: memref<1x32xf32, #tpu.memory_space<vmem>>, %arg8: memref<1x32xf32, #tpu.memory_space<vmem>>, %arg9: memref<1x32xf32, #tpu.memory_space<vmem>>, %arg10: memref<1x32xf32, #tpu.memory_space<vmem>>, %arg11: memref<1x32xf32, #tpu.memory_space<vmem>>, %arg12: memref<16x32xf32, #tpu.memory_space<vmem>>) attributes {dimension_semantics = [], scalar_prefetch = 0 : i64, scratch_operands = 0 : i64, tpu.core_type = #tpu.core_type<tc>} {
    %c0 = arith.constant 0 : index
    %c0_0 = arith.constant 0 : index
    %0 = vector.load %arg1[%c0, %c0_0] : memref<16x32xf32, #tpu.memory_space<vmem>>, vector<16x32xf32>
    %1 = vector.shape_cast %0 : vector<16x32xf32> to vector<1x16x32xf32>
    %2 = vector.shape_cast %1 : vector<1x16x32xf32> to vector<1x16x32xf32>
    %3 = vector.broadcast %2 : vector<1x16x32xf32> to vector<12x16x32xf32>
    %c0_1 = arith.constant 0 : index
    %c0_2 = arith.constant 0 : index
    %c0_3 = arith.constant 0 : index
    %4 = vector.load %arg2[%c0_1, %c0_2, %c0_3] : memref<12x32x8xf32, #tpu.memory_space<vmem>>, vector<12x32x8xf32>
    "tpu.trace_start"() <{level = 10 : i32, message = "grd,gdk->grk"}> : () -> ()
    %cst = arith.constant dense<0.000000e+00> : vector<12x16x8xf32>
    %5 = tpu.matmul %3, %4, %cst {dimension_numbers = #tpu.dot_dimension_numbers<[2], [1], [1], [2], [0, 0, 0, 1, 1, 2], [0], [0]>} : vector<12x16x32xf32>, vector<12x32x8xf32>, vector<12x16x8xf32> -> vector<12x16x8xf32>
    "tpu.trace_stop"() : () -> ()
    %6 = vector.extract_strided_slice %5 {offsets = [0, 0, 0], sizes = [4, 16, 8], strides = [1, 1, 1]} : vector<12x16x8xf32> to vector<4x16x8xf32>
    %7 = vector.shape_cast %6 : vector<4x16x8xf32> to vector<4x2x8x8xf32>
    %8 = vector.shape_cast %7 : vector<4x2x8x8xf32> to vector<8x8x8xf32>
    %9 = vector.extract_strided_slice %5 {offsets = [4, 0, 0], sizes = [4, 16, 8], strides = [1, 1, 1]} : vector<12x16x8xf32> to vector<4x16x8xf32>
    %10 = vector.shape_cast %9 : vector<4x16x8xf32> to vector<4x2x8x8xf32>
    %11 = vector.shape_cast %10 : vector<4x2x8x8xf32> to vector<8x8x8xf32>
    %12 = vector.extract_strided_slice %5 {offsets = [8, 0, 0], sizes = [4, 16, 8], strides = [1, 1, 1]} : vector<12x16x8xf32> to vector<4x16x8xf32>
    %13 = vector.shape_cast %12 : vector<4x16x8xf32> to vector<4x2x8x8xf32>
    %14 = vector.shape_cast %13 : vector<4x2x8x8xf32> to vector<8x8x8xf32>
    %c0_4 = arith.constant 0 : index
    %c0_5 = arith.constant 0 : index
    %15 = vector.load %arg0[%c0_4, %c0_5] : memref<2x1xi32, #tpu.memory_space<vmem>>, vector<2x1xi32>
    %16 = tpu.concatenate %15, %15, %15, %15 in 0 : vector<2x1xi32>, vector<2x1xi32>, vector<2x1xi32>, vector<2x1xi32> -> vector<8x1xi32>
    %17 = tpu.iota {dimensions = array<i32: 2>} : vector<8x1x8xi32>
    %18 = vector.shape_cast %16 : vector<8x1xi32> to vector<8x1x1xi32>
    %19 = vector.broadcast %18 : vector<8x1x1xi32> to vector<8x1x8xi32>
    %20 = arith.cmpi slt, %17, %19 : vector<8x1x8xi32>
    %cst_6 = arith.constant 0.000000e+00 : f32
    %cst_7 = arith.constant -1.000000e+06 : f32
    %21 = vector.broadcast %cst_6 : f32 to vector<8x1x8xf32>
    %22 = vector.broadcast %cst_7 : f32 to vector<8x1x8xf32>
    %23 = arith.select %20, %21, %22 : vector<8x1x8xi1>, vector<8x1x8xf32>
    "tpu.trace_start"() <{level = 10 : i32, message = "nqd,nkd->nqk"}> : () -> ()
    %cst_8 = arith.constant dense<0.000000e+00> : vector<8x8x8xf32>
    %24 = tpu.matmul %8, %11, %cst_8 {dimension_numbers = #tpu.dot_dimension_numbers<[2], [2], [1], [1], [0, 0, 0, 1, 1, 1], [0], [0]>} : vector<8x8x8xf32>, vector<8x8x8xf32>, vector<8x8x8xf32> -> vector<8x8x8xf32>
    "tpu.trace_stop"() : () -> ()
    %cst_9 = arith.constant 0.353553385 : f32
    %25 = vector.broadcast %cst_9 : f32 to vector<8x8x8xf32>
    %26 = arith.mulf %24, %25 : vector<8x8x8xf32>
    %27 = vector.broadcast %23 : vector<8x1x8xf32> to vector<8x8x8xf32>
    %28 = arith.addf %26, %27 : vector<8x8x8xf32>
    %cst_10 = arith.constant dense<0xFF800000> : vector<8x8xf32>
    %29 = vector.multi_reduction <maximumf>, %28, %cst_10 [2] : vector<8x8x8xf32> to vector<8x8xf32>
    %30 = vector.shape_cast %29 : vector<8x8xf32> to vector<8x8x1xf32>
    %31 = vector.broadcast %30 : vector<8x8x1xf32> to vector<8x8x8xf32>
    %32 = arith.subf %28, %31 : vector<8x8x8xf32>
    %33 = math.exp %32 : vector<8x8x8xf32>
    %cst_11 = arith.constant dense<0.000000e+00> : vector<8x8xf32>
    %34 = vector.multi_reduction <add>, %33, %cst_11 [2] : vector<8x8x8xf32> to vector<8x8xf32>
    %35 = vector.shape_cast %34 : vector<8x8xf32> to vector<8x8x1xf32>
    %36 = vector.broadcast %35 : vector<8x8x1xf32> to vector<8x8x8xf32>
    %37 = arith.divf %33, %36 : vector<8x8x8xf32>
    "tpu.trace_start"() <{level = 10 : i32, message = "nqk,nkd->nqd"}> : () -> ()
    %cst_12 = arith.constant dense<0.000000e+00> : vector<8x8x8xf32>
    %38 = tpu.matmul %37, %14, %cst_12 {dimension_numbers = #tpu.dot_dimension_numbers<[2], [1], [1], [2], [0, 0, 0, 1, 1, 2], [0], [0]>} : vector<8x8x8xf32>, vector<8x8x8xf32>, vector<8x8x8xf32> -> vector<8x8x8xf32>
    "tpu.trace_stop"() : () -> ()
    %39 = vector.shape_cast %38 : vector<8x8x8xf32> to vector<4x2x8x8xf32>
    %40 = vector.shape_cast %39 : vector<4x2x8x8xf32> to vector<4x16x8xf32>
    %c0_13 = arith.constant 0 : index
    %c0_14 = arith.constant 0 : index
    %c0_15 = arith.constant 0 : index
    %41 = vector.load %arg3[%c0_13, %c0_14, %c0_15] : memref<4x8x32xf32, #tpu.memory_space<vmem>>, vector<4x8x32xf32>
    "tpu.trace_start"() <{level = 10 : i32, message = "hrd,hdm->hrm"}> : () -> ()
    %cst_16 = arith.constant dense<0.000000e+00> : vector<4x16x32xf32>
    %42 = tpu.matmul %40, %41, %cst_16 {dimension_numbers = #tpu.dot_dimension_numbers<[2], [1], [1], [2], [0, 0, 0, 1, 1, 2], [0], [0]>} : vector<4x16x8xf32>, vector<4x8x32xf32>, vector<4x16x32xf32> -> vector<4x16x32xf32>
    "tpu.trace_stop"() : () -> ()
    %cst_17 = arith.constant dense<0.000000e+00> : vector<16x32xf32>
    %43 = vector.multi_reduction <add>, %42, %cst_17 [0] : vector<4x16x32xf32> to vector<16x32xf32>
    %44 = arith.addf %0, %43 : vector<16x32xf32>
    %c0_18 = arith.constant 0 : index
    %c0_19 = arith.constant 0 : index
    %45 = vector.load %arg8[%c0_18, %c0_19] : memref<1x32xf32, #tpu.memory_space<vmem>>, vector<1x32xf32>
    %c0_20 = arith.constant 0 : index
    %c0_21 = arith.constant 0 : index
    %46 = vector.load %arg9[%c0_20, %c0_21] : memref<1x32xf32, #tpu.memory_space<vmem>>, vector<1x32xf32>
    %cst_22 = arith.constant dense<0.000000e+00> : vector<16xf32>
    %47 = vector.multi_reduction <add>, %44, %cst_22 [1] : vector<16x32xf32> to vector<16xf32>
    %48 = vector.shape_cast %47 : vector<16xf32> to vector<16x1xf32>
    %cst_23 = arith.constant 3.200000e+01 : f32
    %49 = vector.broadcast %cst_23 : f32 to vector<16x1xf32>
    %50 = arith.divf %48, %49 : vector<16x1xf32>
    %51 = vector.broadcast %50 : vector<16x1xf32> to vector<16x32xf32>
    %52 = arith.subf %44, %51 : vector<16x32xf32>
    %53 = arith.mulf %52, %52 : vector<16x32xf32>
    %cst_24 = arith.constant dense<0.000000e+00> : vector<16xf32>
    %54 = vector.multi_reduction <add>, %53, %cst_24 [1] : vector<16x32xf32> to vector<16xf32>
    %55 = vector.shape_cast %54 : vector<16xf32> to vector<16x1xf32>
    %cst_25 = arith.constant 3.200000e+01 : f32
    %56 = vector.broadcast %cst_25 : f32 to vector<16x1xf32>
    %57 = arith.divf %55, %56 : vector<16x1xf32>
    %cst_26 = arith.constant 9.99999974E-6 : f32
    %58 = vector.broadcast %cst_26 : f32 to vector<16x1xf32>
    %59 = arith.addf %57, %58 : vector<16x1xf32>
    %60 = math.rsqrt %59 : vector<16x1xf32>
    %61 = vector.broadcast %60 : vector<16x1xf32> to vector<16x32xf32>
    %62 = arith.mulf %52, %61 : vector<16x32xf32>
    %63 = vector.broadcast %45 : vector<1x32xf32> to vector<16x32xf32>
    %64 = arith.mulf %62, %63 : vector<16x32xf32>
    %65 = vector.broadcast %46 : vector<1x32xf32> to vector<16x32xf32>
    %66 = arith.addf %64, %65 : vector<16x32xf32>
    %c0_27 = arith.constant 0 : index
    %c0_28 = arith.constant 0 : index
    %67 = vector.load %arg4[%c0_27, %c0_28] : memref<32x64xf32, #tpu.memory_space<vmem>>, vector<32x64xf32>
    %cst_29 = arith.constant dense<0.000000e+00> : vector<16x64xf32>
    %68 = tpu.matmul %66, %67, %cst_29 {dimension_numbers = #tpu.dot_dimension_numbers<[1], [0], [0], [1], [0, 0, 1, 1], [], []>} : vector<16x32xf32>, vector<32x64xf32>, vector<16x64xf32> -> vector<16x64xf32>
    %c0_30 = arith.constant 0 : index
    %c0_31 = arith.constant 0 : index
    %69 = vector.load %arg6[%c0_30, %c0_31] : memref<1x64xf32, #tpu.memory_space<vmem>>, vector<1x64xf32>
    %70 = vector.broadcast %69 : vector<1x64xf32> to vector<16x64xf32>
    %71 = arith.addf %68, %70 : vector<16x64xf32>
    %cst_32 = arith.constant 0.000000e+00 : f32
    %72 = vector.broadcast %cst_32 : f32 to vector<16x64xf32>
    %73 = arith.maximumf %71, %72 : vector<16x64xf32>
    %c0_33 = arith.constant 0 : index
    %c0_34 = arith.constant 0 : index
    %74 = vector.load %arg5[%c0_33, %c0_34] : memref<64x32xf32, #tpu.memory_space<vmem>>, vector<64x32xf32>
    %cst_35 = arith.constant dense<0.000000e+00> : vector<16x32xf32>
    %75 = tpu.matmul %73, %74, %cst_35 {dimension_numbers = #tpu.dot_dimension_numbers<[1], [0], [0], [1], [0, 0, 1, 1], [], []>} : vector<16x64xf32>, vector<64x32xf32>, vector<16x32xf32> -> vector<16x32xf32>
    %c0_36 = arith.constant 0 : index
    %c0_37 = arith.constant 0 : index
    %76 = vector.load %arg7[%c0_36, %c0_37] : memref<1x32xf32, #tpu.memory_space<vmem>>, vector<1x32xf32>
    %77 = vector.broadcast %76 : vector<1x32xf32> to vector<16x32xf32>
    %78 = arith.addf %75, %77 : vector<16x32xf32>
    %79 = arith.addf %66, %78 : vector<16x32xf32>
    %c0_38 = arith.constant 0 : index
    %c0_39 = arith.constant 0 : index
    %80 = vector.load %arg10[%c0_38, %c0_39] : memref<1x32xf32, #tpu.memory_space<vmem>>, vector<1x32xf32>
    %c0_40 = arith.constant 0 : index
    %c0_41 = arith.constant 0 : index
    %81 = vector.load %arg11[%c0_40, %c0_41] : memref<1x32xf32, #tpu.memory_space<vmem>>, vector<1x32xf32>
    %cst_42 = arith.constant dense<0.000000e+00> : vector<16xf32>
    %82 = vector.multi_reduction <add>, %79, %cst_42 [1] : vector<16x32xf32> to vector<16xf32>
    %83 = vector.shape_cast %82 : vector<16xf32> to vector<16x1xf32>
    %cst_43 = arith.constant 3.200000e+01 : f32
    %84 = vector.broadcast %cst_43 : f32 to vector<16x1xf32>
    %85 = arith.divf %83, %84 : vector<16x1xf32>
    %86 = vector.broadcast %85 : vector<16x1xf32> to vector<16x32xf32>
    %87 = arith.subf %79, %86 : vector<16x32xf32>
    %88 = arith.mulf %87, %87 : vector<16x32xf32>
    %cst_44 = arith.constant dense<0.000000e+00> : vector<16xf32>
    %89 = vector.multi_reduction <add>, %88, %cst_44 [1] : vector<16x32xf32> to vector<16xf32>
    %90 = vector.shape_cast %89 : vector<16xf32> to vector<16x1xf32>
    %cst_45 = arith.constant 3.200000e+01 : f32
    %91 = vector.broadcast %cst_45 : f32 to vector<16x1xf32>
    %92 = arith.divf %90, %91 : vector<16x1xf32>
    %cst_46 = arith.constant 9.99999974E-6 : f32
    %93 = vector.broadcast %cst_46 : f32 to vector<16x1xf32>
    %94 = arith.addf %92, %93 : vector<16x1xf32>
    %95 = math.rsqrt %94 : vector<16x1xf32>
    %96 = vector.broadcast %95 : vector<16x1xf32> to vector<16x32xf32>
    %97 = arith.mulf %87, %96 : vector<16x32xf32>
    %98 = vector.broadcast %80 : vector<1x32xf32> to vector<16x32xf32>
    %99 = arith.mulf %97, %98 : vector<16x32xf32>
    %100 = vector.broadcast %81 : vector<1x32xf32> to vector<16x32xf32>
    %101 = arith.addf %99, %100 : vector<16x32xf32>
    %c0_47 = arith.constant 0 : index
    %c0_48 = arith.constant 0 : index
    %102 = vector.load %arg12[%c0_47, %c0_48] : memref<16x32xf32, #tpu.memory_space<vmem>>, vector<16x32xf32>
    tpu.vector_store %arg12[%c0_47, %c0_48], %101 {strides = array<i32>} : memref<16x32xf32, #tpu.memory_space<vmem>>, vector<16x32xf32>,
    return
  }
}

</mosaic_0001>

<llo_original>
// kernel: tpu_custom_call.1
$region0: #{tpu_custom_call.1}
  #allocation0 [shape = 'u32[]', space=smem, size = 0x4, offset = 0x4, fixed_abs, tag = 'smem constant byte address 0x4 - core index']
  #allocation1 [shape = 'u32[144,128]{1,0:T(1,128)}', space=vmem, size = 0x12000, scoped, tag = 'internal scratch']
  %s0 = inlined_call_operand.vmem [shape: s32[2,1], index: 0, kind: input, shape index: {}]
  %s1 = inlined_call_operand.vmem [shape: f32[16,32], index: 1, kind: input, shape index: {}]
  %s2 = inlined_call_operand.vmem [shape: f32[12,32,8], index: 2, kind: input, shape index: {}]
  %s3 = inlined_call_operand.vmem [shape: f32[4,8,32], index: 3, kind: input, shape index: {}]
  %s4 = inlined_call_operand.vmem [shape: f32[32,64], index: 4, kind: input, shape index: {}]
  %s5 = inlined_call_operand.vmem [shape: f32[64,32], index: 5, kind: input, shape index: {}]
  %s6 = inlined_call_operand.vmem [shape: f32[1,64], index: 6, kind: input, shape index: {}]
  %s7 = inlined_call_operand.vmem [shape: f32[1,32], index: 7, kind: input, shape index: {}]
  %s8 = inlined_call_operand.vmem [shape: f32[1,32], index: 8, kind: input, shape index: {}]
  %s9 = inlined_call_operand.vmem [shape: f32[1,32], index: 9, kind: input, shape index: {}]
  %s10 = inlined_call_operand.vmem [shape: f32[1,32], index: 10, kind: input, shape index: {}]
  %s11 = inlined_call_operand.vmem [shape: f32[1,32], index: 11, kind: input, shape index: {}]
  %s12 = inlined_call_operand.hbm [shape: f32[16,32], index: 12, kind: output, shape index: {}]
  %s13 = sld [smem:[#allocation0]]
  $region58: #{tpu_custom_call.1} parent=0
    _
  %s15 = ssub.s32 1, %s13
  %s16 = scalar_select 0, %s15, %s13
  $region1: #{tpu_custom_call.1} parent=0
    #allocation2 [shape = 'u8[8192]{0}', space=vmem, size = 0x2000, scoped, tag = 'output window, operand 0, single buffered']
    #allocation3 [shape = 's32[1]{0}', space=sflag, size = 0x4, scoped, tag = 'scoped memory for tpu_custom_call.1']
    %17 = vsyncpa [#allocation3], 0
    // Predicated region
    $region2: #{tpu_custom_call.1} parent=1 // pred_check
      _
    $region3: #{tpu_custom_call.1} parent=1 // pred_check_branch
      %19 = sbr.rel (0) target = $region5
    $region4: #{tpu_custom_call.1} parent=1 // pred_region
      _
    $region5: #{tpu_custom_call.1} parent=1 // pred_fallthru
      _
    // Predicated region
    $region6: #{tpu_custom_call.1} parent=1 // pred_check
      _
    $region7: #{tpu_custom_call.1} parent=1 // pred_check_branch
      %21 = sbr.rel (0) target = $region9
    $region8: #{tpu_custom_call.1} parent=1 // pred_region
      _
    $region9: #{tpu_custom_call.1} parent=1 // pred_fallthru
      _
    // Predicated region
    $region10: #{tpu_custom_call.1} parent=1 // pred_check
      _
    $region11: #{tpu_custom_call.1} parent=1 // pred_check_branch
      %23 = sbr.rel (0) target = $region13
    $region12: #{tpu_custom_call.1} parent=1 // pred_region
      _
    $region13: #{tpu_custom_call.1} parent=1 // pred_fallthru
      _
    // Predicated region
    $region14: #{tpu_custom_call.1} parent=1 // pred_check
      _
    $region15: #{tpu_custom_call.1} parent=1 // pred_check_branch
      %25 = sbr.rel (0) target = $region17
    $region16: #{tpu_custom_call.1} parent=1 // pred_region
      _
    $region17: #{tpu_custom_call.1} parent=1 // pred_fallthru
      _
    // Predicated region
    $region18: #{tpu_custom_call.1} parent=1 // pred_check
      _
    $region19: #{tpu_custom_call.1} parent=1 // pred_check_branch
      %27 = sbr.rel (0) target = $region21
    $region20: #{tpu_custom_call.1} parent=1 // pred_region
      _
    $region21: #{tpu_custom_call.1} parent=1 // pred_fallthru
      _
    // Predicated region
    $region22: #{tpu_custom_call.1} parent=1 // pred_check
      _
    $region23: #{tpu_custom_call.1} parent=1 // pred_check_branch
      %29 = sbr.rel (0) target = $region25
    $region24: #{tpu_custom_call.1} parent=1 // pred_region
      _
    $region25: #{tpu_custom_call.1} parent=1 // pred_fallthru
      _
    // Predicated region
    $region26: #{tpu_custom_call.1} parent=1 // pred_check
      _
    $region27: #{tpu_custom_call.1} parent=1 // pred_check_branch
      %31 = sbr.rel (0) target = $region29
    $region28: #{tpu_custom_call.1} parent=1 // pred_region
      _
    $region29: #{tpu_custom_call.1} parent=1 // pred_fallthru
      _
    // Predicated region
    $region30: #{tpu_custom_call.1} parent=1 // pred_check
      _
    $region31: #{tpu_custom_call.1} parent=1 // pred_check_branch
      %33 = sbr.rel (0) target = $region33
    $region32: #{tpu_custom_call.1} parent=1 // pred_region
      _
    $region33: #{tpu_custom_call.1} parent=1 // pred_fallthru
      _
    // Predicated region
    $region34: #{tpu_custom_call.1} parent=1 // pred_check
      _
    $region35: #{tpu_custom_call.1} parent=1 // pred_check_branch
      %35 = sbr.rel (0) target = $region37
    $region36: #{tpu_custom_call.1} parent=1 // pred_region
      _
    $region37: #{tpu_custom_call.1} parent=1 // pred_fallthru
      _
    // Predicated region
    $region38: #{tpu_custom_call.1} parent=1 // pred_check
      _
    $region39: #{tpu_custom_call.1} parent=1 // pred_check_branch
      %37 = sbr.rel (0) target = $region41
    $region40: #{tpu_custom_call.1} parent=1 // pred_region
      _
    $region41: #{tpu_custom_call.1} parent=1 // pred_fallthru
      _
    // Predicated region
    $region42: #{tpu_custom_call.1} parent=1 // pred_check
      _
    $region43: #{tpu_custom_call.1} parent=1 // pred_check_branch
      %39 = sbr.rel (0) target = $region45
    $region44: #{tpu_custom_call.1} parent=1 // pred_region
      _
    $region45: #{tpu_custom_call.1} parent=1 // pred_fallthru
      _
    // Predicated region
    $region46: #{tpu_custom_call.1} parent=1 // pred_check
      _
    $region47: #{tpu_custom_call.1} parent=1 // pred_check_branch
      %41 = sbr.rel (0) target = $region49
    $region48: #{tpu_custom_call.1} parent=1 // pred_region
      _
    $region49: #{tpu_custom_call.1} parent=1 // pred_fallthru
      _
    %v42 = vld [vmem:[%s1] sm:$0xff]
    %v43 = vld [vmem:[%s1 + $0x8] sm:$0xff]
    %v44 = vld [vmem:[%s2] sm:$0xff]
    %v45 = vld [vmem:[%s2 + $0x8] sm:$0xff]
    %v46 = vld [vmem:[%s2 + $0x10] sm:$0xff]
    %v47 = vld [vmem:[%s2 + $0x18] sm:$0xff]
    %v48 = vld [vmem:[%s2 + $0x20] sm:$0xff]
    %v49 = vld [vmem:[%s2 + $0x28] sm:$0xff]
    %v50 = vld [vmem:[%s2 + $0x30] sm:$0xff]
    %v51 = vld [vmem:[%s2 + $0x38] sm:$0xff]
    %v52 = vld [vmem:[%s2 + $0x40] sm:$0xff]
    %v53 = vld [vmem:[%s2 + $0x48] sm:$0xff]
    %v54 = vld [vmem:[%s2 + $0x50] sm:$0xff]
    %v55 = vld [vmem:[%s2 + $0x58] sm:$0xff]
    %v56 = vld [vmem:[%s2 + $0x60] sm:$0xff]
    %v57 = vld [vmem:[%s2 + $0x68] sm:$0xff]
    %v58 = vld [vmem:[%s2 + $0x70] sm:$0xff]
    %v59 = vld [vmem:[%s2 + $0x78] sm:$0xff]
    %v60 = vld [vmem:[%s2 + $0x80] sm:$0xff]
    %v61 = vld [vmem:[%s2 + $0x88] sm:$0xff]
    %v62 = vld [vmem:[%s2 + $0x90] sm:$0xff]
    %v63 = vld [vmem:[%s2 + $0x98] sm:$0xff]
    %v64 = vld [vmem:[%s2 + $0xa0] sm:$0xff]
    %v65 = vld [vmem:[%s2 + $0xa8] sm:$0xff]
    %v66 = vld [vmem:[%s2 + $0xb0] sm:$0xff]
    %v67 = vld [vmem:[%s2 + $0xb8] sm:$0xff]
    %v68 = vld [vmem:[%s2 + $0xc0] sm:$0xff]
    %v69 = vld [vmem:[%s2 + $0xc8] sm:$0xff]
    %v70 = vld [vmem:[%s2 + $0xd0] sm:$0xff]
    %v71 = vld [vmem:[%s2 + $0xd8] sm:$0xff]
    %v72 = vld [vmem:[%s2 + $0xe0] sm:$0xff]
    %v73 = vld [vmem:[%s2 + $0xe8] sm:$0xff]
    %v74 = vld [vmem:[%s2 + $0xf0] sm:$0xff]
    %v75 = vld [vmem:[%s2 + $0xf8] sm:$0xff]
    %v76 = vld [vmem:[%s2 + $0x100] sm:$0xff]
    %v77 = vld [vmem:[%s2 + $0x108] sm:$0xff]
    %v78 = vld [vmem:[%s2 + $0x110] sm:$0xff]
    %v79 = vld [vmem:[%s2 + $0x118] sm:$0xff]
    %v80 = vld [vmem:[%s2 + $0x120] sm:$0xff]
    %v81 = vld [vmem:[%s2 + $0x128] sm:$0xff]
    %v82 = vld [vmem:[%s2 + $0x130] sm:$0xff]
    %v83 = vld [vmem:[%s2 + $0x138] sm:$0xff]
    %v84 = vld [vmem:[%s2 + $0x140] sm:$0xff]
    %v85 = vld [vmem:[%s2 + $0x148] sm:$0xff]
    %v86 = vld [vmem:[%s2 + $0x150] sm:$0xff]
    %v87 = vld [vmem:[%s2 + $0x158] sm:$0xff]
    %v88 = vld [vmem:[%s2 + $0x160] sm:$0xff]
    %v89 = vld [vmem:[%s2 + $0x168] sm:$0xff]
    %v90 = vld [vmem:[%s2 + $0x170] sm:$0xff]
    %v91 = vld [vmem:[%s2 + $0x178] sm:$0xff]
    %vm92 = vcmask 261120
    %v94 = vsel %vm92, %v42, 0
    %v97 = vsel %vm92, %v43, 0
    %99 = vmatprep.subr.mxu0 0.0
    %100 = vmatpush1.msra.mxu0 %v44
    %101 = vmatprep.subr.mxu0 0.0
    %102 = vmatpush1.msra.mxu0 %v45
    %103 = vmatprep.subr.mxu0 0.0
    %104 = vmatpush1.msra.mxu0 %v46
    %105 = vmatprep.subr.mxu0 0.0
    %106 = vmatpush1.msra.mxu0 %v47
    %107 = vmatprep.subr.mxu0 0.0
    %108 = vmatpush1.msra.mxu0 0.0
    %109 = vmatprep.subr.mxu0 0.0
    %110 = vmatpush1.msra.mxu0 0.0
    %111 = vmatprep.subr.mxu0 0.0
    %112 = vmatpush1.msra.mxu0 0.0
    %113 = vmatprep.subr.mxu0 0.0
    %114 = vmatpush1.msra.mxu0 0.0
    %115 = vmatprep.subr.mxu0 0.0
    %116 = vmatpush1.msra.mxu0 0.0
    %117 = vmatprep.subr.mxu0 0.0
    %118 = vmatpush1.msra.mxu0 0.0
    %119 = vmatprep.subr.mxu0 0.0
    %120 = vmatpush1.msra.mxu0 0.0
    %121 = vmatprep.subr.mxu0 0.0
    %122 = vmatpush1.msra.mxu0 0.0
    %123 = vmatprep.subr.mxu0 0.0
    %124 = vmatpush1.msra.mxu0 0.0
    %125 = vmatprep.subr.mxu0 0.0
    %126 = vmatpush1.msra.mxu0 0.0
    %127 = vmatprep.subr.mxu0 0.0
    %128 = vmatpush1.msra.mxu0 0.0
    %129 = vmatprep.subr.mxu0 0.0
    %130 = vmatpush1.msra.mxu0 0.0
    %131 = vmatprep.subr.mxu0 0.0
    %132 = vmatpush1.msra.mxu0 0.0
    %133 = vmatprep.subr.mxu0 0.0
    %134 = vmatpush1.msra.mxu0 0.0
    %135 = vmatprep.subr.mxu0 0.0
    %136 = vmatpush1.msra.mxu0 0.0
    %137 = vmatprep.subr.mxu0 0.0
    %138 = vmatpush1.msra.mxu0 0.0
    %139 = vmatprep.subr.mxu0 0.0
    %140 = vmatpush1.msra.mxu0 0.0
    %141 = vmatprep.subr.mxu0 0.0
    %142 = vmatpush1.msra.mxu0 0.0
    %143 = vmatprep.subr.mxu0 0.0
    %144 = vmatpush1.msra.mxu0 0.0
    %145 = vmatprep.subr.mxu0 0.0
    %146 = vmatpush1.msra.mxu0 0.0
    %147 = vmatprep.subr.mxu0 0.0
    %148 = vmatpush1.msra.mxu0 0.0
    %149 = vmatprep.subr.mxu0 0.0
    %150 = vmatpush1.msra.mxu0 0.0
    %151 = vmatprep.subr.mxu0 0.0
    %152 = vmatpush1.msra.mxu0 0.0
    %153 = vmatprep.subr.mxu0 0.0
    %154 = vmatpush1.msra.mxu0 0.0
    %155 = vmatprep.subr.mxu0 0.0
    %156 = vmatpush1.msra.mxu0 0.0
    %157 = vmatprep.subr.mxu0 0.0
    %158 = vmatpush1.msra.mxu0 0.0
    %159 = vmatprep.subr.mxu0 0.0
    %160 = vmatpush1.msra.mxu0 0.0
    %161 = vmatprep.subr.mxu0 0.0
    %162 = vmatpush1.msra.mxu0 0.0
    %163 = vmatprep.mubr.f32.mxu0 0.0
    %164 = vmatmul.mubr.f32.gmra.mrb[0].mxu0 %v94
    %v165 = vpop.f32.mrb[0].mxu0
    %v166 = vadd.f32 0.0, %v165
    %v167 = vpop.f32.mrb[0].mxu0
    %168 = vmatprep.mubr.f32.mxu0 0.0
    %169 = vmatmul.mubr.f32.gmra.mrb[0].mxu0 %v97
    %v170 = vpop.f32.mrb[0].mxu0
    %v171 = vadd.f32 0.0, %v170
    %v172 = vpop.f32.mrb[0].mxu0
    %173 = vdwg.mxu0
    %174 = vmatprep.subr.mxu0 0.0
    %175 = vmatpush1.msra.mxu0 %v48
    %176 = vmatprep.subr.mxu0 0.0
    %177 = vmatpush1.msra.mxu0 %v49
    %178 = vmatprep.subr.mxu0 0.0
    %179 = vmatpush1.msra.mxu0 %v50
    %180 = vmatprep.subr.mxu0 0.0
    %181 = vmatpush1.msra.mxu0 %v51
    %182 = vmatprep.subr.mxu0 0.0
    %183 = vmatpush1.msra.mxu0 0.0
    %184 = vmatprep.subr.mxu0 0.0
    %185 = vmatpush1.msra.mxu0 0.0
    %186 = vmatprep.subr.mxu0 0.0
    %187 = vmatpush1.msra.mxu0 0.0
    %188 = vmatprep.subr.mxu0 0.0
    %189 = vmatpush1.msra.mxu0 0.0
    %190 = vmatprep.subr.mxu0 0.0
    %191 = vmatpush1.msra.mxu0 0.0
    %192 = vmatprep.subr.mxu0 0.0
    %193 = vmatpush1.msra.mxu0 0.0
    %194 = vmatprep.subr.mxu0 0.0
    %195 = vmatpush1.msra.mxu0 0.0
    %196 = vmatprep.subr.mxu0 0.0
    %197 = vmatpush1.msra.mxu0 0.0
    %198 = vmatprep.subr.mxu0 0.0
    %199 = vmatpush1.msra.mxu0 0.0
    %200 = vmatprep.subr.mxu0 0.0
    %201 = vmatpush1.msra.mxu0 0.0
    %202 = vmatprep.subr.mxu0 0.0
    %203 = vmatpush1.msra.mxu0 0.0
    %204 = vmatprep.subr.mxu0 0.0
    %205 = vmatpush1.msra.mxu0 0.0
    %206 = vmatprep.subr.mxu0 0.0
    %207 = vmatpush1.msra.mxu0 0.0
    %208 = vmatprep.subr.mxu0 0.0
    %209 = vmatpush1.msra.mxu0 0.0
    %210 = vmatprep.subr.mxu0 0.0
    %211 = vmatpush1.msra.mxu0 0.0
    %212 = vmatprep.subr.mxu0 0.0
    %213 = vmatpush1.msra.mxu0 0.0
    %214 = vmatprep.subr.mxu0 0.0
    %215 = vmatpush1.msra.mxu0 0.0
    %216 = vmatprep.subr.mxu0 0.0
    %217 = vmatpush1.msra.mxu0 0.0
    %218 = vmatprep.subr.mxu0 0.0
    %219 = vmatpush1.msra.mxu0 0.0
    %220 = vmatprep.subr.mxu0 0.0
    %221 = vmatpush1.msra.mxu0 0.0
    %222 = vmatprep.subr.mxu0 0.0
    %223 = vmatpush1.msra.mxu0 0.0
    %224 = vmatprep.subr.mxu0 0.0
    %225 = vmatpush1.msra.mxu0 0.0
    %226 = vmatprep.subr.mxu0 0.0
    %227 = vmatpush1.msra.mxu0 0.0
    %228 = vmatprep.subr.mxu0 0.0
    %229 = vmatpush1.msra.mxu0 0.0
    %230 = vmatprep.subr.mxu0 0.0
    %231 = vmatpush1.msra.mxu0 0.0
    %232 = vmatprep.subr.mxu0 0.0
    %233 = vmatpush1.msra.mxu0 0.0
    %234 = vmatprep.subr.mxu0 0.0
    %235 = vmatpush1.msra.mxu0 0.0
    %236 = vmatprep.subr.mxu0 0.0
    %237 = vmatpush1.msra.mxu0 0.0
    %238 = vmatprep.mubr.f32.mxu0 0.0
    %239 = vmatmul.mubr.f32.gmra.mrb[0].mxu0 %v94
    %v240 = vpop.f32.mrb[0].mxu0
    %v241 = vadd.f32 0.0, %v240
    %v242 = vpop.f32.mrb[0].mxu0
    %243 = vmatprep.mubr.f32.mxu0 0.0
    %244 = vmatmul.mubr.f32.gmra.mrb[0].mxu0 %v97
    %v245 = vpop.f32.mrb[0].mxu0
    %v246 = vadd.f32 0.0, %v245
    %v247 = vpop.f32.mrb[0].mxu0
    %248 = vdwg.mxu0
    %249 = vmatprep.subr.mxu0 0.0
    %250 = vmatpush1.msra.mxu0 %v52
    %251 = vmatprep.subr.mxu0 0.0
    %252 = vmatpush1.msra.mxu0 %v53
    %253 = vmatprep.subr.mxu0 0.0
    %254 = vmatpush1.msra.mxu0 %v54
    %255 = vmatprep.subr.mxu0 0.0
    %256 = vmatpush1.msra.mxu0 %v55
    %257 = vmatprep.subr.mxu0 0.0
    %258 = vmatpush1.msra.mxu0 0.0
    %259 = vmatprep.subr.mxu0 0.0
    %260 = vmatpush1.msra.mxu0 0.0
    %261 = vmatprep.subr.mxu0 0.0
    %262 = vmatpush1.msra.mxu0 0.0
    %263 = vmatprep.subr.mxu0 0.0
    %264 = vmatpush1.msra.mxu0 0.0
    %265 = vmatprep.subr.mxu0 0.0
    %266 = vmatpush1.msra.mxu0 0.0
    %267 = vmatprep.subr.mxu0 0.0
    %268 = vmatpush1.msra.mxu0 0.0
    %269 = vmatprep.subr.mxu0 0.0
    %270 = vmatpush1.msra.mxu0 0.0
    %271 = vmatprep.subr.mxu0 0.0
    %272 = vmatpush1.msra.mxu0 0.0
    %273 = vmatprep.subr.mxu0 0.0
    %274 = vmatpush1.msra.mxu0 0.0
    %275 = vmatprep.subr.mxu0 0.0
    %276 = vmatpush1.msra.mxu0 0.0
    %277 = vmatprep.subr.mxu0 0.0
    %278 = vmatpush1.msra.mxu0 0.0
    %279 = vmatprep.subr.mxu0 0.0
    %280 = vmatpush1.msra.mxu0 0.0
    %281 = vmatprep.subr.mxu0 0.0
    %282 = vmatpush1.msra.mxu0 0.0
    %283 = vmatprep.subr.mxu0 0.0
    %284 = vmatpush1.msra.mxu0 0.0
    %285 = vmatprep.subr.mxu0 0.0
    %286 = vmatpush1.msra.mxu0 0.0
    %287 = vmatprep.subr.mxu0 0.0
    %288 = vmatpush1.msra.mxu0 0.0
    %289 = vmatprep.subr.mxu0 0.0
    %290 = vmatpush1.msra.mxu0 0.0
    %291 = vmatprep.subr.mxu0 0.0
    %292 = vmatpush1.msra.mxu0 0.0
    %293 = vmatprep.subr.mxu0 0.0
    %294 = vmatpush1.msra.mxu0 0.0
    %295 = vmatprep.subr.mxu0 0.0
    %296 = vmatpush1.msra.mxu0 0.0
    %297 = vmatprep.subr.mxu0 0.0
    %298 = vmatpush1.msra.mxu0 0.0
    %299 = vmatprep.subr.mxu0 0.0
    %300 = vmatpush1.msra.mxu0 0.0
    %301 = vmatprep.subr.mxu0 0.0
    %302 = vmatpush1.msra.mxu0 0.0
    %303 = vmatprep.subr.mxu0 0.0
    %304 = vmatpush1.msra.mxu0 0.0
    %305 = vmatprep.subr.mxu0 0.0
    %306 = vmatpush1.msra.mxu0 0.0
    %307 = vmatprep.subr.mxu0 0.0
    %308 = vmatpush1.msra.mxu0 0.0
    %309 = vmatprep.subr.mxu0 0.0
    %310 = vmatpush1.msra.mxu0 0.0
    %311 = vmatprep.subr.mxu0 0.0
    %312 = vmatpush1.msra.mxu0 0.0
    %313 = vmatprep.mubr.f32.mxu0 0.0
    %314 = vmatmul.mubr.f32.gmra.mrb[0].mxu0 %v94
    %v315 = vpop.f32.mrb[0].mxu0
    %v316 = vadd.f32 0.0, %v315
    %v317 = vpop.f32.mrb[0].mxu0
    %318 = vmatprep.mubr.f32.mxu0 0.0
    %319 = vmatmul.mubr.f32.gmra.mrb[0].mxu0 %v97
    %v320 = vpop.f32.mrb[0].mxu0
    %v321 = vadd.f32 0.0, %v320
    %v322 = vpop.f32.mrb[0].mxu0
    %323 = vdwg.mxu0
    %324 = vmatprep.subr.mxu0 0.0
    %325 = vmatpush1.msra.mxu0 %v56
    %326 = vmatprep.subr.mxu0 0.0
    %327 = vmatpush1.msra.mxu0 %v57
    %328 = vmatprep.subr.mxu0 0.0
    %329 = vmatpush1.msra.mxu0 %v58
    %330 = vmatprep.subr.mxu0 0.0
    %331 = vmatpush1.msra.mxu0 %v59
    %332 = vmatprep.subr.mxu0 0.0
    %333 = vmatpush1.msra.mxu0 0.0
    %334 = vmatprep.subr.mxu0 0.0
    %335 = vmatpush1.msra.mxu0 0.0
    %336 = vmatprep.subr.mxu0 0.0
    %337 = vmatpush1.msra.mxu0 0.0
    %338 = vmatprep.subr.mxu0 0.0
    %339 = vmatpush1.msra.mxu0 0.0
    %340 = vmatprep.subr.mxu0 0.0
    %341 = vmatpush1.msra.mxu0 0.0
    %342 = vmatprep.subr.mxu0 0.0
    %343 = vmatpush1.msra.mxu0 0.0
    %344 = vmatprep.subr.mxu0 0.0
    %345 = vmatpush1.msra.mxu0 0.0
    %346 = vmatprep.subr.mxu0 0.0
    %347 = vmatpush1.msra.mxu0 0.0
    %348 = vmatprep.subr.mxu0 0.0
    %349 = vmatpush1.msra.mxu0 0.0
    %350 = vmatprep.subr.mxu0 0.0
    %351 = vmatpush1.msra.mxu0 0.0
    %352 = vmatprep.subr.mxu0 0.0
    %353 = vmatpush1.msra.mxu0 0.0
    %354 = vmatprep.subr.mxu0 0.0
    %355 = vmatpush1.msra.mxu0 0.0
    %356 = vmatprep.subr.mxu0 0.0
    %357 = vmatpush1.msra.mxu0 0.0
    %358 = vmatprep.subr.mxu0 0.0
    %359 = vmatpush1.msra.mxu0 0.0
    %360 = vmatprep.subr.mxu0 0.0
    %361 = vmatpush1.msra.mxu0 0.0
    %362 = vmatprep.subr.mxu0 0.0
    %363 = vmatpush1.msra.mxu0 0.0
    %364 = vmatprep.subr.mxu0 0.0
    %365 = vmatpush1.msra.mxu0 0.0
    %366 = vmatprep.subr.mxu0 0.0
    %367 = vmatpush1.msra.mxu0 0.0
    %368 = vmatprep.subr.mxu0 0.0
    %369 = vmatpush1.msra.mxu0 0.0
    %370 = vmatprep.subr.mxu0 0.0
    %371 = vmatpush1.msra.mxu0 0.0
    %372 = vmatprep.subr.mxu0 0.0
    %373 = vmatpush1.msra.mxu0 0.0
    %374 = vmatprep.subr.mxu0 0.0
    %375 = vmatpush1.msra.mxu0 0.0
    %376 = vmatprep.subr.mxu0 0.0
    %377 = vmatpush1.msra.mxu0 0.0
    %378 = vmatprep.subr.mxu0 0.0
    %379 = vmatpush1.msra.mxu0 0.0
    %380 = vmatprep.subr.mxu0 0.0
    %381 = vmatpush1.msra.mxu0 0.0
    %382 = vmatprep.subr.mxu0 0.0
    %383 = vmatpush1.msra.mxu0 0.0
    %384 = vmatprep.subr.mxu0 0.0
    %385 = vmatpush1.msra.mxu0 0.0
    %386 = vmatprep.subr.mxu0 0.0
    %387 = vmatpush1.msra.mxu0 0.0
    %388 = vmatprep.mubr.f32.mxu0 0.0
    %389 = vmatmul.mubr.f32.gmra.mrb[0].mxu0 %v94
    %v390 = vpop.f32.mrb[0].mxu0
    %v391 = vadd.f32 0.0, %v390
    %v392 = vpop.f32.mrb[0].mxu0
    %393 = vmatprep.mubr.f32.mxu0 0.0
    %394 = vmatmul.mubr.f32.gmra.mrb[0].mxu0 %v97
    %v395 = vpop.f32.mrb[0].mxu0
    %v396 = vadd.f32 0.0, %v395
    %v397 = vpop.f32.mrb[0].mxu0
    %398 = vdwg.mxu0
    %399 = vmatprep.subr.mxu0 0.0
    %400 = vmatpush1.msra.mxu0 %v60
    %401 = vmatprep.subr.mxu0 0.0
    %402 = vmatpush1.msra.mxu0 %v61
    %403 = vmatprep.subr.mxu0 0.0
    %404 = vmatpush1.msra.mxu0 %v62
    %405 = vmatprep.subr.mxu0 0.0
    %406 = vmatpush1.msra.mxu0 %v63
    %407 = vmatprep.subr.mxu0 0.0
    %408 = vmatpush1.msra.mxu0 0.0
    %409 = vmatprep.subr.mxu0 0.0
    %410 = vmatpush1.msra.mxu0 0.0
    %411 = vmatprep.subr.mxu0 0.0
    %412 = vmatpush1.msra.mxu0 0.0
    %413 = vmatprep.subr.mxu0 0.0
    %414 = vmatpush1.msra.mxu0 0.0
    %415 = vmatprep.subr.mxu0 0.0
    %416 = vmatpush1.msra.mxu0 0.0
    %417 = vmatprep.subr.mxu0 0.0
    %418 = vmatpush1.msra.mxu0 0.0
    %419 = vmatprep.subr.mxu0 0.0
    %420 = vmatpush1.msra.mxu0 0.0
    %421 = vmatprep.subr.mxu0 0.0
    %422 = vmatpush1.msra.mxu0 0.0
    %423 = vmatprep.subr.mxu0 0.0
    %424 = vmatpush1.msra.mxu0 0.0
    %425 = vmatprep.subr.mxu0 0.0
    %426 = vmatpush1.msra.mxu0 0.0
    %427 = vmatprep.subr.mxu0 0.0
    %428 = vmatpush1.msra.mxu0 0.0
    %429 = vmatprep.subr.mxu0 0.0
    %430 = vmatpush1.msra.mxu0 0.0
    %431 = vmatprep.subr.mxu0 0.0
    %432 = vmatpush1.msra.mxu0 0.0
    %433 = vmatprep.subr.mxu0 0.0
    %434 = vmatpush1.msra.mxu0 0.0
    %435 = vmatprep.subr.mxu0 0.0
    %436 = vmatpush1.msra.mxu0 0.0
    %437 = vmatprep.subr.mxu0 0.0
    %438 = vmatpush1.msra.mxu0 0.0
    %439 = vmatprep.subr.mxu0 0.0
    %440 = vmatpush1.msra.mxu0 0.0
    %441 = vmatprep.subr.mxu0 0.0
    %442 = vmatpush1.msra.mxu0 0.0
    %443 = vmatprep.subr.mxu0 0.0
    %444 = vmatpush1.msra.mxu0 0.0
    %445 = vmatprep.subr.mxu0 0.0
    %446 = vmatpush1.msra.mxu0 0.0
    %447 = vmatprep.subr.mxu0 0.0
    %448 = vmatpush1.msra.mxu0 0.0
    %449 = vmatprep.subr.mxu0 0.0
    %450 = vmatpush1.msra.mxu0 0.0
    %451 = vmatprep.subr.mxu0 0.0
    %452 = vmatpush1.msra.mxu0 0.0
    %453 = vmatprep.subr.mxu0 0.0
    %454 = vmatpush1.msra.mxu0 0.0
    %455 = vmatprep.subr.mxu0 0.0
    %456 = vmatpush1.msra.mxu0 0.0
    %457 = vmatprep.subr.mxu0 0.0
    %458 = vmatpush1.msra.mxu0 0.0
    %459 = vmatprep.subr.mxu0 0.0
    %460 = vmatpush1.msra.mxu0 0.0
    %461 = vmatprep.subr.mxu0 0.0
    %462 = vmatpush1.msra.mxu0 0.0
    %463 = vmatprep.mubr.f32.mxu0 0.0
    %464 = vmatmul.mubr.f32.gmra.mrb[0].mxu0 %v94
    %v465 = vpop.f32.mrb[0].mxu0
    %v466 = vadd.f32 0.0, %v465
    %v467 = vpop.f32.mrb[0].mxu0
    %468 = vmatprep.mubr.f32.mxu0 0.0
    %469 = vmatmul.mubr.f32.gmra.mrb[0].mxu0 %v97
    %v470 = vpop.f32.mrb[0].mxu0
    %v471 = vadd.f32 0.0, %v470
    %v472 = vpop.f32.mrb[0].mxu0
    %473 = vdwg.mxu0
    %474 = vmatprep.subr.mxu0 0.0
    %475 = vmatpush1.msra.mxu0 %v64
    %476 = vmatprep.subr.mxu0 0.0
    %477 = vmatpush1.msra.mxu0 %v65
    %478 = vmatprep.subr.mxu0 0.0
    %479 = vmatpush1.msra.mxu0 %v66
    %480 = vmatprep.subr.mxu0 0.0
    %481 = vmatpush1.msra.mxu0 %v67
    %482 = vmatprep.subr.mxu0 0.0
    %483 = vmatpush1.msra.mxu0 0.0
    %484 = vmatprep.subr.mxu0 0.0
    %485 = vmatpush1.msra.mxu0 0.0
    %486 = vmatprep.subr.mxu0 0.0
    %487 = vmatpush1.msra.mxu0 0.0
    %488 = vmatprep.subr.mxu0 0.0
    %489 = vmatpush1.msra.mxu0 0.0
    %490 = vmatprep.subr.mxu0 0.0
    %491 = vmatpush1.msra.mxu0 0.0
    %492 = vmatprep.subr.mxu0 0.0
    %493 = vmatpush1.msra.mxu0 0.0
    %494 = vmatprep.subr.mxu0 0.0
    %495 = vmatpush1.msra.mxu0 0.0
    %496 = vmatprep.subr.mxu0 0.0
    %497 = vmatpush1.msra.mxu0 0.0
    %498 = vmatprep.subr.mxu0 0.0
    %499 = vmatpush1.msra.mxu0 0.0
    %500 = vmatprep.subr.mxu0 0.0
    %501 = vmatpush1.msra.mxu0 0.0
    %502 = vmatprep.subr.mxu0 0.0
    %503 = vmatpush1.msra.mxu0 0.0
    %504 = vmatprep.subr.mxu0 0.0
    %505 = vmatpush1.msra.mxu0 0.0
    %506 = vmatprep.subr.mxu0 0.0
    %507 = vmatpush1.msra.mxu0 0.0
    %508 = vmatprep.subr.mxu0 0.0
    %509 = vmatpush1.msra.mxu0 0.0
    %510 = vmatprep.subr.mxu0 0.0
    %511 = vmatpush1.msra.mxu0 0.0
    %512 = vmatprep.subr.mxu0 0.0
    %513 = vmatpush1.msra.mxu0 0.0
    %514 = vmatprep.subr.mxu0 0.0
    %515 = vmatpush1.msra.mxu0 0.0
    %516 = vmatprep.subr.mxu0 0.0
    %517 = vmatpush1.msra.mxu0 0.0
    %518 = vmatprep.subr.mxu0 0.0
    %519 = vmatpush1.msra.mxu0 0.0
    %520 = vmatprep.subr.mxu0 0.0
    %521 = vmatpush1.msra.mxu0 0.0
    %522 = vmatprep.subr.mxu0 0.0
    %523 = vmatpush1.msra.mxu0 0.0
    %524 = vmatprep.subr.mxu0 0.0
    %525 = vmatpush1.msra.mxu0 0.0
    %526 = vmatprep.subr.mxu0 0.0
    %527 = vmatpush1.msra.mxu0 0.0
    %528 = vmatprep.subr.mxu0 0.0
    %529 = vmatpush1.msra.mxu0 0.0
    %530 = vmatprep.subr.mxu0 0.0
    %531 = vmatpush1.msra.mxu0 0.0
    %532 = vmatprep.subr.mxu0 0.0
    %533 = vmatpush1.msra.mxu0 0.0
    %534 = vmatprep.subr.mxu0 0.0
    %535 = vmatpush1.msra.mxu0 0.0
    %536 = vmatprep.subr.mxu0 0.0
    %537 = vmatpush1.msra.mxu0 0.0
    %538 = vmatprep.mubr.f32.mxu0 0.0
    %539 = vmatmul.mubr.f32.gmra.mrb[0].mxu0 %v94
    %v540 = vpop.f32.mrb[0].mxu0
    %v541 = vadd.f32 0.0, %v540
    %v542 = vpop.f32.mrb[0].mxu0
    %543 = vmatprep.mubr.f32.mxu0 0.0
    %544 = vmatmul.mubr.f32.gmra.mrb[0].mxu0 %v97
    %v545 = vpop.f32.mrb[0].mxu0
    %v546 = vadd.f32 0.0, %v545
    %v547 = vpop.f32.mrb[0].mxu0
    %548 = vdwg.mxu0
    %549 = vmatprep.subr.mxu0 0.0
    %550 = vmatpush1.msra.mxu0 %v68
    %551 = vmatprep.subr.mxu0 0.0
    %552 = vmatpush1.msra.mxu0 %v69
    %553 = vmatprep.subr.mxu0 0.0
    %554 = vmatpush1.msra.mxu0 %v70
    %555 = vmatprep.subr.mxu0 0.0
    %556 = vmatpush1.msra.mxu0 %v71
    %557 = vmatprep.subr.mxu0 0.0
    %558 = vmatpush1.msra.mxu0 0.0
    %559 = vmatprep.subr.mxu0 0.0
    %560 = vmatpush1.msra.mxu0 0.0
    %561 = vmatprep.subr.mxu0 0.0
    %562 = vmatpush1.msra.mxu0 0.0
    %563 = vmatprep.subr.mxu0 0.0
    %564 = vmatpush1.msra.mxu0 0.0
    %565 = vmatprep.subr.mxu0 0.0
    %566 = vmatpush1.msra.mxu0 0.0
    %567 = vmatprep.subr.mxu0 0.0
    %568 = vmatpush1.msra.mxu0 0.0
    %569 = vmatprep.subr.mxu0 0.0
    %570 = vmatpush1.msra.mxu0 0.0
    %571 = vmatprep.subr.mxu0 0.0
    %572 = vmatpush1.msra.mxu0 0.0
    %573 = vmatprep.subr.mxu0 0.0
    %574 = vmatpush1.msra.mxu0 0.0
    %575 = vmatprep.subr.mxu0 0.0
    %576 = vmatpush1.msra.mxu0 0.0
    %577 = vmatprep.subr.mxu0 0.0
    %578 = vmatpush1.msra.mxu0 0.0
    %579 = vmatprep.subr.mxu0 0.0
    %580 = vmatpush1.msra.mxu0 0.0
    %581 = vmatprep.subr.mxu0 0.0
    %582 = vmatpush1.msra.mxu0 0.0
    %583 = vmatprep.subr.mxu0 0.0
    %584 = vmatpush1.msra.mxu0 0.0
    %585 = vmatprep.subr.mxu0 0.0
    %586 = vmatpush1.msra.mxu0 0.0
    %587 = vmatprep.subr.mxu0 0.0
    %588 = vmatpush1.msra.mxu0 0.0
    %589 = vmatprep.subr.mxu0 0.0
    %590 = vmatpush1.msra.mxu0 0.0
    %591 = vmatprep.subr.mxu0 0.0
    %592 = vmatpush1.msra.mxu0 0.0
    %593 = vmatprep.subr.mxu0 0.0
    %594 = vmatpush1.msra.mxu0 0.0
    %595 = vmatprep.subr.mxu0 0.0
    %596 = vmatpush1.msra.mxu0 0.0
    %597 = vmatprep.subr.mxu0 0.0
    %598 = vmatpush1.msra.mxu0 0.0
    %599 = vmatprep.subr.mxu0 0.0
    %600 = vmatpush1.msra.mxu0 0.0
    %601 = vmatprep.subr.mxu0 0.0
    %602 = vmatpush1.msra.mxu0 0.0
    %603 = vmatprep.subr.mxu0 0.0
    %604 = vmatpush1.msra.mxu0 0.0
    %605 = vmatprep.subr.mxu0 0.0
    %606 = vmatpush1.msra.mxu0 0.0
    %607 = vmatprep.subr.mxu0 0.0
    %608 = vmatpush1.msra.mxu0 0.0
    %609 = vmatprep.subr.mxu0 0.0
    %610 = vmatpush1.msra.mxu0 0.0
    %611 = vmatprep.subr.mxu0 0.0
    %612 = vmatpush1.msra.mxu0 0.0
    %613 = vmatprep.mubr.f32.mxu0 0.0
    %614 = vmatmul.mubr.f32.gmra.mrb[0].mxu0 %v94
    %v615 = vpop.f32.mrb[0].mxu0
    %v616 = vadd.f32 0.0, %v615
    %v617 = vpop.f32.mrb[0].mxu0
    %618 = vmatprep.mubr.f32.mxu0 0.0
    %619 = vmatmul.mubr.f32.gmra.mrb[0].mxu0 %v97
    %v620 = vpop.f32.mrb[0].mxu0
    %v621 = vadd.f32 0.0, %v620
    %v622 = vpop.f32.mrb[0].mxu0
    %623 = vdwg.mxu0
    %624 = vmatprep.subr.mxu0 0.0
    %625 = vmatpush1.msra.mxu0 %v72
    %626 = vmatprep.subr.mxu0 0.0
    %627 = vmatpush1.msra.mxu0 %v73
    %628 = vmatprep.subr.mxu0 0.0
    %629 = vmatpush1.msra.mxu0 %v74
    %630 = vmatprep.subr.mxu0 0.0
    %631 = vmatpush1.msra.mxu0 %v75
    %632 = vmatprep.subr.mxu0 0.0
    %633 = vmatpush1.msra.mxu0 0.0
    %634 = vmatprep.subr.mxu0 0.0
    %635 = vmatpush1.msra.mxu0 0.0
    %636 = vmatprep.subr.mxu0 0.0
    %637 = vmatpush1.msra.mxu0 0.0
    %638 = vmatprep.subr.mxu0 0.0
    %639 = vmatpush1.msra.mxu0 0.0
    %640 = vmatprep.subr.mxu0 0.0
    %641 = vmatpush1.msra.mxu0 0.0
    %642 = vmatprep.subr.mxu0 0.0
    %643 = vmatpush1.msra.mxu0 0.0
    %644 = vmatprep.subr.mxu0 0.0
    %645 = vmatpush1.msra.mxu0 0.0
    %646 = vmatprep.subr.mxu0 0.0
    %647 = vmatpush1.msra.mxu0 0.0
    %648 = vmatprep.subr.mxu0 0.0
    %649 = vmatpush1.msra.mxu0 0.0
    %650 = vmatprep.subr.mxu0 0.0
    %651 = vmatpush1.msra.mxu0 0.0
    %652 = vmatprep.subr.mxu0 0.0
    %653 = vmatpush1.msra.mxu0 0.0
    %654 = vmatprep.subr.mxu0 0.0
    %655 = vmatpush1.msra.mxu0 0.0
    %656 = vmatprep.subr.mxu0 0.0
    %657 = vmatpush1.msra.mxu0 0.0
    %658 = vmatprep.subr.mxu0 0.0
    %659 = vmatpush1.msra.mxu0 0.0
    %660 = vmatprep.subr.mxu0 0.0
    %661 = vmatpush1.msra.mxu0 0.0
    %662 = vmatprep.subr.mxu0 0.0
    %663 = vmatpush1.msra.mxu0 0.0
    %664 = vmatprep.subr.mxu0 0.0
    %665 = vmatpush1.msra.mxu0 0.0
    %666 = vmatprep.subr.mxu0 0.0
    %667 = vmatpush1.msra.mxu0 0.0
    %668 = vmatprep.subr.mxu0 0.0
    %669 = vmatpush1.msra.mxu0 0.0
    %670 = vmatprep.subr.mxu0 0.0
    %671 = vmatpush1.msra.mxu0 0.0
    %672 = vmatprep.subr.mxu0 0.0
    %673 = vmatpush1.msra.mxu0 0.0
    %674 = vmatprep.subr.mxu0 0.0
    %675 = vmatpush1.msra.mxu0 0.0
    %676 = vmatprep.subr.mxu0 0.0
    %677 = vmatpush1.msra.mxu0 0.0
    %678 = vmatprep.subr.mxu0 0.0
    %679 = vmatpush1.msra.mxu0 0.0
    %680 = vmatprep.subr.mxu0 0.0
    %681 = vmatpush1.msra.mxu0 0.0
    %682 = vmatprep.subr.mxu0 0.0
    %683 = vmatpush1.msra.mxu0 0.0
    %684 = vmatprep.subr.mxu0 0.0
    %685 = vmatpush1.msra.mxu0 0.0
    %686 = vmatprep.subr.mxu0 0.0
    %687 = vmatpush1.msra.mxu0 0.0
    %688 = vmatprep.mubr.f32.mxu0 0.0
    %689 = vmatmul.mubr.f32.gmra.mrb[0].mxu0 %v94
    %v690 = vpop.f32.mrb[0].mxu0
    %v691 = vadd.f32 0.0, %v690
    %v692 = vpop.f32.mrb[0].mxu0
    %693 = vmatprep.mubr.f32.mxu0 0.0
    %694 = vmatmul.mubr.f32.gmra.mrb[0].mxu0 %v97
    %v695 = vpop.f32.mrb[0].mxu0
    %v696 = vadd.f32 0.0, %v695
    %v697 = vpop.f32.mrb[0].mxu0
    %698 = vdwg.mxu0
    %699 = vmatprep.subr.mxu0 0.0
    %700 = vmatpush1.msra.mxu0 %v76
    %701 = vmatprep.subr.mxu0 0.0
    %702 = vmatpush1.msra.mxu0 %v77
    %703 = vmatprep.subr.mxu0 0.0
    %704 = vmatpush1.msra.mxu0 %v78
    %705 = vmatprep.subr.mxu0 0.0
    %706 = vmatpush1.msra.mxu0 %v79
    %707 = vmatprep.subr.mxu0 0.0
    %708 = vmatpush1.msra.mxu0 0.0
    %709 = vmatprep.subr.mxu0 0.0
    %710 = vmatpush1.msra.mxu0 0.0
    %711 = vmatprep.subr.mxu0 0.0
    %712 = vmatpush1.msra.mxu0 0.0
    %713 = vmatprep.subr.mxu0 0.0
    %714 = vmatpush1.msra.mxu0 0.0
    %715 = vmatprep.subr.mxu0 0.0
    %716 = vmatpush1.msra.mxu0 0.0
    %717 = vmatprep.subr.mxu0 0.0
    %718 = vmatpush1.msra.mxu0 0.0
    %719 = vmatprep.subr.mxu0 0.0
    %720 = vmatpush1.msra.mxu0 0.0
    %721 = vmatprep.subr.mxu0 0.0
    %722 = vmatpush1.msra.mxu0 0.0
    %723 = vmatprep.subr.mxu0 0.0
    %724 = vmatpush1.msra.mxu0 0.0
    %725 = vmatprep.subr.mxu0 0.0
    %726 = vmatpush1.msra.mxu0 0.0
    %727 = vmatprep.subr.mxu0 0.0
    %728 = vmatpush1.msra.mxu0 0.0
    %729 = vmatprep.subr.mxu0 0.0
    %730 = vmatpush1.msra.mxu0 0.0
    %731 = vmatprep.subr.mxu0 0.0
    %732 = vmatpush1.msra.mxu0 0.0
    %733 = vmatprep.subr.mxu0 0.0
    %734 = vmatpush1.msra.mxu0 0.0
    %735 = vmatprep.subr.mxu0 0.0
    %736 = vmatpush1.msra.mxu0 0.0
    %737 = vmatprep.subr.mxu0 0.0
    %738 = vmatpush1.msra.mxu0 0.0
    %739 = vmatprep.subr.mxu0 0.0
    %740 = vmatpush1.msra.mxu0 0.0
    %741 = vmatprep.subr.mxu0 0.0
    %742 = vmatpush1.msra.mxu0 0.0
    %743 = vmatprep.subr.mxu0 0.0
    %744 = vmatpush1.msra.mxu0 0.0
    %745 = vmatprep.subr.mxu0 0.0
    %746 = vmatpush1.msra.mxu0 0.0
    %747 = vmatprep.subr.mxu0 0.0
    %748 = vmatpush1.msra.mxu0 0.0
    %749 = vmatprep.subr.mxu0 0.0
    %750 = vmatpush1.msra.mxu0 0.0
    %751 = vmatprep.subr.mxu0 0.0
    %752 = vmatpush1.msra.mxu0 0.0
    %753 = vmatprep.subr.mxu0 0.0
    %754 = vmatpush1.msra.mxu0 0.0
    %755 = vmatprep.subr.mxu0 0.0
    %756 = vmatpush1.msra.mxu0 0.0
    %757 = vmatprep.subr.mxu0 0.0
    %758 = vmatpush1.msra.mxu0 0.0
    %759 = vmatprep.subr.mxu0 0.0
    %760 = vmatpush1.msra.mxu0 0.0
    %761 = vmatprep.subr.mxu0 0.0
    %762 = vmatpush1.msra.mxu0 0.0
    %763 = vmatprep.mubr.f32.mxu0 0.0
    %764 = vmatmul.mubr.f32.gmra.mrb[0].mxu0 %v94
    %v765 = vpop.f32.mrb[0].mxu0
    %v766 = vadd.f32 0.0, %v765
    %v767 = vpop.f32.mrb[0].mxu0
    %768 = vmatprep.mubr.f32.mxu0 0.0
    %769 = vmatmul.mubr.f32.gmra.mrb[0].mxu0 %v97
    %v770 = vpop.f32.mrb[0].mxu0
    %v771 = vadd.f32 0.0, %v770
    %v772 = vpop.f32.mrb[0].mxu0
    %773 = vdwg.mxu0
    %774 = vmatprep.subr.mxu0 0.0
    %775 = vmatpush1.msra.mxu0 %v80
    %776 = vmatprep.subr.mxu0 0.0
    %777 = vmatpush1.msra.mxu0 %v81
    %778 = vmatprep.subr.mxu0 0.0
    %779 = vmatpush1.msra.mxu0 %v82
    %780 = vmatprep.subr.mxu0 0.0
    %781 = vmatpush1.msra.mxu0 %v83
    %782 = vmatprep.subr.mxu0 0.0
    %783 = vmatpush1.msra.mxu0 0.0
    %784 = vmatprep.subr.mxu0 0.0
    %785 = vmatpush1.msra.mxu0 0.0
    %786 = vmatprep.subr.mxu0 0.0
    %787 = vmatpush1.msra.mxu0 0.0
    %788 = vmatprep.subr.mxu0 0.0
    %789 = vmatpush1.msra.mxu0 0.0
    %790 = vmatprep.subr.mxu0 0.0
    %791 = vmatpush1.msra.mxu0 0.0
    %792 = vmatprep.subr.mxu0 0.0
    %793 = vmatpush1.msra.mxu0 0.0
    %794 = vmatprep.subr.mxu0 0.0
    %795 = vmatpush1.msra.mxu0 0.0
    %796 = vmatprep.subr.mxu0 0.0
    %797 = vmatpush1.msra.mxu0 0.0
    %798 = vmatprep.subr.mxu0 0.0
    %799 = vmatpush1.msra.mxu0 0.0
    %800 = vmatprep.subr.mxu0 0.0
    %801 = vmatpush1.msra.mxu0 0.0
    %802 = vmatprep.subr.mxu0 0.0
    %803 = vmatpush1.msra.mxu0 0.0
    %804 = vmatprep.subr.mxu0 0.0
    %805 = vmatpush1.msra.mxu0 0.0
    %806 = vmatprep.subr.mxu0 0.0
    %807 = vmatpush1.msra.mxu0 0.0
    %808 = vmatprep.subr.mxu0 0.0
    %809 = vmatpush1.msra.mxu0 0.0
    %810 = vmatprep.subr.mxu0 0.0
    %811 = vmatpush1.msra.mxu0 0.0
    %812 = vmatprep.subr.mxu0 0.0
    %813 = vmatpush1.msra.mxu0 0.0
    %814 = vmatprep.subr.mxu0 0.0
    %815 = vmatpush1.msra.mxu0 0.0
    %816 = vmatprep.subr.mxu0 0.0
    %817 = vmatpush1.msra.mxu0 0.0
    %818 = vmatprep.subr.mxu0 0.0
    %819 = vmatpush1.msra.mxu0 0.0
    %820 = vmatprep.subr.mxu0 0.0
    %821 = vmatpush1.msra.mxu0 0.0
    %822 = vmatprep.subr.mxu0 0.0
    %823 = vmatpush1.msra.mxu0 0.0
    %824 = vmatprep.subr.mxu0 0.0
    %825 = vmatpush1.msra.mxu0 0.0
    %826 = vmatprep.subr.mxu0 0.0
    %827 = vmatpush1.msra.mxu0 0.0
    %828 = vmatprep.subr.mxu0 0.0
    %829 = vmatpush1.msra.mxu0 0.0
    %830 = vmatprep.subr.mxu0 0.0
    %831 = vmatpush1.msra.mxu0 0.0
    %832 = vmatprep.subr.mxu0 0.0
    %833 = vmatpush1.msra.mxu0 0.0
    %834 = vmatprep.subr.mxu0 0.0
    %835 = vmatpush1.msra.mxu0 0.0
    %836 = vmatprep.subr.mxu0 0.0
    %837 = vmatpush1.msra.mxu0 0.0
    %838 = vmatprep.mubr.f32.mxu0 0.0
    %839 = vmatmul.mubr.f32.gmra.mrb[0].mxu0 %v94
    %v840 = vpop.f32.mrb[0].mxu0
    %v841 = vadd.f32 0.0, %v840
    %v842 = vpop.f32.mrb[0].mxu0
    %843 = vmatprep.mubr.f32.mxu0 0.0
    %844 = vmatmul.mubr.f32.gmra.mrb[0].mxu0 %v97
    %v845 = vpop.f32.mrb[0].mxu0
    %v846 = vadd.f32 0.0, %v845
    %v847 = vpop.f32.mrb[0].mxu0
    %848 = vdwg.mxu0
    %849 = vmatprep.subr.mxu0 0.0
    %850 = vmatpush1.msra.mxu0 %v84
    %851 = vmatprep.subr.mxu0 0.0
    %852 = vmatpush1.msra.mxu0 %v85
    %853 = vmatprep.subr.mxu0 0.0
    %854 = vmatpush1.msra.mxu0 %v86
    %855 = vmatprep.subr.mxu0 0.0
    %856 = vmatpush1.msra.mxu0 %v87
    %857 = vmatprep.subr.mxu0 0.0
    %858 = vmatpush1.msra.mxu0 0.0
    %859 = vmatprep.subr.mxu0 0.0
    %860 = vmatpush1.msra.mxu0 0.0
    %861 = vmatprep.subr.mxu0 0.0
    %862 = vmatpush1.msra.mxu0 0.0
    %863 = vmatprep.subr.mxu0 0.0
    %864 = vmatpush1.msra.mxu0 0.0
    %865 = vmatprep.subr.mxu0 0.0
    %866 = vmatpush1.msra.mxu0 0.0
    %867 = vmatprep.subr.mxu0 0.0
    %868 = vmatpush1.msra.mxu0 0.0
    %869 = vmatprep.subr.mxu0 0.0
    %870 = vmatpush1.msra.mxu0 0.0
    %871 = vmatprep.subr.mxu0 0.0
    %872 = vmatpush1.msra.mxu0 0.0
    %873 = vmatprep.subr.mxu0 0.0
    %874 = vmatpush1.msra.mxu0 0.0
    %875 = vmatprep.subr.mxu0 0.0
    %876 = vmatpush1.msra.mxu0 0.0
    %877 = vmatprep.subr.mxu0 0.0
    %878 = vmatpush1.msra.mxu0 0.0
    %879 = vmatprep.subr.mxu0 0.0
    %880 = vmatpush1.msra.mxu0 0.0
    %881 = vmatprep.subr.mxu0 0.0
    %882 = vmatpush1.msra.mxu0 0.0
    %883 = vmatprep.subr.mxu0 0.0
    %884 = vmatpush1.msra.mxu0 0.0
    %885 = vmatprep.subr.mxu0 0.0
    %886 = vmatpush1.msra.mxu0 0.0
    %887 = vmatprep.subr.mxu0 0.0
    %888 = vmatpush1.msra.mxu0 0.0
    %889 = vmatprep.subr.mxu0 0.0
    %890 = vmatpush1.msra.mxu0 0.0
    %891 = vmatprep.subr.mxu0 0.0
    %892 = vmatpush1.msra.mxu0 0.0
    %893 = vmatprep.subr.mxu0 0.0
    %894 = vmatpush1.msra.mxu0 0.0
    %895 = vmatprep.subr.mxu0 0.0
    %896 = vmatpush1.msra.mxu0 0.0
    %897 = vmatprep.subr.mxu0 0.0
    %898 = vmatpush1.msra.mxu0 0.0
    %899 = vmatprep.subr.mxu0 0.0
    %900 = vmatpush1.msra.mxu0 0.0
    %901 = vmatprep.subr.mxu0 0.0
    %902 = vmatpush1.msra.mxu0 0.0
    %903 = vmatprep.subr.mxu0 0.0
    %904 = vmatpush1.msra.mxu0 0.0
    %905 = vmatprep.subr.mxu0 0.0
    %906 = vmatpush1.msra.mxu0 0.0
    %907 = vmatprep.subr.mxu0 0.0
    %908 = vmatpush1.msra.mxu0 0.0
    %909 = vmatprep.subr.mxu0 0.0
    %910 = vmatpush1.msra.mxu0 0.0
    %911 = vmatprep.subr.mxu0 0.0
    %912 = vmatpush1.msra.mxu0 0.0
    %913 = vmatprep.mubr.f32.mxu0 0.0
    %914 = vmatmul.mubr.f32.gmra.mrb[0].mxu0 %v94
    %v915 = vpop.f32.mrb[0].mxu0
    %v916 = vadd.f32 0.0, %v915
    %v917 = vpop.f32.mrb[0].mxu0
    %918 = vmatprep.mubr.f32.mxu0 0.0
    %919 = vmatmul.mubr.f32.gmra.mrb[0].mxu0 %v97
    %v920 = vpop.f32.mrb[0].mxu0
    %v921 = vadd.f32 0.0, %v920
    %v922 = vpop.f32.mrb[0].mxu0
    %923 = vdwg.mxu0
    %924 = vmatprep.subr.mxu0 0.0
    %925 = vmatpush1.msra.mxu0 %v88
    %926 = vmatprep.subr.mxu0 0.0
    %927 = vmatpush1.msra.mxu0 %v89
    %928 = vmatprep.subr.mxu0 0.0
    %929 = vmatpush1.msra.mxu0 %v90
    %930 = vmatprep.subr.mxu0 0.0
    %931 = vmatpush1.msra.mxu0 %v91
    %932 = vmatprep.subr.mxu0 0.0
    %933 = vmatpush1.msra.mxu0 0.0
    %934 = vmatprep.subr.mxu0 0.0
    %935 = vmatpush1.msra.mxu0 0.0
    %936 = vmatprep.subr.mxu0 0.0
    %937 = vmatpush1.msra.mxu0 0.0
    %938 = vmatprep.subr.mxu0 0.0
    %939 = vmatpush1.msra.mxu0 0.0
    %940 = vmatprep.subr.mxu0 0.0
    %941 = vmatpush1.msra.mxu0 0.0
    %942 = vmatprep.subr.mxu0 0.0
    %943 = vmatpush1.msra.mxu0 0.0
    %944 = vmatprep.subr.mxu0 0.0
    %945 = vmatpush1.msra.mxu0 0.0
    %946 = vmatprep.subr.mxu0 0.0
    %947 = vmatpush1.msra.mxu0 0.0
    %948 = vmatprep.subr.mxu0 0.0
    %949 = vmatpush1.msra.mxu0 0.0
    %950 = vmatprep.subr.mxu0 0.0
    %951 = vmatpush1.msra.mxu0 0.0
    %952 = vmatprep.subr.mxu0 0.0
    %953 = vmatpush1.msra.mxu0 0.0
    %954 = vmatprep.subr.mxu0 0.0
    %955 = vmatpush1.msra.mxu0 0.0
    %956 = vmatprep.subr.mxu0 0.0
    %957 = vmatpush1.msra.mxu0 0.0
    %958 = vmatprep.subr.mxu0 0.0
    %959 = vmatpush1.msra.mxu0 0.0
    %960 = vmatprep.subr.mxu0 0.0
    %961 = vmatpush1.msra.mxu0 0.0
    %962 = vmatprep.subr.mxu0 0.0
    %963 = vmatpush1.msra.mxu0 0.0
    %964 = vmatprep.subr.mxu0 0.0
    %965 = vmatpush1.msra.mxu0 0.0
    %966 = vmatprep.subr.mxu0 0.0
    %967 = vmatpush1.msra.mxu0 0.0
    %968 = vmatprep.subr.mxu0 0.0
    %969 = vmatpush1.msra.mxu0 0.0
    %970 = vmatprep.subr.mxu0 0.0
    %971 = vmatpush1.msra.mxu0 0.0
    %972 = vmatprep.subr.mxu0 0.0
    %973 = vmatpush1.msra.mxu0 0.0
    %974 = vmatprep.subr.mxu0 0.0
    %975 = vmatpush1.msra.mxu0 0.0
    %976 = vmatprep.subr.mxu0 0.0
    %977 = vmatpush1.msra.mxu0 0.0
    %978 = vmatprep.subr.mxu0 0.0
    %979 = vmatpush1.msra.mxu0 0.0
    %980 = vmatprep.subr.mxu0 0.0
    %981 = vmatpush1.msra.mxu0 0.0
    %982 = vmatprep.subr.mxu0 0.0
    %983 = vmatpush1.msra.mxu0 0.0
    %984 = vmatprep.subr.mxu0 0.0
    %985 = vmatpush1.msra.mxu0 0.0
    %986 = vmatprep.subr.mxu0 0.0
    %987 = vmatpush1.msra.mxu0 0.0
    %988 = vmatprep.mubr.f32.mxu0 0.0
    %989 = vmatmul.mubr.f32.gmra.mrb[0].mxu0 %v94
    %v990 = vpop.f32.mrb[0].mxu0
    %v991 = vadd.f32 0.0, %v990
    %v992 = vpop.f32.mrb[0].mxu0
    %993 = vmatprep.mubr.f32.mxu0 0.0
    %994 = vmatmul.mubr.f32.gmra.mrb[0].mxu0 %v97
    %v995 = vpop.f32.mrb[0].mxu0
    %v996 = vadd.f32 0.0, %v995
    %v997 = vpop.f32.mrb[0].mxu0
    %998 = vdwg.mxu0
    %v999 = vld [vmem:[%s0] sm:$0x3]
    %v1000 = vrot.slane %v999, 6
    %v1001 = vrot.slane %v999, 4
    %v1002 = vrot.slane %v999, 2
    %vm1003 = vcmask 1041408
    %v1004 = vsel %vm1003, %v999, %v1000
    %vm1005 = vcmask 1043456
    %v1006 = vsel %vm1005, %v1004, %v1001
    %vm1007 = vcmask 1045504
    %v1008 = vsel %vm1007, %v1006, %v1002
    %v1009 = vlaneseq
    %v1010 = vand.u32 %v1009, 127
    %v1011 = vcombine.high %v1008, %v1008
    %v1013 = vunpack.c.l.s4 1966171168
    %v1014 = vunpack.c.0.s8 %v1013
    %v1015 = vlaneseq
    %v1016 = vshrl.u32 %v1015, 7
    %v1017 = vsub.s32 %v1014, %v1016
    %v1018 = vrot.slane %v1008, %v1017
    %v1020 = vunpack.c.l.s4 1966171168
    %v1021 = vunpack.c.0.s8 %v1020
    %v1022 = vlaneseq
    %v1023 = vshrl.u32 %v1022, 7
    %v1024 = vsub.s32 %v1021, %v1023
    %v1025 = vrot.slane %v1011, %v1024
    %v1026 = vcombine.high %v1018, %v1018
    %v1027 = vcombine.high %v1025, %v1025
    %v1029 = vunpack.c.l.s4 1966171168
    %v1030 = vunpack.c.0.s8 %v1029
    %v1031 = vlaneseq
    %v1032 = vshrl.u32 %v1031, 7
    %v1033 = vsub.s32 %v1030, %v1032
    %v1034 = vrot.slane %v1018, %v1033
    %v1036 = vunpack.c.l.s4 1966171168
    %v1037 = vunpack.c.0.s8 %v1036
    %v1038 = vlaneseq
    %v1039 = vshrl.u32 %v1038, 7
    %v1040 = vsub.s32 %v1037, %v1039
    %v1041 = vrot.slane %v1025, %v1040
    %v1043 = vunpack.c.l.s4 1966171168
    %v1044 = vunpack.c.0.s8 %v1043
    %v1045 = vlaneseq
    %v1046 = vshrl.u32 %v1045, 7
    %v1047 = vsub.s32 %v1044, %v1046
    %v1048 = vrot.slane %v1026, %v1047
    %v1050 = vunpack.c.l.s4 1966171168
    %v1051 = vunpack.c.0.s8 %v1050
    %v1052 = vlaneseq
    %v1053 = vshrl.u32 %v1052, 7
    %v1054 = vsub.s32 %v1051, %v1053
    %v1055 = vrot.slane %v1027, %v1054
    %v1056 = vcombine.high %v1034, %v1034
    %v1057 = vcombine.high %v1041, %v1041
    %v1058 = vcombine.high %v1048, %v1048
    %v1059 = vcombine.high %v1055, %v1055
    %1060 = vset.pattern.permute.xlu0 0
    %1061 = vperm.xlu0 %1060, %v1034
    %v1062 = vpop.permute.xlu0 %1061
    %v1063 = vlaneseq
    %v1064 = vshrl.u32 %v1063, 7
    %v1065 = vsub.s32 0, %v1064
    %v1066 = vrot.slane %v1062, %v1065
    %1067 = vset.pattern.permute.xlu0 0
    %1068 = vperm.xlu0 %1067, %v1048
    %v1069 = vpop.permute.xlu0 %1068
    %v1070 = vlaneseq
    %v1071 = vshrl.u32 %v1070, 7
    %v1072 = vsub.s32 0, %v1071
    %v1073 = vrot.slane %v1069, %v1072
    %1074 = vset.pattern.permute.xlu0 0
    %1075 = vperm.xlu0 %1074, %v1056
    %v1076 = vpop.permute.xlu0 %1075
    %v1077 = vlaneseq
    %v1078 = vshrl.u32 %v1077, 7
    %v1079 = vsub.s32 0, %v1078
    %v1080 = vrot.slane %v1076, %v1079
    %1081 = vset.pattern.permute.xlu0 0
    %1082 = vperm.xlu0 %1081, %v1058
    %v1083 = vpop.permute.xlu0 %1082
    %v1084 = vlaneseq
    %v1085 = vshrl.u32 %v1084, 7
    %v1086 = vsub.s32 0, %v1085
    %v1087 = vrot.slane %v1083, %v1086
    %1088 = vset.pattern.permute.xlu0 0
    %1089 = vperm.xlu0 %1088, %v1041
    %v1090 = vpop.permute.xlu0 %1089
    %v1091 = vlaneseq
    %v1092 = vshrl.u32 %v1091, 7
    %v1093 = vsub.s32 0, %v1092
    %v1094 = vrot.slane %v1090, %v1093
    %1095 = vset.pattern.permute.xlu0 0
    %1096 = vperm.xlu0 %1095, %v1055
    %v1097 = vpop.permute.xlu0 %1096
    %v1098 = vlaneseq
    %v1099 = vshrl.u32 %v1098, 7
    %v1100 = vsub.s32 0, %v1099
    %v1101 = vrot.slane %v1097, %v1100
    %1102 = vset.pattern.permute.xlu0 0
    %1103 = vperm.xlu0 %1102, %v1057
    %v1104 = vpop.permute.xlu0 %1103
    %v1105 = vlaneseq
    %v1106 = vshrl.u32 %v1105, 7
    %v1107 = vsub.s32 0, %v1106
    %v1108 = vrot.slane %v1104, %v1107
    %1109 = vset.pattern.permute.xlu0 0
    %1110 = vperm.xlu0 %1109, %v1059
    %v1111 = vpop.permute.xlu0 %1110
    %v1112 = vlaneseq
    %v1113 = vshrl.u32 %v1112, 7
    %v1114 = vsub.s32 0, %v1113
    %v1115 = vrot.slane %v1111, %v1114
    %vm1116 = vcmp.lt.s32.totalorder %v1010, %v1066
    %vm1117 = vcmp.lt.s32.totalorder %v1010, %v1073
    %vm1118 = vcmp.lt.s32.totalorder %v1010, %v1080
    %vm1119 = vcmp.lt.s32.totalorder %v1010, %v1087
    %vm1120 = vcmp.lt.s32.totalorder %v1010, %v1094
    %vm1121 = vcmp.lt.s32.totalorder %v1010, %v1101
    %vm1122 = vcmp.lt.s32.totalorder %v1010, %v1108
    %vm1123 = vcmp.lt.s32.totalorder %v1010, %v1115
    %v1124 = vsel %vm1116, 0.0, -1000000.0
    %v1125 = vsel %vm1117, 0.0, -1000000.0
    %v1126 = vsel %vm1118, 0.0, -1000000.0
    %v1127 = vsel %vm1119, 0.0, -1000000.0
    %v1128 = vsel %vm1120, 0.0, -1000000.0
    %v1129 = vsel %vm1121, 0.0, -1000000.0
    %v1130 = vsel %vm1122, 0.0, -1000000.0
    %v1131 = vsel %vm1123, 0.0, -1000000.0
    %vm1132 = vcmask 64512
    %v1134 = vsel %vm1132, %v166, 0
    %v1137 = vsel %vm1132, %v466, 0
    %1139 = vmatprep.subr.mxu0 0.0
    %1140 = vmatpush1.xpose.msra.mxu0 %v1137
    %1141 = vmatprep.subr.mxu0 0.0
    %1142 = vmatpush1.xpose.msra.mxu0 0.0
    %1143 = vmatprep.subr.mxu0 0.0
    %1144 = vmatpush1.xpose.msra.mxu0 0.0
    %1145 = vmatprep.subr.mxu0 0.0
    %1146 = vmatpush1.xpose.msra.mxu0 0.0
    %1147 = vmatprep.subr.mxu0 0.0
    %1148 = vmatpush1.xpose.msra.mxu0 0.0
    %1149 = vmatprep.subr.mxu0 0.0
    %1150 = vmatpush1.xpose.msra.mxu0 0.0
    %1151 = vmatprep.subr.mxu0 0.0
    %1152 = vmatpush1.xpose.msra.mxu0 0.0
    %1153 = vmatprep.subr.mxu0 0.0
    %1154 = vmatpush1.xpose.msra.mxu0 0.0
    %1155 = vmatprep.subr.mxu0 0.0
    %1156 = vmatpush1.xpose.msra.mxu0 0.0
    %1157 = vmatprep.subr.mxu0 0.0
    %1158 = vmatpush1.xpose.msra.mxu0 0.0
    %1159 = vmatprep.subr.mxu0 0.0
    %1160 = vmatpush1.xpose.msra.mxu0 0.0
    %1161 = vmatprep.subr.mxu0 0.0
    %1162 = vmatpush1.xpose.msra.mxu0 0.0
    %1163 = vmatprep.subr.mxu0 0.0
    %1164 = vmatpush1.xpose.msra.mxu0 0.0
    %1165 = vmatprep.subr.mxu0 0.0
    %1166 = vmatpush1.xpose.msra.mxu0 0.0
    %1167 = vmatprep.subr.mxu0 0.0
    %1168 = vmatpush1.xpose.msra.mxu0 0.0
    %1169 = vmatprep.subr.mxu0 0.0
    %1170 = vmatpush1.xpose.msra.mxu0 0.0
    %1171 = vmatprep.subr.mxu0 0.0
    %1172 = vmatpush1.xpose.msra.mxu0 0.0
    %1173 = vmatprep.subr.mxu0 0.0
    %1174 = vmatpush1.xpose.msra.mxu0 0.0
    %1175 = vmatprep.subr.mxu0 0.0
    %1176 = vmatpush1.xpose.msra.mxu0 0.0
    %1177 = vmatprep.subr.mxu0 0.0
    %1178 = vmatpush1.xpose.msra.mxu0 0.0
    %1179 = vmatprep.subr.mxu0 0.0
    %1180 = vmatpush1.xpose.msra.mxu0 0.0
    %1181 = vmatprep.subr.mxu0 0.0
    %1182 = vmatpush1.xpose.msra.mxu0 0.0
    %1183 = vmatprep.subr.mxu0 0.0
    %1184 = vmatpush1.xpose.msra.mxu0 0.0
    %1185 = vmatprep.subr.mxu0 0.0
    %1186 = vmatpush1.xpose.msra.mxu0 0.0
    %1187 = vmatprep.subr.mxu0 0.0
    %1188 = vmatpush1.xpose.msra.mxu0 0.0
    %1189 = vmatprep.subr.mxu0 0.0
    %1190 = vmatpush1.xpose.msra.mxu0 0.0
    %1191 = vmatprep.subr.mxu0 0.0
    %1192 = vmatpush1.xpose.msra.mxu0 0.0
    %1193 = vmatprep.subr.mxu0 0.0
    %1194 = vmatpush1.xpose.msra.mxu0 0.0
    %1195 = vmatprep.subr.mxu0 0.0
    %1196 = vmatpush1.xpose.msra.mxu0 0.0
    %1197 = vmatprep.subr.mxu0 0.0
    %1198 = vmatpush1.xpose.msra.mxu0 0.0
    %1199 = vmatprep.subr.mxu0 0.0
    %1200 = vmatpush1.xpose.msra.mxu0 0.0
    %1201 = vmatprep.subr.mxu0 0.0
    %1202 = vmatpush1.xpose.msra.mxu0 0.0
    %1203 = vmatprep.mubr.f32.mxu0 0.0
    %1204 = vmatmul.mubr.f32.gmra.mrb[0].mxu0 %v1134
    %v1205 = vpop.f32.mrb[0].mxu0
    %v1206 = vadd.f32 0.0, %v1205
    %v1207 = vpop.f32.mrb[0].mxu0
    %1208 = vdwg.mxu0
    %v1210 = vsel %vm1132, %v171, 0
    %v1213 = vsel %vm1132, %v471, 0
    %1215 = vmatprep.subr.mxu0 0.0
    %1216 = vmatpush1.xpose.msra.mxu0 %v1213
    %1217 = vmatprep.subr.mxu0 0.0
    %1218 = vmatpush1.xpose.msra.mxu0 0.0
    %1219 = vmatprep.subr.mxu0 0.0
    %1220 = vmatpush1.xpose.msra.mxu0 0.0
    %1221 = vmatprep.subr.mxu0 0.0
    %1222 = vmatpush1.xpose.msra.mxu0 0.0
    %1223 = vmatprep.subr.mxu0 0.0
    %1224 = vmatpush1.xpose.msra.mxu0 0.0
    %1225 = vmatprep.subr.mxu0 0.0
    %1226 = vmatpush1.xpose.msra.mxu0 0.0
    %1227 = vmatprep.subr.mxu0 0.0
    %1228 = vmatpush1.xpose.msra.mxu0 0.0
    %1229 = vmatprep.subr.mxu0 0.0
    %1230 = vmatpush1.xpose.msra.mxu0 0.0
    %1231 = vmatprep.subr.mxu0 0.0
    %1232 = vmatpush1.xpose.msra.mxu0 0.0
    %1233 = vmatprep.subr.mxu0 0.0
    %1234 = vmatpush1.xpose.msra.mxu0 0.0
    %1235 = vmatprep.subr.mxu0 0.0
    %1236 = vmatpush1.xpose.msra.mxu0 0.0
    %1237 = vmatprep.subr.mxu0 0.0
    %1238 = vmatpush1.xpose.msra.mxu0 0.0
    %1239 = vmatprep.subr.mxu0 0.0
    %1240 = vmatpush1.xpose.msra.mxu0 0.0
    %1241 = vmatprep.subr.mxu0 0.0
    %1242 = vmatpush1.xpose.msra.mxu0 0.0
    %1243 = vmatprep.subr.mxu0 0.0
    %1244 = vmatpush1.xpose.msra.mxu0 0.0
    %1245 = vmatprep.subr.mxu0 0.0
    %1246 = vmatpush1.xpose.msra.mxu0 0.0
    %1247 = vmatprep.subr.mxu0 0.0
    %1248 = vmatpush1.xpose.msra.mxu0 0.0
    %1249 = vmatprep.subr.mxu0 0.0
    %1250 = vmatpush1.xpose.msra.mxu0 0.0
    %1251 = vmatprep.subr.mxu0 0.0
    %1252 = vmatpush1.xpose.msra.mxu0 0.0
    %1253 = vmatprep.subr.mxu0 0.0
    %1254 = vmatpush1.xpose.msra.mxu0 0.0
    %1255 = vmatprep.subr.mxu0 0.0
    %1256 = vmatpush1.xpose.msra.mxu0 0.0
    %1257 = vmatprep.subr.mxu0 0.0
    %1258 = vmatpush1.xpose.msra.mxu0 0.0
    %1259 = vmatprep.subr.mxu0 0.0
    %1260 = vmatpush1.xpose.msra.mxu0 0.0
    %1261 = vmatprep.subr.mxu0 0.0
    %1262 = vmatpush1.xpose.msra.mxu0 0.0
    %1263 = vmatprep.subr.mxu0 0.0
    %1264 = vmatpush1.xpose.msra.mxu0 0.0
    %1265 = vmatprep.subr.mxu0 0.0
    %1266 = vmatpush1.xpose.msra.mxu0 0.0
    %1267 = vmatprep.subr.mxu0 0.0
    %1268 = vmatpush1.xpose.msra.mxu0 0.0
    %1269 = vmatprep.subr.mxu0 0.0
    %1270 = vmatpush1.xpose.msra.mxu0 0.0
    %1271 = vmatprep.subr.mxu0 0.0
    %1272 = vmatpush1.xpose.msra.mxu0 0.0
    %1273 = vmatprep.subr.mxu0 0.0
    %1274 = vmatpush1.xpose.msra.mxu0 0.0
    %1275 = vmatprep.subr.mxu0 0.0
    %1276 = vmatpush1.xpose.msra.mxu0 0.0
    %1277 = vmatprep.subr.mxu0 0.0
    %1278 = vmatpush1.xpose.msra.mxu0 0.0
    %1279 = vmatprep.mubr.f32.mxu0 0.0
    %1280 = vmatmul.mubr.f32.gmra.mrb[0].mxu0 %v1210
    %v1281 = vpop.f32.mrb[0].mxu0
    %v1282 = vadd.f32 0.0, %v1281
    %v1283 = vpop.f32.mrb[0].mxu0
    %1284 = vdwg.mxu0
    %v1286 = vsel %vm1132, %v241, 0
    %v1289 = vsel %vm1132, %v541, 0
    %1291 = vmatprep.subr.mxu0 0.0
    %1292 = vmatpush1.xpose.msra.mxu0 %v1289
    %1293 = vmatprep.subr.mxu0 0.0
    %1294 = vmatpush1.xpose.msra.mxu0 0.0
    %1295 = vmatprep.subr.mxu0 0.0
    %1296 = vmatpush1.xpose.msra.mxu0 0.0
    %1297 = vmatprep.subr.mxu0 0.0
    %1298 = vmatpush1.xpose.msra.mxu0 0.0
    %1299 = vmatprep.subr.mxu0 0.0
    %1300 = vmatpush1.xpose.msra.mxu0 0.0
    %1301 = vmatprep.subr.mxu0 0.0
    %1302 = vmatpush1.xpose.msra.mxu0 0.0
    %1303 = vmatprep.subr.mxu0 0.0
    %1304 = vmatpush1.xpose.msra.mxu0 0.0
    %1305 = vmatprep.subr.mxu0 0.0
    %1306 = vmatpush1.xpose.msra.mxu0 0.0
    %1307 = vmatprep.subr.mxu0 0.0
    %1308 = vmatpush1.xpose.msra.mxu0 0.0
    %1309 = vmatprep.subr.mxu0 0.0
    %1310 = vmatpush1.xpose.msra.mxu0 0.0
    %1311 = vmatprep.subr.mxu0 0.0
    %1312 = vmatpush1.xpose.msra.mxu0 0.0
    %1313 = vmatprep.subr.mxu0 0.0
    %1314 = vmatpush1.xpose.msra.mxu0 0.0
    %1315 = vmatprep.subr.mxu0 0.0
    %1316 = vmatpush1.xpose.msra.mxu0 0.0
    %1317 = vmatprep.subr.mxu0 0.0
    %1318 = vmatpush1.xpose.msra.mxu0 0.0
    %1319 = vmatprep.subr.mxu0 0.0
    %1320 = vmatpush1.xpose.msra.mxu0 0.0
    %1321 = vmatprep.subr.mxu0 0.0
    %1322 = vmatpush1.xpose.msra.mxu0 0.0
    %1323 = vmatprep.subr.mxu0 0.0
    %1324 = vmatpush1.xpose.msra.mxu0 0.0
    %1325 = vmatprep.subr.mxu0 0.0
    %1326 = vmatpush1.xpose.msra.mxu0 0.0
    %1327 = vmatprep.subr.mxu0 0.0
    %1328 = vmatpush1.xpose.msra.mxu0 0.0
    %1329 = vmatprep.subr.mxu0 0.0
    %1330 = vmatpush1.xpose.msra.mxu0 0.0
    %1331 = vmatprep.subr.mxu0 0.0
    %1332 = vmatpush1.xpose.msra.mxu0 0.0
    %1333 = vmatprep.subr.mxu0 0.0
    %1334 = vmatpush1.xpose.msra.mxu0 0.0
    %1335 = vmatprep.subr.mxu0 0.0
    %1336 = vmatpush1.xpose.msra.mxu0 0.0
    %1337 = vmatprep.subr.mxu0 0.0
    %1338 = vmatpush1.xpose.msra.mxu0 0.0
    %1339 = vmatprep.subr.mxu0 0.0
    %1340 = vmatpush1.xpose.msra.mxu0 0.0
    %1341 = vmatprep.subr.mxu0 0.0
    %1342 = vmatpush1.xpose.msra.mxu0 0.0
    %1343 = vmatprep.subr.mxu0 0.0
    %1344 = vmatpush1.xpose.msra.mxu0 0.0
    %1345 = vmatprep.subr.mxu0 0.0
    %1346 = vmatpush1.xpose.msra.mxu0 0.0
    %1347 = vmatprep.subr.mxu0 0.0
    %1348 = vmatpush1.xpose.msra.mxu0 0.0
    %1349 = vmatprep.subr.mxu0 0.0
    %1350 = vmatpush1.xpose.msra.mxu0 0.0
    %1351 = vmatprep.subr.mxu0 0.0
    %1352 = vmatpush1.xpose.msra.mxu0 0.0
    %1353 = vmatprep.subr.mxu0 0.0
    %1354 = vmatpush1.xpose.msra.mxu0 0.0
    %1355 = vmatprep.mubr.f32.mxu0 0.0
    %1356 = vmatmul.mubr.f32.gmra.mrb[0].mxu0 %v1286
    %v1357 = vpop.f32.mrb[0].mxu0
    %v1358 = vadd.f32 0.0, %v1357
    %v1359 = vpop.f32.mrb[0].mxu0
    %1360 = vdwg.mxu0
    %v1362 = vsel %vm1132, %v246, 0
    %v1365 = vsel %vm1132, %v546, 0
    %1367 = vmatprep.subr.mxu0 0.0
    %1368 = vmatpush1.xpose.msra.mxu0 %v1365
    %1369 = vmatprep.subr.mxu0 0.0
    %1370 = vmatpush1.xpose.msra.mxu0 0.0
    %1371 = vmatprep.subr.mxu0 0.0
    %1372 = vmatpush1.xpose.msra.mxu0 0.0
    %1373 = vmatprep.subr.mxu0 0.0
    %1374 = vmatpush1.xpose.msra.mxu0 0.0
    %1375 = vmatprep.subr.mxu0 0.0
    %1376 = vmatpush1.xpose.msra.mxu0 0.0
    %1377 = vmatprep.subr.mxu0 0.0
    %1378 = vmatpush1.xpose.msra.mxu0 0.0
    %1379 = vmatprep.subr.mxu0 0.0
    %1380 = vmatpush1.xpose.msra.mxu0 0.0
    %1381 = vmatprep.subr.mxu0 0.0
    %1382 = vmatpush1.xpose.msra.mxu0 0.0
    %1383 = vmatprep.subr.mxu0 0.0
    %1384 = vmatpush1.xpose.msra.mxu0 0.0
    %1385 = vmatprep.subr.mxu0 0.0
    %1386 = vmatpush1.xpose.msra.mxu0 0.0
    %1387 = vmatprep.subr.mxu0 0.0
    %1388 = vmatpush1.xpose.msra.mxu0 0.0
    %1389 = vmatprep.subr.mxu0 0.0
    %1390 = vmatpush1.xpose.msra.mxu0 0.0
    %1391 = vmatprep.subr.mxu0 0.0
    %1392 = vmatpush1.xpose.msra.mxu0 0.0
    %1393 = vmatprep.subr.mxu0 0.0
    %1394 = vmatpush1.xpose.msra.mxu0 0.0
    %1395 = vmatprep.subr.mxu0 0.0
    %1396 = vmatpush1.xpose.msra.mxu0 0.0
    %1397 = vmatprep.subr.mxu0 0.0
    %1398 = vmatpush1.xpose.msra.mxu0 0.0
    %1399 = vmatprep.subr.mxu0 0.0
    %1400 = vmatpush1.xpose.msra.mxu0 0.0
    %1401 = vmatprep.subr.mxu0 0.0
    %1402 = vmatpush1.xpose.msra.mxu0 0.0
    %1403 = vmatprep.subr.mxu0 0.0
    %1404 = vmatpush1.xpose.msra.mxu0 0.0
    %1405 = vmatprep.subr.mxu0 0.0
    %1406 = vmatpush1.xpose.msra.mxu0 0.0
    %1407 = vmatprep.subr.mxu0 0.0
    %1408 = vmatpush1.xpose.msra.mxu0 0.0
    %1409 = vmatprep.subr.mxu0 0.0
    %1410 = vmatpush1.xpose.msra.mxu0 0.0
    %1411 = vmatprep.subr.mxu0 0.0
    %1412 = vmatpush1.xpose.msra.mxu0 0.0
    %1413 = vmatprep.subr.mxu0 0.0
    %1414 = vmatpush1.xpose.msra.mxu0 0.0
    %1415 = vmatprep.subr.mxu0 0.0
    %1416 = vmatpush1.xpose.msra.mxu0 0.0
    %1417 = vmatprep.subr.mxu0 0.0
    %1418 = vmatpush1.xpose.msra.mxu0 0.0
    %1419 = vmatprep.subr.mxu0 0.0
    %1420 = vmatpush1.xpose.msra.mxu0 0.0
    %1421 = vmatprep.subr.mxu0 0.0
    %1422 = vmatpush1.xpose.msra.mxu0 0.0
    %1423 = vmatprep.subr.mxu0 0.0
    %1424 = vmatpush1.xpose.msra.mxu0 0.0
    %1425 = vmatprep.subr.mxu0 0.0
    %1426 = vmatpush1.xpose.msra.mxu0 0.0
    %1427 = vmatprep.subr.mxu0 0.0
    %1428 = vmatpush1.xpose.msra.mxu0 0.0
    %1429 = vmatprep.subr.mxu0 0.0
    %1430 = vmatpush1.xpose.msra.mxu0 0.0
    %1431 = vmatprep.mubr.f32.mxu0 0.0
    %1432 = vmatmul.mubr.f32.gmra.mrb[0].mxu0 %v1362
    %v1433 = vpop.f32.mrb[0].mxu0
    %v1434 = vadd.f32 0.0, %v1433
    %v1435 = vpop.f32.mrb[0].mxu0
    %1436 = vdwg.mxu0
    %v1438 = vsel %vm1132, %v316, 0
    %v1441 = vsel %vm1132, %v616, 0
    %1443 = vmatprep.subr.mxu0 0.0
    %1444 = vmatpush1.xpose.msra.mxu0 %v1441
    %1445 = vmatprep.subr.mxu0 0.0
    %1446 = vmatpush1.xpose.msra.mxu0 0.0
    %1447 = vmatprep.subr.mxu0 0.0
    %1448 = vmatpush1.xpose.msra.mxu0 0.0
    %1449 = vmatprep.subr.mxu0 0.0
    %1450 = vmatpush1.xpose.msra.mxu0 0.0
    %1451 = vmatprep.subr.mxu0 0.0
    %1452 = vmatpush1.xpose.msra.mxu0 0.0
    %1453 = vmatprep.subr.mxu0 0.0
    %1454 = vmatpush1.xpose.msra.mxu0 0.0
    %1455 = vmatprep.subr.mxu0 0.0
    %1456 = vmatpush1.xpose.msra.mxu0 0.0
    %1457 = vmatprep.subr.mxu0 0.0
    %1458 = vmatpush1.xpose.msra.mxu0 0.0
    %1459 = vmatprep.subr.mxu0 0.0
    %1460 = vmatpush1.xpose.msra.mxu0 0.0
    %1461 = vmatprep.subr.mxu0 0.0
    %1462 = vmatpush1.xpose.msra.mxu0 0.0
    %1463 = vmatprep.subr.mxu0 0.0
    %1464 = vmatpush1.xpose.msra.mxu0 0.0
    %1465 = vmatprep.subr.mxu0 0.0
    %1466 = vmatpush1.xpose.msra.mxu0 0.0
    %1467 = vmatprep.subr.mxu0 0.0
    %1468 = vmatpush1.xpose.msra.mxu0 0.0
    %1469 = vmatprep.subr.mxu0 0.0
    %1470 = vmatpush1.xpose.msra.mxu0 0.0
    %1471 = vmatprep.subr.mxu0 0.0
    %1472 = vmatpush1.xpose.msra.mxu0 0.0
    %1473 = vmatprep.subr.mxu0 0.0
    %1474 = vmatpush1.xpose.msra.mxu0 0.0
    %1475 = vmatprep.subr.mxu0 0.0
    %1476 = vmatpush1.xpose.msra.mxu0 0.0
    %1477 = vmatprep.subr.mxu0 0.0
    %1478 = vmatpush1.xpose.msra.mxu0 0.0
    %1479 = vmatprep.subr.mxu0 0.0
    %1480 = vmatpush1.xpose.msra.mxu0 0.0
    %1481 = vmatprep.subr.mxu0 0.0
    %1482 = vmatpush1.xpose.msra.mxu0 0.0
    %1483 = vmatprep.subr.mxu0 0.0
    %1484 = vmatpush1.xpose.msra.mxu0 0.0
    %1485 = vmatprep.subr.mxu0 0.0
    %1486 = vmatpush1.xpose.msra.mxu0 0.0
    %1487 = vmatprep.subr.mxu0 0.0
    %1488 = vmatpush1.xpose.msra.mxu0 0.0
    %1489 = vmatprep.subr.mxu0 0.0
    %1490 = vmatpush1.xpose.msra.mxu0 0.0
    %1491 = vmatprep.subr.mxu0 0.0
    %1492 = vmatpush1.xpose.msra.mxu0 0.0
    %1493 = vmatprep.subr.mxu0 0.0
    %1494 = vmatpush1.xpose.msra.mxu0 0.0
    %1495 = vmatprep.subr.mxu0 0.0
    %1496 = vmatpush1.xpose.msra.mxu0 0.0
    %1497 = vmatprep.subr.mxu0 0.0
    %1498 = vmatpush1.xpose.msra.mxu0 0.0
    %1499 = vmatprep.subr.mxu0 0.0
    %1500 = vmatpush1.xpose.msra.mxu0 0.0
    %1501 = vmatprep.subr.mxu0 0.0
    %1502 = vmatpush1.xpose.msra.mxu0 0.0
    %1503 = vmatprep.subr.mxu0 0.0
    %1504 = vmatpush1.xpose.msra.mxu0 0.0
    %1505 = vmatprep.subr.mxu0 0.0
    %1506 = vmatpush1.xpose.msra.mxu0 0.0
    %1507 = vmatprep.mubr.f32.mxu0 0.0
    %1508 = vmatmul.mubr.f32.gmra.mrb[0].mxu0 %v1438
    %v1509 = vpop.f32.mrb[0].mxu0
    %v1510 = vadd.f32 0.0, %v1509
    %v1511 = vpop.f32.mrb[0].mxu0
    %1512 = vdwg.mxu0
    %v1514 = vsel %vm1132, %v321, 0
    %v1517 = vsel %vm1132, %v621, 0
    %1519 = vmatprep.subr.mxu0 0.0
    %1520 = vmatpush1.xpose.msra.mxu0 %v1517
    %1521 = vmatprep.subr.mxu0 0.0
    %1522 = vmatpush1.xpose.msra.mxu0 0.0
    %1523 = vmatprep.subr.mxu0 0.0
    %1524 = vmatpush1.xpose.msra.mxu0 0.0
    %1525 = vmatprep.subr.mxu0 0.0
    %1526 = vmatpush1.xpose.msra.mxu0 0.0
    %1527 = vmatprep.subr.mxu0 0.0
    %1528 = vmatpush1.xpose.msra.mxu0 0.0
    %1529 = vmatprep.subr.mxu0 0.0
    %1530 = vmatpush1.xpose.msra.mxu0 0.0
    %1531 = vmatprep.subr.mxu0 0.0
    %1532 = vmatpush1.xpose.msra.mxu0 0.0
    %1533 = vmatprep.subr.mxu0 0.0
    %1534 = vmatpush1.xpose.msra.mxu0 0.0
    %1535 = vmatprep.subr.mxu0 0.0
    %1536 = vmatpush1.xpose.msra.mxu0 0.0
    %1537 = vmatprep.subr.mxu0 0.0
    %1538 = vmatpush1.xpose.msra.mxu0 0.0
    %1539 = vmatprep.subr.mxu0 0.0
    %1540 = vmatpush1.xpose.msra.mxu0 0.0
    %1541 = vmatprep.subr.mxu0 0.0
    %1542 = vmatpush1.xpose.msra.mxu0 0.0
    %1543 = vmatprep.subr.mxu0 0.0
    %1544 = vmatpush1.xpose.msra.mxu0 0.0
    %1545 = vmatprep.subr.mxu0 0.0
    %1546 = vmatpush1.xpose.msra.mxu0 0.0
    %1547 = vmatprep.subr.mxu0 0.0
    %1548 = vmatpush1.xpose.msra.mxu0 0.0
    %1549 = vmatprep.subr.mxu0 0.0
    %1550 = vmatpush1.xpose.msra.mxu0 0.0
    %1551 = vmatprep.subr.mxu0 0.0
    %1552 = vmatpush1.xpose.msra.mxu0 0.0
    %1553 = vmatprep.subr.mxu0 0.0
    %1554 = vmatpush1.xpose.msra.mxu0 0.0
    %1555 = vmatprep.subr.mxu0 0.0
    %1556 = vmatpush1.xpose.msra.mxu0 0.0
    %1557 = vmatprep.subr.mxu0 0.0
    %1558 = vmatpush1.xpose.msra.mxu0 0.0
    %1559 = vmatprep.subr.mxu0 0.0
    %1560 = vmatpush1.xpose.msra.mxu0 0.0
    %1561 = vmatprep.subr.mxu0 0.0
    %1562 = vmatpush1.xpose.msra.mxu0 0.0
    %1563 = vmatprep.subr.mxu0 0.0
    %1564 = vmatpush1.xpose.msra.mxu0 0.0
    %1565 = vmatprep.subr.mxu0 0.0
    %1566 = vmatpush1.xpose.msra.mxu0 0.0
    %1567 = vmatprep.subr.mxu0 0.0
    %1568 = vmatpush1.xpose.msra.mxu0 0.0
    %1569 = vmatprep.subr.mxu0 0.0
    %1570 = vmatpush1.xpose.msra.mxu0 0.0
    %1571 = vmatprep.subr.mxu0 0.0
    %1572 = vmatpush1.xpose.msra.mxu0 0.0
    %1573 = vmatprep.subr.mxu0 0.0
    %1574 = vmatpush1.xpose.msra.mxu0 0.0
    %1575 = vmatprep.subr.mxu0 0.0
    %1576 = vmatpush1.xpose.msra.mxu0 0.0
    %1577 = vmatprep.subr.mxu0 0.0
    %1578 = vmatpush1.xpose.msra.mxu0 0.0
    %1579 = vmatprep.subr.mxu0 0.0
    %1580 = vmatpush1.xpose.msra.mxu0 0.0
    %1581 = vmatprep.subr.mxu0 0.0
    %1582 = vmatpush1.xpose.msra.mxu0 0.0
    %1583 = vmatprep.mubr.f32.mxu0 0.0
    %1584 = vmatmul.mubr.f32.gmra.mrb[0].mxu0 %v1514
    %v1585 = vpop.f32.mrb[0].mxu0
    %v1586 = vadd.f32 0.0, %v1585
    %v1587 = vpop.f32.mrb[0].mxu0
    %1588 = vdwg.mxu0
    %v1590 = vsel %vm1132, %v391, 0
    %v1593 = vsel %vm1132, %v691, 0
    %1595 = vmatprep.subr.mxu0 0.0
    %1596 = vmatpush1.xpose.msra.mxu0 %v1593
    %1597 = vmatprep.subr.mxu0 0.0
    %1598 = vmatpush1.xpose.msra.mxu0 0.0
    %1599 = vmatprep.subr.mxu0 0.0
    %1600 = vmatpush1.xpose.msra.mxu0 0.0
    %1601 = vmatprep.subr.mxu0 0.0
    %1602 = vmatpush1.xpose.msra.mxu0 0.0
    %1603 = vmatprep.subr.mxu0 0.0
    %1604 = vmatpush1.xpose.msra.mxu0 0.0
    %1605 = vmatprep.subr.mxu0 0.0
    %1606 = vmatpush1.xpose.msra.mxu0 0.0
    %1607 = vmatprep.subr.mxu0 0.0
    %1608 = vmatpush1.xpose.msra.mxu0 0.0
    %1609 = vmatprep.subr.mxu0 0.0
    %1610 = vmatpush1.xpose.msra.mxu0 0.0
    %1611 = vmatprep.subr.mxu0 0.0
    %1612 = vmatpush1.xpose.msra.mxu0 0.0
    %1613 = vmatprep.subr.mxu0 0.0
    %1614 = vmatpush1.xpose.msra.mxu0 0.0
    %1615 = vmatprep.subr.mxu0 0.0
    %1616 = vmatpush1.xpose.msra.mxu0 0.0
    %1617 = vmatprep.subr.mxu0 0.0
    %1618 = vmatpush1.xpose.msra.mxu0 0.0
    %1619 = vmatprep.subr.mxu0 0.0
    %1620 = vmatpush1.xpose.msra.mxu0 0.0
    %1621 = vmatprep.subr.mxu0 0.0
    %1622 = vmatpush1.xpose.msra.mxu0 0.0
    %1623 = vmatprep.subr.mxu0 0.0
    %1624 = vmatpush1.xpose.msra.mxu0 0.0
    %1625 = vmatprep.subr.mxu0 0.0
    %1626 = vmatpush1.xpose.msra.mxu0 0.0
    %1627 = vmatprep.subr.mxu0 0.0
    %1628 = vmatpush1.xpose.msra.mxu0 0.0
    %1629 = vmatprep.subr.mxu0 0.0
    %1630 = vmatpush1.xpose.msra.mxu0 0.0
    %1631 = vmatprep.subr.mxu0 0.0
    %1632 = vmatpush1.xpose.msra.mxu0 0.0
    %1633 = vmatprep.subr.mxu0 0.0
    %1634 = vmatpush1.xpose.msra.mxu0 0.0
    %1635 = vmatprep.subr.mxu0 0.0
    %1636 = vmatpush1.xpose.msra.mxu0 0.0
    %1637 = vmatprep.subr.mxu0 0.0
    %1638 = vmatpush1.xpose.msra.mxu0 0.0
    %1639 = vmatprep.subr.mxu0 0.0
    %1640 = vmatpush1.xpose.msra.mxu0 0.0
    %1641 = vmatprep.subr.mxu0 0.0
    %1642 = vmatpush1.xpose.msra.mxu0 0.0
    %1643 = vmatprep.subr.mxu0 0.0
    %1644 = vmatpush1.xpose.msra.mxu0 0.0
    %1645 = vmatprep.subr.mxu0 0.0
    %1646 = vmatpush1.xpose.msra.mxu0 0.0
    %1647 = vmatprep.subr.mxu0 0.0
    %1648 = vmatpush1.xpose.msra.mxu0 0.0
    %1649 = vmatprep.subr.mxu0 0.0
    %1650 = vmatpush1.xpose.msra.mxu0 0.0
    %1651 = vmatprep.subr.mxu0 0.0
    %1652 = vmatpush1.xpose.msra.mxu0 0.0
    %1653 = vmatprep.subr.mxu0 0.0
    %1654 = vmatpush1.xpose.msra.mxu0 0.0
    %1655 = vmatprep.subr.mxu0 0.0
    %1656 = vmatpush1.xpose.msra.mxu0 0.0
    %1657 = vmatprep.subr.mxu0 0.0
    %1658 = vmatpush1.xpose.msra.mxu0 0.0
    %1659 = vmatprep.mubr.f32.mxu0 0.0
    %1660 = vmatmul.mubr.f32.gmra.mrb[0].mxu0 %v1590
    %v1661 = vpop.f32.mrb[0].mxu0
    %v1662 = vadd.f32 0.0, %v1661
    %v1663 = vpop.f32.mrb[0].mxu0
    %1664 = vdwg.mxu0
    %v1666 = vsel %vm1132, %v396, 0
    %v1669 = vsel %vm1132, %v696, 0
    %1671 = vmatprep.subr.mxu0 0.0
    %1672 = vmatpush1.xpose.msra.mxu0 %v1669
    %1673 = vmatprep.subr.mxu0 0.0
    %1674 = vmatpush1.xpose.msra.mxu0 0.0
    %1675 = vmatprep.subr.mxu0 0.0
    %1676 = vmatpush1.xpose.msra.mxu0 0.0
    %1677 = vmatprep.subr.mxu0 0.0
    %1678 = vmatpush1.xpose.msra.mxu0 0.0
    %1679 = vmatprep.subr.mxu0 0.0
    %1680 = vmatpush1.xpose.msra.mxu0 0.0
    %1681 = vmatprep.subr.mxu0 0.0
    %1682 = vmatpush1.xpose.msra.mxu0 0.0
    %1683 = vmatprep.subr.mxu0 0.0
    %1684 = vmatpush1.xpose.msra.mxu0 0.0
    %1685 = vmatprep.subr.mxu0 0.0
    %1686 = vmatpush1.xpose.msra.mxu0 0.0
    %1687 = vmatprep.subr.mxu0 0.0
    %1688 = vmatpush1.xpose.msra.mxu0 0.0
    %1689 = vmatprep.subr.mxu0 0.0
    %1690 = vmatpush1.xpose.msra.mxu0 0.0
    %1691 = vmatprep.subr.mxu0 0.0
    %1692 = vmatpush1.xpose.msra.mxu0 0.0
    %1693 = vmatprep.subr.mxu0 0.0
    %1694 = vmatpush1.xpose.msra.mxu0 0.0
    %1695 = vmatprep.subr.mxu0 0.0
    %1696 = vmatpush1.xpose.msra.mxu0 0.0
    %1697 = vmatprep.subr.mxu0 0.0
    %1698 = vmatpush1.xpose.msra.mxu0 0.0
    %1699 = vmatprep.subr.mxu0 0.0
    %1700 = vmatpush1.xpose.msra.mxu0 0.0
    %1701 = vmatprep.subr.mxu0 0.0
    %1702 = vmatpush1.xpose.msra.mxu0 0.0
    %1703 = vmatprep.subr.mxu0 0.0
    %1704 = vmatpush1.xpose.msra.mxu0 0.0
    %1705 = vmatprep.subr.mxu0 0.0
    %1706 = vmatpush1.xpose.msra.mxu0 0.0
    %1707 = vmatprep.subr.mxu0 0.0
    %1708 = vmatpush1.xpose.msra.mxu0 0.0
    %1709 = vmatprep.subr.mxu0 0.0
    %1710 = vmatpush1.xpose.msra.mxu0 0.0
    %1711 = vmatprep.subr.mxu0 0.0
    %1712 = vmatpush1.xpose.msra.mxu0 0.0
    %1713 = vmatprep.subr.mxu0 0.0
    %1714 = vmatpush1.xpose.msra.mxu0 0.0
    %1715 = vmatprep.subr.mxu0 0.0
    %1716 = vmatpush1.xpose.msra.mxu0 0.0
    %1717 = vmatprep.subr.mxu0 0.0
    %1718 = vmatpush1.xpose.msra.mxu0 0.0
    %1719 = vmatprep.subr.mxu0 0.0
    %1720 = vmatpush1.xpose.msra.mxu0 0.0
    %1721 = vmatprep.subr.mxu0 0.0
    %1722 = vmatpush1.xpose.msra.mxu0 0.0
    %1723 = vmatprep.subr.mxu0 0.0
    %1724 = vmatpush1.xpose.msra.mxu0 0.0
    %1725 = vmatprep.subr.mxu0 0.0
    %1726 = vmatpush1.xpose.msra.mxu0 0.0
    %1727 = vmatprep.subr.mxu0 0.0
    %1728 = vmatpush1.xpose.msra.mxu0 0.0
    %1729 = vmatprep.subr.mxu0 0.0
    %1730 = vmatpush1.xpose.msra.mxu0 0.0
    %1731 = vmatprep.subr.mxu0 0.0
    %1732 = vmatpush1.xpose.msra.mxu0 0.0
    %1733 = vmatprep.subr.mxu0 0.0
    %1734 = vmatpush1.xpose.msra.mxu0 0.0
    %1735 = vmatprep.mubr.f32.mxu0 0.0
    %1736 = vmatmul.mubr.f32.gmra.mrb[0].mxu0 %v1666
    %v1737 = vpop.f32.mrb[0].mxu0
    %v1738 = vadd.f32 0.0, %v1737
    %v1739 = vpop.f32.mrb[0].mxu0
    %1740 = vdwg.mxu0
    %v1741 = vmul.f32 %v1206, 0.35355338
    %v1742 = vmul.f32 %v1282, 0.35355338
    %v1743 = vmul.f32 %v1358, 0.35355338
    %v1744 = vmul.f32 %v1434, 0.35355338
    %v1745 = vmul.f32 %v1510, 0.35355338
    %v1746 = vmul.f32 %v1586, 0.35355338
    %v1747 = vmul.f32 %v1662, 0.35355338
    %v1748 = vmul.f32 %v1738, 0.35355338
    %v1749 = vadd.f32 %v1741, %v1124
    %v1750 = vadd.f32 %v1742, %v1125
    %v1751 = vadd.f32 %v1743, %v1126
    %v1752 = vadd.f32 %v1744, %v1127
    %v1753 = vadd.f32 %v1745, %v1128
    %v1754 = vadd.f32 %v1746, %v1129
    %v1755 = vadd.f32 %v1747, %v1130
    %v1756 = vadd.f32 %v1748, %v1131
    %v1757 = vsel %vm1132, %v1749, -inf
    %1758 = vmax.xlane.f32.xlu0 %v1757
    %v1759 = vpop.xlane.xlu0 %1758
    %v1760 = vsel %vm1132, %v1750, -inf
    %1761 = vmax.xlane.f32.xlu0 %v1760
    %v1762 = vpop.xlane.xlu0 %1761
    %v1763 = vsel %vm1132, %v1751, -inf
    %1764 = vmax.xlane.f32.xlu0 %v1763
    %v1765 = vpop.xlane.xlu0 %1764
    %v1766 = vsel %vm1132, %v1752, -inf
    %1767 = vmax.xlane.f32.xlu0 %v1766
    %v1768 = vpop.xlane.xlu0 %1767
    %v1769 = vsel %vm1132, %v1753, -inf
    %1770 = vmax.xlane.f32.xlu0 %v1769
    %v1771 = vpop.xlane.xlu0 %1770
    %v1772 = vsel %vm1132, %v1754, -inf
    %1773 = vmax.xlane.f32.xlu0 %v1772
    %v1774 = vpop.xlane.xlu0 %1773
    %v1775 = vsel %vm1132, %v1755, -inf
    %1776 = vmax.xlane.f32.xlu0 %v1775
    %v1777 = vpop.xlane.xlu0 %1776
    %v1778 = vsel %vm1132, %v1756, -inf
    %1779 = vmax.xlane.f32.xlu0 %v1778
    %v1780 = vpop.xlane.xlu0 %1779
    %v1781 = vsub.f32 %v1749, %v1759
    %v1782 = vsub.f32 %v1750, %v1762
    %v1783 = vsub.f32 %v1751, %v1765
    %v1784 = vsub.f32 %v1752, %v1768
    %v1785 = vsub.f32 %v1753, %v1771
    %v1786 = vsub.f32 %v1754, %v1774
    %v1787 = vsub.f32 %v1755, %v1777
    %v1788 = vsub.f32 %v1756, %v1780
    %v1789 = vmul.f32 %v1781, 1.442695
    %v1790 = vpow.pop %v1789
    %v1791 = vmul.f32 %v1782, 1.442695
    %v1792 = vpow.pop %v1791
    %v1793 = vmul.f32 %v1783, 1.442695
    %v1794 = vpow.pop %v1793
    %v1795 = vmul.f32 %v1784, 1.442695
    %v1796 = vpow.pop %v1795
    %v1797 = vmul.f32 %v1785, 1.442695
    %v1798 = vpow.pop %v1797
    %v1799 = vmul.f32 %v1786, 1.442695
    %v1800 = vpow.pop %v1799
    %v1801 = vmul.f32 %v1787, 1.442695
    %v1802 = vpow.pop %v1801
    %v1803 = vmul.f32 %v1788, 1.442695
    %v1804 = vpow.pop %v1803
    %v1805 = vsel %vm1132, %v1790, 0.0
    %1806 = vadd.xlane.f32.xlu0 %v1805
    %v1807 = vpop.xlane.xlu0 %1806
    %v1808 = vsel %vm1132, %v1792, 0.0
    %1809 = vadd.xlane.f32.xlu0 %v1808
    %v1810 = vpop.xlane.xlu0 %1809
    %v1811 = vsel %vm1132, %v1794, 0.0
    %1812 = vadd.xlane.f32.xlu0 %v1811
    %v1813 = vpop.xlane.xlu0 %1812
    %v1814 = vsel %vm1132, %v1796, 0.0
    %1815 = vadd.xlane.f32.xlu0 %v1814
    %v1816 = vpop.xlane.xlu0 %1815
    %v1817 = vsel %vm1132, %v1798, 0.0
    %1818 = vadd.xlane.f32.xlu0 %v1817
    %v1819 = vpop.xlane.xlu0 %1818
    %v1820 = vsel %vm1132, %v1800, 0.0
    %1821 = vadd.xlane.f32.xlu0 %v1820
    %v1822 = vpop.xlane.xlu0 %1821
    %v1823 = vsel %vm1132, %v1802, 0.0
    %1824 = vadd.xlane.f32.xlu0 %v1823
    %v1825 = vpop.xlane.xlu0 %1824
    %v1826 = vsel %vm1132, %v1804, 0.0
    %1827 = vadd.xlane.f32.xlu0 %v1826
    %v1828 = vpop.xlane.xlu0 %1827
    %v1829 = vrcp.pop %v1807
    %v1830 = vmul.f32 %v1790, %v1829
    %v1831 = vrcp.pop %v1810
    %v1832 = vmul.f32 %v1792, %v1831
    %v1833 = vrcp.pop %v1813
    %v1834 = vmul.f32 %v1794, %v1833
    %v1835 = vrcp.pop %v1816
    %v1836 = vmul.f32 %v1796, %v1835
    %v1837 = vrcp.pop %v1819
    %v1838 = vmul.f32 %v1798, %v1837
    %v1839 = vrcp.pop %v1822
    %v1840 = vmul.f32 %v1800, %v1839
    %v1841 = vrcp.pop %v1825
    %v1842 = vmul.f32 %v1802, %v1841
    %v1843 = vrcp.pop %v1828
    %v1844 = vmul.f32 %v1804, %v1843
    %v1846 = vsel %vm1132, %v1830, 0
    %1848 = vmatprep.subr.mxu0 0.0
    %1849 = vmatpush1.msra.mxu0 %v766
    %1850 = vmatprep.subr.mxu0 0.0
    %1851 = vmatpush1.msra.mxu0 0.0
    %1852 = vmatprep.subr.mxu0 0.0
    %1853 = vmatpush1.msra.mxu0 0.0
    %1854 = vmatprep.subr.mxu0 0.0
    %1855 = vmatpush1.msra.mxu0 0.0
    %1856 = vmatprep.subr.mxu0 0.0
    %1857 = vmatpush1.msra.mxu0 0.0
    %1858 = vmatprep.subr.mxu0 0.0
    %1859 = vmatpush1.msra.mxu0 0.0
    %1860 = vmatprep.subr.mxu0 0.0
    %1861 = vmatpush1.msra.mxu0 0.0
    %1862 = vmatprep.subr.mxu0 0.0
    %1863 = vmatpush1.msra.mxu0 0.0
    %1864 = vmatprep.subr.mxu0 0.0
    %1865 = vmatpush1.msra.mxu0 0.0
    %1866 = vmatprep.subr.mxu0 0.0
    %1867 = vmatpush1.msra.mxu0 0.0
    %1868 = vmatprep.subr.mxu0 0.0
    %1869 = vmatpush1.msra.mxu0 0.0
    %1870 = vmatprep.subr.mxu0 0.0
    %1871 = vmatpush1.msra.mxu0 0.0
    %1872 = vmatprep.subr.mxu0 0.0
    %1873 = vmatpush1.msra.mxu0 0.0
    %1874 = vmatprep.subr.mxu0 0.0
    %1875 = vmatpush1.msra.mxu0 0.0
    %1876 = vmatprep.subr.mxu0 0.0
    %1877 = vmatpush1.msra.mxu0 0.0
    %1878 = vmatprep.subr.mxu0 0.0
    %1879 = vmatpush1.msra.mxu0 0.0
    %1880 = vmatprep.subr.mxu0 0.0
    %1881 = vmatpush1.msra.mxu0 0.0
    %1882 = vmatprep.subr.mxu0 0.0
    %1883 = vmatpush1.msra.mxu0 0.0
    %1884 = vmatprep.subr.mxu0 0.0
    %1885 = vmatpush1.msra.mxu0 0.0
    %1886 = vmatprep.subr.mxu0 0.0
    %1887 = vmatpush1.msra.mxu0 0.0
    %1888 = vmatprep.subr.mxu0 0.0
    %1889 = vmatpush1.msra.mxu0 0.0
    %1890 = vmatprep.subr.mxu0 0.0
    %1891 = vmatpush1.msra.mxu0 0.0
    %1892 = vmatprep.subr.mxu0 0.0
    %1893 = vmatpush1.msra.mxu0 0.0
    %1894 = vmatprep.subr.mxu0 0.0
    %1895 = vmatpush1.msra.mxu0 0.0
    %1896 = vmatprep.subr.mxu0 0.0
    %1897 = vmatpush1.msra.mxu0 0.0
    %1898 = vmatprep.subr.mxu0 0.0
    %1899 = vmatpush1.msra.mxu0 0.0
    %1900 = vmatprep.subr.mxu0 0.0
    %1901 = vmatpush1.msra.mxu0 0.0
    %1902 = vmatprep.subr.mxu0 0.0
    %1903 = vmatpush1.msra.mxu0 0.0
    %1904 = vmatprep.subr.mxu0 0.0
    %1905 = vmatpush1.msra.mxu0 0.0
    %1906 = vmatprep.subr.mxu0 0.0
    %1907 = vmatpush1.msra.mxu0 0.0
    %1908 = vmatprep.subr.mxu0 0.0
    %1909 = vmatpush1.msra.mxu0 0.0
    %1910 = vmatprep.subr.mxu0 0.0
    %1911 = vmatpush1.msra.mxu0 0.0
    %1912 = vmatprep.mubr.f32.mxu0 0.0
    %1913 = vmatmul.mubr.f32.gmra.mrb[0].mxu0 %v1846
    %v1914 = vpop.f32.mrb[0].mxu0
    %v1915 = vadd.f32 0.0, %v1914
    %v1916 = vpop.f32.mrb[0].mxu0
    %1917 = vdwg.mxu0
    %v1919 = vsel %vm1132, %v1832, 0
    %1921 = vmatprep.subr.mxu0 0.0
    %1922 = vmatpush1.msra.mxu0 %v771
    %1923 = vmatprep.subr.mxu0 0.0
    %1924 = vmatpush1.msra.mxu0 0.0
    %1925 = vmatprep.subr.mxu0 0.0
    %1926 = vmatpush1.msra.mxu0 0.0
    %1927 = vmatprep.subr.mxu0 0.0
    %1928 = vmatpush1.msra.mxu0 0.0
    %1929 = vmatprep.subr.mxu0 0.0
    %1930 = vmatpush1.msra.mxu0 0.0
    %1931 = vmatprep.subr.mxu0 0.0
    %1932 = vmatpush1.msra.mxu0 0.0
    %1933 = vmatprep.subr.mxu0 0.0
    %1934 = vmatpush1.msra.mxu0 0.0
    %1935 = vmatprep.subr.mxu0 0.0
    %1936 = vmatpush1.msra.mxu0 0.0
    %1937 = vmatprep.subr.mxu0 0.0
    %1938 = vmatpush1.msra.mxu0 0.0
    %1939 = vmatprep.subr.mxu0 0.0
    %1940 = vmatpush1.msra.mxu0 0.0
    %1941 = vmatprep.subr.mxu0 0.0
    %1942 = vmatpush1.msra.mxu0 0.0
    %1943 = vmatprep.subr.mxu0 0.0
    %1944 = vmatpush1.msra.mxu0 0.0
    %1945 = vmatprep.subr.mxu0 0.0
    %1946 = vmatpush1.msra.mxu0 0.0
    %1947 = vmatprep.subr.mxu0 0.0
    %1948 = vmatpush1.msra.mxu0 0.0
    %1949 = vmatprep.subr.mxu0 0.0
    %1950 = vmatpush1.msra.mxu0 0.0
    %1951 = vmatprep.subr.mxu0 0.0
    %1952 = vmatpush1.msra.mxu0 0.0
    %1953 = vmatprep.subr.mxu0 0.0
    %1954 = vmatpush1.msra.mxu0 0.0
    %1955 = vmatprep.subr.mxu0 0.0
    %1956 = vmatpush1.msra.mxu0 0.0
    %1957 = vmatprep.subr.mxu0 0.0
    %1958 = vmatpush1.msra.mxu0 0.0
    %1959 = vmatprep.subr.mxu0 0.0
    %1960 = vmatpush1.msra.mxu0 0.0
    %1961 = vmatprep.subr.mxu0 0.0
    %1962 = vmatpush1.msra.mxu0 0.0
    %1963 = vmatprep.subr.mxu0 0.0
    %1964 = vmatpush1.msra.mxu0 0.0
    %1965 = vmatprep.subr.mxu0 0.0
    %1966 = vmatpush1.msra.mxu0 0.0
    %1967 = vmatprep.subr.mxu0 0.0
    %1968 = vmatpush1.msra.mxu0 0.0
    %1969 = vmatprep.subr.mxu0 0.0
    %1970 = vmatpush1.msra.mxu0 0.0
    %1971 = vmatprep.subr.mxu0 0.0
    %1972 = vmatpush1.msra.mxu0 0.0
    %1973 = vmatprep.subr.mxu0 0.0
    %1974 = vmatpush1.msra.mxu0 0.0
    %1975 = vmatprep.subr.mxu0 0.0
    %1976 = vmatpush1.msra.mxu0 0.0
    %1977 = vmatprep.subr.mxu0 0.0
    %1978 = vmatpush1.msra.mxu0 0.0
    %1979 = vmatprep.subr.mxu0 0.0
    %1980 = vmatpush1.msra.mxu0 0.0
    %1981 = vmatprep.subr.mxu0 0.0
    %1982 = vmatpush1.msra.mxu0 0.0
    %1983 = vmatprep.subr.mxu0 0.0
    %1984 = vmatpush1.msra.mxu0 0.0
    %1985 = vmatprep.mubr.f32.mxu0 0.0
    %1986 = vmatmul.mubr.f32.gmra.mrb[0].mxu0 %v1919
    %v1987 = vpop.f32.mrb[0].mxu0
    %v1988 = vadd.f32 0.0, %v1987
    %v1989 = vpop.f32.mrb[0].mxu0
    %1990 = vdwg.mxu0
    %v1992 = vsel %vm1132, %v1834, 0
    %1994 = vmatprep.subr.mxu0 0.0
    %1995 = vmatpush1.msra.mxu0 %v841
    %1996 = vmatprep.subr.mxu0 0.0
    %1997 = vmatpush1.msra.mxu0 0.0
    %1998 = vmatprep.subr.mxu0 0.0
    %1999 = vmatpush1.msra.mxu0 0.0
    %2000 = vmatprep.subr.mxu0 0.0
    %2001 = vmatpush1.msra.mxu0 0.0
    %2002 = vmatprep.subr.mxu0 0.0
    %2003 = vmatpush1.msra.mxu0 0.0
    %2004 = vmatprep.subr.mxu0 0.0
    %2005 = vmatpush1.msra.mxu0 0.0
    %2006 = vmatprep.subr.mxu0 0.0
    %2007 = vmatpush1.msra.mxu0 0.0
    %2008 = vmatprep.subr.mxu0 0.0
    %2009 = vmatpush1.msra.mxu0 0.0
    %2010 = vmatprep.subr.mxu0 0.0
    %2011 = vmatpush1.msra.mxu0 0.0
    %2012 = vmatprep.subr.mxu0 0.0
    %2013 = vmatpush1.msra.mxu0 0.0
    %2014 = vmatprep.subr.mxu0 0.0
    %2015 = vmatpush1.msra.mxu0 0.0
    %2016 = vmatprep.subr.mxu0 0.0
    %2017 = vmatpush1.msra.mxu0 0.0
    %2018 = vmatprep.subr.mxu0 0.0
    %2019 = vmatpush1.msra.mxu0 0.0
    %2020 = vmatprep.subr.mxu0 0.0
    %2021 = vmatpush1.msra.mxu0 0.0
    %2022 = vmatprep.subr.mxu0 0.0
    %2023 = vmatpush1.msra.mxu0 0.0
    %2024 = vmatprep.subr.mxu0 0.0
    %2025 = vmatpush1.msra.mxu0 0.0
    %2026 = vmatprep.subr.mxu0 0.0
    %2027 = vmatpush1.msra.mxu0 0.0
    %2028 = vmatprep.subr.mxu0 0.0
    %2029 = vmatpush1.msra.mxu0 0.0
    %2030 = vmatprep.subr.mxu0 0.0
    %2031 = vmatpush1.msra.mxu0 0.0
    %2032 = vmatprep.subr.mxu0 0.0
    %2033 = vmatpush1.msra.mxu0 0.0
    %2034 = vmatprep.subr.mxu0 0.0
    %2035 = vmatpush1.msra.mxu0 0.0
    %2036 = vmatprep.subr.mxu0 0.0
    %2037 = vmatpush1.msra.mxu0 0.0
    %2038 = vmatprep.subr.mxu0 0.0
    %2039 = vmatpush1.msra.mxu0 0.0
    %2040 = vmatprep.subr.mxu0 0.0
    %2041 = vmatpush1.msra.mxu0 0.0
    %2042 = vmatprep.subr.mxu0 0.0
    %2043 = vmatpush1.msra.mxu0 0.0
    %2044 = vmatprep.subr.mxu0 0.0
    %2045 = vmatpush1.msra.mxu0 0.0
    %2046 = vmatprep.subr.mxu0 0.0
    %2047 = vmatpush1.msra.mxu0 0.0
    %2048 = vmatprep.subr.mxu0 0.0
    %2049 = vmatpush1.msra.mxu0 0.0
    %2050 = vmatprep.subr.mxu0 0.0
    %2051 = vmatpush1.msra.mxu0 0.0
    %2052 = vmatprep.subr.mxu0 0.0
    %2053 = vmatpush1.msra.mxu0 0.0
    %2054 = vmatprep.subr.mxu0 0.0
    %2055 = vmatpush1.msra.mxu0 0.0
    %2056 = vmatprep.subr.mxu0 0.0
    %2057 = vmatpush1.msra.mxu0 0.0
    %2058 = vmatprep.mubr.f32.mxu0 0.0
    %2059 = vmatmul.mubr.f32.gmra.mrb[0].mxu0 %v1992
    %v2060 = vpop.f32.mrb[0].mxu0
    %v2061 = vadd.f32 0.0, %v2060
    %v2062 = vpop.f32.mrb[0].mxu0
    %2063 = vdwg.mxu0
    %v2065 = vsel %vm1132, %v1836, 0
    %2067 = vmatprep.subr.mxu0 0.0
    %2068 = vmatpush1.msra.mxu0 %v846
    %2069 = vmatprep.subr.mxu0 0.0
    %2070 = vmatpush1.msra.mxu0 0.0
    %2071 = vmatprep.subr.mxu0 0.0
    %2072 = vmatpush1.msra.mxu0 0.0
    %2073 = vmatprep.subr.mxu0 0.0
    %2074 = vmatpush1.msra.mxu0 0.0
    %2075 = vmatprep.subr.mxu0 0.0
    %2076 = vmatpush1.msra.mxu0 0.0
    %2077 = vmatprep.subr.mxu0 0.0
    %2078 = vmatpush1.msra.mxu0 0.0
    %2079 = vmatprep.subr.mxu0 0.0
    %2080 = vmatpush1.msra.mxu0 0.0
    %2081 = vmatprep.subr.mxu0 0.0
    %2082 = vmatpush1.msra.mxu0 0.0
    %2083 = vmatprep.subr.mxu0 0.0
    %2084 = vmatpush1.msra.mxu0 0.0
    %2085 = vmatprep.subr.mxu0 0.0
    %2086 = vmatpush1.msra.mxu0 0.0
    %2087 = vmatprep.subr.mxu0 0.0
    %2088 = vmatpush1.msra.mxu0 0.0
    %2089 = vmatprep.subr.mxu0 0.0
    %2090 = vmatpush1.msra.mxu0 0.0
    %2091 = vmatprep.subr.mxu0 0.0
    %2092 = vmatpush1.msra.mxu0 0.0
    %2093 = vmatprep.subr.mxu0 0.0
    %2094 = vmatpush1.msra.mxu0 0.0
    %2095 = vmatprep.subr.mxu0 0.0
    %2096 = vmatpush1.msra.mxu0 0.0
    %2097 = vmatprep.subr.mxu0 0.0
    %2098 = vmatpush1.msra.mxu0 0.0
    %2099 = vmatprep.subr.mxu0 0.0
    %2100 = vmatpush1.msra.mxu0 0.0
    %2101 = vmatprep.subr.mxu0 0.0
    %2102 = vmatpush1.msra.mxu0 0.0
    %2103 = vmatprep.subr.mxu0 0.0
    %2104 = vmatpush1.msra.mxu0 0.0
    %2105 = vmatprep.subr.mxu0 0.0
    %2106 = vmatpush1.msra.mxu0 0.0
    %2107 = vmatprep.subr.mxu0 0.0
    %2108 = vmatpush1.msra.mxu0 0.0
    %2109 = vmatprep.subr.mxu0 0.0
    %2110 = vmatpush1.msra.mxu0 0.0
    %2111 = vmatprep.subr.mxu0 0.0
    %2112 = vmatpush1.msra.mxu0 0.0
    %2113 = vmatprep.subr.mxu0 0.0
    %2114 = vmatpush1.msra.mxu0 0.0
    %2115 = vmatprep.subr.mxu0 0.0
    %2116 = vmatpush1.msra.mxu0 0.0
    %2117 = vmatprep.subr.mxu0 0.0
    %2118 = vmatpush1.msra.mxu0 0.0
    %2119 = vmatprep.subr.mxu0 0.0
    %2120 = vmatpush1.msra.mxu0 0.0
    %2121 = vmatprep.subr.mxu0 0.0
    %2122 = vmatpush1.msra.mxu0 0.0
    %2123 = vmatprep.subr.mxu0 0.0
    %2124 = vmatpush1.msra.mxu0 0.0
    %2125 = vmatprep.subr.mxu0 0.0
    %2126 = vmatpush1.msra.mxu0 0.0
    %2127 = vmatprep.subr.mxu0 0.0
    %2128 = vmatpush1.msra.mxu0 0.0
    %2129 = vmatprep.subr.mxu0 0.0
    %2130 = vmatpush1.msra.mxu0 0.0
    %2131 = vmatprep.mubr.f32.mxu0 0.0
    %2132 = vmatmul.mubr.f32.gmra.mrb[0].mxu0 %v2065
    %v2133 = vpop.f32.mrb[0].mxu0
    %v2134 = vadd.f32 0.0, %v2133
    %v2135 = vpop.f32.mrb[0].mxu0
    %2136 = vdwg.mxu0
    %v2138 = vsel %vm1132, %v1838, 0
    %2140 = vmatprep.subr.mxu0 0.0
    %2141 = vmatpush1.msra.mxu0 %v916
    %2142 = vmatprep.subr.mxu0 0.0
    %2143 = vmatpush1.msra.mxu0 0.0
    %2144 = vmatprep.subr.mxu0 0.0
    %2145 = vmatpush1.msra.mxu0 0.0
    %2146 = vmatprep.subr.mxu0 0.0
    %2147 = vmatpush1.msra.mxu0 0.0
    %2148 = vmatprep.subr.mxu0 0.0
    %2149 = vmatpush1.msra.mxu0 0.0
    %2150 = vmatprep.subr.mxu0 0.0
    %2151 = vmatpush1.msra.mxu0 0.0
    %2152 = vmatprep.subr.mxu0 0.0
    %2153 = vmatpush1.msra.mxu0 0.0
    %2154 = vmatprep.subr.mxu0 0.0
    %2155 = vmatpush1.msra.mxu0 0.0
    %2156 = vmatprep.subr.mxu0 0.0
    %2157 = vmatpush1.msra.mxu0 0.0
    %2158 = vmatprep.subr.mxu0 0.0
    %2159 = vmatpush1.msra.mxu0 0.0
    %2160 = vmatprep.subr.mxu0 0.0
    %2161 = vmatpush1.msra.mxu0 0.0
    %2162 = vmatprep.subr.mxu0 0.0
    %2163 = vmatpush1.msra.mxu0 0.0
    %2164 = vmatprep.subr.mxu0 0.0
    %2165 = vmatpush1.msra.mxu0 0.0
    %2166 = vmatprep.subr.mxu0 0.0
    %2167 = vmatpush1.msra.mxu0 0.0
    %2168 = vmatprep.subr.mxu0 0.0
    %2169 = vmatpush1.msra.mxu0 0.0
    %2170 = vmatprep.subr.mxu0 0.0
    %2171 = vmatpush1.msra.mxu0 0.0
    %2172 = vmatprep.subr.mxu0 0.0
    %2173 = vmatpush1.msra.mxu0 0.0
    %2174 = vmatprep.subr.mxu0 0.0
    %2175 = vmatpush1.msra.mxu0 0.0
    %2176 = vmatprep.subr.mxu0 0.0
    %2177 = vmatpush1.msra.mxu0 0.0
    %2178 = vmatprep.subr.mxu0 0.0
    %2179 = vmatpush1.msra.mxu0 0.0
    %2180 = vmatprep.subr.mxu0 0.0
    %2181 = vmatpush1.msra.mxu0 0.0
    %2182 = vmatprep.subr.mxu0 0.0
    %2183 = vmatpush1.msra.mxu0 0.0
    %2184 = vmatprep.subr.mxu0 0.0
    %2185 = vmatpush1.msra.mxu0 0.0
    %2186 = vmatprep.subr.mxu0 0.0
    %2187 = vmatpush1.msra.mxu0 0.0
    %2188 = vmatprep.subr.mxu0 0.0
    %2189 = vmatpush1.msra.mxu0 0.0
    %2190 = vmatprep.subr.mxu0 0.0
    %2191 = vmatpush1.msra.mxu0 0.0
    %2192 = vmatprep.subr.mxu0 0.0
    %2193 = vmatpush1.msra.mxu0 0.0
    %2194 = vmatprep.subr.mxu0 0.0
    %2195 = vmatpush1.msra.mxu0 0.0
    %2196 = vmatprep.subr.mxu0 0.0
    %2197 = vmatpush1.msra.mxu0 0.0
    %2198 = vmatprep.subr.mxu0 0.0
    %2199 = vmatpush1.msra.mxu0 0.0
    %2200 = vmatprep.subr.mxu0 0.0
    %2201 = vmatpush1.msra.mxu0 0.0
    %2202 = vmatprep.subr.mxu0 0.0
    %2203 = vmatpush1.msra.mxu0 0.0
    %2204 = vmatprep.mubr.f32.mxu0 0.0
    %2205 = vmatmul.mubr.f32.gmra.mrb[0].mxu0 %v2138
    %v2206 = vpop.f32.mrb[0].mxu0
    %v2207 = vadd.f32 0.0, %v2206
    %v2208 = vpop.f32.mrb[0].mxu0
    %2209 = vdwg.mxu0
    %v2211 = vsel %vm1132, %v1840, 0
    %2213 = vmatprep.subr.mxu0 0.0
    %2214 = vmatpush1.msra.mxu0 %v921
    %2215 = vmatprep.subr.mxu0 0.0
    %2216 = vmatpush1.msra.mxu0 0.0
    %2217 = vmatprep.subr.mxu0 0.0
    %2218 = vmatpush1.msra.mxu0 0.0
    %2219 = vmatprep.subr.mxu0 0.0
    %2220 = vmatpush1.msra.mxu0 0.0
    %2221 = vmatprep.subr.mxu0 0.0
    %2222 = vmatpush1.msra.mxu0 0.0
    %2223 = vmatprep.subr.mxu0 0.0
    %2224 = vmatpush1.msra.mxu0 0.0
    %2225 = vmatprep.subr.mxu0 0.0
    %2226 = vmatpush1.msra.mxu0 0.0
    %2227 = vmatprep.subr.mxu0 0.0
    %2228 = vmatpush1.msra.mxu0 0.0
    %2229 = vmatprep.subr.mxu0 0.0
    %2230 = vmatpush1.msra.mxu0 0.0
    %2231 = vmatprep.subr.mxu0 0.0
    %2232 = vmatpush1.msra.mxu0 0.0
    %2233 = vmatprep.subr.mxu0 0.0
    %2234 = vmatpush1.msra.mxu0 0.0
    %2235 = vmatprep.subr.mxu0 0.0
    %2236 = vmatpush1.msra.mxu0 0.0
    %2237 = vmatprep.subr.mxu0 0.0
    %2238 = vmatpush1.msra.mxu0 0.0
    %2239 = vmatprep.subr.mxu0 0.0
    %2240 = vmatpush1.msra.mxu0 0.0
    %2241 = vmatprep.subr.mxu0 0.0
    %2242 = vmatpush1.msra.mxu0 0.0
    %2243 = vmatprep.subr.mxu0 0.0
    %2244 = vmatpush1.msra.mxu0 0.0
    %2245 = vmatprep.subr.mxu0 0.0
    %2246 = vmatpush1.msra.mxu0 0.0
    %2247 = vmatprep.subr.mxu0 0.0
    %2248 = vmatpush1.msra.mxu0 0.0
    %2249 = vmatprep.subr.mxu0 0.0
    %2250 = vmatpush1.msra.mxu0 0.0
    %2251 = vmatprep.subr.mxu0 0.0
    %2252 = vmatpush1.msra.mxu0 0.0
    %2253 = vmatprep.subr.mxu0 0.0
    %2254 = vmatpush1.msra.mxu0 0.0
    %2255 = vmatprep.subr.mxu0 0.0
    %2256 = vmatpush1.msra.mxu0 0.0
    %2257 = vmatprep.subr.mxu0 0.0
    %2258 = vmatpush1.msra.mxu0 0.0
    %2259 = vmatprep.subr.mxu0 0.0
    %2260 = vmatpush1.msra.mxu0 0.0
    %2261 = vmatprep.subr.mxu0 0.0
    %2262 = vmatpush1.msra.mxu0 0.0
    %2263 = vmatprep.subr.mxu0 0.0
    %2264 = vmatpush1.msra.mxu0 0.0
    %2265 = vmatprep.subr.mxu0 0.0
    %2266 = vmatpush1.msra.mxu0 0.0
    %2267 = vmatprep.subr.mxu0 0.0
    %2268 = vmatpush1.msra.mxu0 0.0
    %2269 = vmatprep.subr.mxu0 0.0
    %2270 = vmatpush1.msra.mxu0 0.0
    %2271 = vmatprep.subr.mxu0 0.0
    %2272 = vmatpush1.msra.mxu0 0.0
    %2273 = vmatprep.subr.mxu0 0.0
    %2274 = vmatpush1.msra.mxu0 0.0
    %2275 = vmatprep.subr.mxu0 0.0
    %2276 = vmatpush1.msra.mxu0 0.0
    %2277 = vmatprep.mubr.f32.mxu0 0.0
    %2278 = vmatmul.mubr.f32.gmra.mrb[0].mxu0 %v2211
    %v2279 = vpop.f32.mrb[0].mxu0
    %v2280 = vadd.f32 0.0, %v2279
    %v2281 = vpop.f32.mrb[0].mxu0
    %2282 = vdwg.mxu0
    %v2284 = vsel %vm1132, %v1842, 0
    %2286 = vmatprep.subr.mxu0 0.0
    %2287 = vmatpush1.msra.mxu0 %v991
    %2288 = vmatprep.subr.mxu0 0.0
    %2289 = vmatpush1.msra.mxu0 0.0
    %2290 = vmatprep.subr.mxu0 0.0
    %2291 = vmatpush1.msra.mxu0 0.0
    %2292 = vmatprep.subr.mxu0 0.0
    %2293 = vmatpush1.msra.mxu0 0.0
    %2294 = vmatprep.subr.mxu0 0.0
    %2295 = vmatpush1.msra.mxu0 0.0
    %2296 = vmatprep.subr.mxu0 0.0
    %2297 = vmatpush1.msra.mxu0 0.0
    %2298 = vmatprep.subr.mxu0 0.0
    %2299 = vmatpush1.msra.mxu0 0.0
    %2300 = vmatprep.subr.mxu0 0.0
    %2301 = vmatpush1.msra.mxu0 0.0
    %2302 = vmatprep.subr.mxu0 0.0
    %2303 = vmatpush1.msra.mxu0 0.0
    %2304 = vmatprep.subr.mxu0 0.0
    %2305 = vmatpush1.msra.mxu0 0.0
    %2306 = vmatprep.subr.mxu0 0.0
    %2307 = vmatpush1.msra.mxu0 0.0
    %2308 = vmatprep.subr.mxu0 0.0
    %2309 = vmatpush1.msra.mxu0 0.0
    %2310 = vmatprep.subr.mxu0 0.0
    %2311 = vmatpush1.msra.mxu0 0.0
    %2312 = vmatprep.subr.mxu0 0.0
    %2313 = vmatpush1.msra.mxu0 0.0
    %2314 = vmatprep.subr.mxu0 0.0
    %2315 = vmatpush1.msra.mxu0 0.0
    %2316 = vmatprep.subr.mxu0 0.0
    %2317 = vmatpush1.msra.mxu0 0.0
    %2318 = vmatprep.subr.mxu0 0.0
    %2319 = vmatpush1.msra.mxu0 0.0
    %2320 = vmatprep.subr.mxu0 0.0
    %2321 = vmatpush1.msra.mxu0 0.0
    %2322 = vmatprep.subr.mxu0 0.0
    %2323 = vmatpush1.msra.mxu0 0.0
    %2324 = vmatprep.subr.mxu0 0.0
    %2325 = vmatpush1.msra.mxu0 0.0
    %2326 = vmatprep.subr.mxu0 0.0
    %2327 = vmatpush1.msra.mxu0 0.0
    %2328 = vmatprep.subr.mxu0 0.0
    %2329 = vmatpush1.msra.mxu0 0.0
    %2330 = vmatprep.subr.mxu0 0.0
    %2331 = vmatpush1.msra.mxu0 0.0
    %2332 = vmatprep.subr.mxu0 0.0
    %2333 = vmatpush1.msra.mxu0 0.0
    %2334 = vmatprep.subr.mxu0 0.0
    %2335 = vmatpush1.msra.mxu0 0.0
    %2336 = vmatprep.subr.mxu0 0.0
    %2337 = vmatpush1.msra.mxu0 0.0
    %2338 = vmatprep.subr.mxu0 0.0
    %2339 = vmatpush1.msra.mxu0 0.0
    %2340 = vmatprep.subr.mxu0 0.0
    %2341 = vmatpush1.msra.mxu0 0.0
    %2342 = vmatprep.subr.mxu0 0.0
    %2343 = vmatpush1.msra.mxu0 0.0
    %2344 = vmatprep.subr.mxu0 0.0
    %2345 = vmatpush1.msra.mxu0 0.0
    %2346 = vmatprep.subr.mxu0 0.0
    %2347 = vmatpush1.msra.mxu0 0.0
    %2348 = vmatprep.subr.mxu0 0.0
    %2349 = vmatpush1.msra.mxu0 0.0
    %2350 = vmatprep.mubr.f32.mxu0 0.0
    %2351 = vmatmul.mubr.f32.gmra.mrb[0].mxu0 %v2284
    %v2352 = vpop.f32.mrb[0].mxu0
    %v2353 = vadd.f32 0.0, %v2352
    %v2354 = vpop.f32.mrb[0].mxu0
    %2355 = vdwg.mxu0
    %v2357 = vsel %vm1132, %v1844, 0
    %2359 = vmatprep.subr.mxu0 0.0
    %2360 = vmatpush1.msra.mxu0 %v996
    %2361 = vmatprep.subr.mxu0 0.0
    %2362 = vmatpush1.msra.mxu0 0.0
    %2363 = vmatprep.subr.mxu0 0.0
    %2364 = vmatpush1.msra.mxu0 0.0
    %2365 = vmatprep.subr.mxu0 0.0
    %2366 = vmatpush1.msra.mxu0 0.0
    %2367 = vmatprep.subr.mxu0 0.0
    %2368 = vmatpush1.msra.mxu0 0.0
    %2369 = vmatprep.subr.mxu0 0.0
    %2370 = vmatpush1.msra.mxu0 0.0
    %2371 = vmatprep.subr.mxu0 0.0
    %2372 = vmatpush1.msra.mxu0 0.0
    %2373 = vmatprep.subr.mxu0 0.0
    %2374 = vmatpush1.msra.mxu0 0.0
    %2375 = vmatprep.subr.mxu0 0.0
    %2376 = vmatpush1.msra.mxu0 0.0
    %2377 = vmatprep.subr.mxu0 0.0
    %2378 = vmatpush1.msra.mxu0 0.0
    %2379 = vmatprep.subr.mxu0 0.0
    %2380 = vmatpush1.msra.mxu0 0.0
    %2381 = vmatprep.subr.mxu0 0.0
    %2382 = vmatpush1.msra.mxu0 0.0
    %2383 = vmatprep.subr.mxu0 0.0
    %2384 = vmatpush1.msra.mxu0 0.0
    %2385 = vmatprep.subr.mxu0 0.0
    %2386 = vmatpush1.msra.mxu0 0.0
    %2387 = vmatprep.subr.mxu0 0.0
    %2388 = vmatpush1.msra.mxu0 0.0
    %2389 = vmatprep.subr.mxu0 0.0
    %2390 = vmatpush1.msra.mxu0 0.0
    %2391 = vmatprep.subr.mxu0 0.0
    %2392 = vmatpush1.msra.mxu0 0.0
    %2393 = vmatprep.subr.mxu0 0.0
    %2394 = vmatpush1.msra.mxu0 0.0
    %2395 = vmatprep.subr.mxu0 0.0
    %2396 = vmatpush1.msra.mxu0 0.0
    %2397 = vmatprep.subr.mxu0 0.0
    %2398 = vmatpush1.msra.mxu0 0.0
    %2399 = vmatprep.subr.mxu0 0.0
    %2400 = vmatpush1.msra.mxu0 0.0
    %2401 = vmatprep.subr.mxu0 0.0
    %2402 = vmatpush1.msra.mxu0 0.0
    %2403 = vmatprep.subr.mxu0 0.0
    %2404 = vmatpush1.msra.mxu0 0.0
    %2405 = vmatprep.subr.mxu0 0.0
    %2406 = vmatpush1.msra.mxu0 0.0
    %2407 = vmatprep.subr.mxu0 0.0
    %2408 = vmatpush1.msra.mxu0 0.0
    %2409 = vmatprep.subr.mxu0 0.0
    %2410 = vmatpush1.msra.mxu0 0.0
    %2411 = vmatprep.subr.mxu0 0.0
    %2412 = vmatpush1.msra.mxu0 0.0
    %2413 = vmatprep.subr.mxu0 0.0
    %2414 = vmatpush1.msra.mxu0 0.0
    %2415 = vmatprep.subr.mxu0 0.0
    %2416 = vmatpush1.msra.mxu0 0.0
    %2417 = vmatprep.subr.mxu0 0.0
    %2418 = vmatpush1.msra.mxu0 0.0
    %2419 = vmatprep.subr.mxu0 0.0
    %2420 = vmatpush1.msra.mxu0 0.0
    %2421 = vmatprep.subr.mxu0 0.0
    %2422 = vmatpush1.msra.mxu0 0.0
    %2423 = vmatprep.mubr.f32.mxu0 0.0
    %2424 = vmatmul.mubr.f32.gmra.mrb[0].mxu0 %v2357
    %v2425 = vpop.f32.mrb[0].mxu0
    %v2426 = vadd.f32 0.0, %v2425
    %v2427 = vpop.f32.mrb[0].mxu0
    %2428 = vdwg.mxu0
    %v2429 = vld [vmem:[%s3] sm:$0xff]
    %v2430 = vld [vmem:[%s3 + $0x8] sm:$0xff]
    %v2431 = vld [vmem:[%s3 + $0x10] sm:$0xff]
    %v2432 = vld [vmem:[%s3 + $0x18] sm:$0xff]
    %v2434 = vsel %vm1132, %v1915, 0
    %v2437 = vsel %vm1132, %v1988, 0
    %2439 = vmatprep.subr.mxu0 0.0
    %2440 = vmatpush1.msra.mxu0 %v2429
    %2441 = vmatprep.subr.mxu0 0.0
    %2442 = vmatpush1.msra.mxu0 0.0
    %2443 = vmatprep.subr.mxu0 0.0
    %2444 = vmatpush1.msra.mxu0 0.0
    %2445 = vmatprep.subr.mxu0 0.0
    %2446 = vmatpush1.msra.mxu0 0.0
    %2447 = vmatprep.subr.mxu0 0.0
    %2448 = vmatpush1.msra.mxu0 0.0
    %2449 = vmatprep.subr.mxu0 0.0
    %2450 = vmatpush1.msra.mxu0 0.0
    %2451 = vmatprep.subr.mxu0 0.0
    %2452 = vmatpush1.msra.mxu0 0.0
    %2453 = vmatprep.subr.mxu0 0.0
    %2454 = vmatpush1.msra.mxu0 0.0
    %2455 = vmatprep.subr.mxu0 0.0
    %2456 = vmatpush1.msra.mxu0 0.0
    %2457 = vmatprep.subr.mxu0 0.0
    %2458 = vmatpush1.msra.mxu0 0.0
    %2459 = vmatprep.subr.mxu0 0.0
    %2460 = vmatpush1.msra.mxu0 0.0
    %2461 = vmatprep.subr.mxu0 0.0
    %2462 = vmatpush1.msra.mxu0 0.0
    %2463 = vmatprep.subr.mxu0 0.0
    %2464 = vmatpush1.msra.mxu0 0.0
    %2465 = vmatprep.subr.mxu0 0.0
    %2466 = vmatpush1.msra.mxu0 0.0
    %2467 = vmatprep.subr.mxu0 0.0
    %2468 = vmatpush1.msra.mxu0 0.0
    %2469 = vmatprep.subr.mxu0 0.0
    %2470 = vmatpush1.msra.mxu0 0.0
    %2471 = vmatprep.subr.mxu0 0.0
    %2472 = vmatpush1.msra.mxu0 0.0
    %2473 = vmatprep.subr.mxu0 0.0
    %2474 = vmatpush1.msra.mxu0 0.0
    %2475 = vmatprep.subr.mxu0 0.0
    %2476 = vmatpush1.msra.mxu0 0.0
    %2477 = vmatprep.subr.mxu0 0.0
    %2478 = vmatpush1.msra.mxu0 0.0
    %2479 = vmatprep.subr.mxu0 0.0
    %2480 = vmatpush1.msra.mxu0 0.0
    %2481 = vmatprep.subr.mxu0 0.0
    %2482 = vmatpush1.msra.mxu0 0.0
    %2483 = vmatprep.subr.mxu0 0.0
    %2484 = vmatpush1.msra.mxu0 0.0
    %2485 = vmatprep.subr.mxu0 0.0
    %2486 = vmatpush1.msra.mxu0 0.0
    %2487 = vmatprep.subr.mxu0 0.0
    %2488 = vmatpush1.msra.mxu0 0.0
    %2489 = vmatprep.subr.mxu0 0.0
    %2490 = vmatpush1.msra.mxu0 0.0
    %2491 = vmatprep.subr.mxu0 0.0
    %2492 = vmatpush1.msra.mxu0 0.0
    %2493 = vmatprep.subr.mxu0 0.0
    %2494 = vmatpush1.msra.mxu0 0.0
    %2495 = vmatprep.subr.mxu0 0.0
    %2496 = vmatpush1.msra.mxu0 0.0
    %2497 = vmatprep.subr.mxu0 0.0
    %2498 = vmatpush1.msra.mxu0 0.0
    %2499 = vmatprep.subr.mxu0 0.0
    %2500 = vmatpush1.msra.mxu0 0.0
    %2501 = vmatprep.subr.mxu0 0.0
    %2502 = vmatpush1.msra.mxu0 0.0
    %2503 = vmatprep.mubr.f32.mxu0 0.0
    %2504 = vmatmul.mubr.f32.gmra.mrb[0].mxu0 %v2434
    %v2505 = vpop.f32.mrb[0].mxu0
    %v2506 = vadd.f32 0.0, %v2505
    %v2507 = vpop.f32.mrb[0].mxu0
    %2508 = vmatprep.mubr.f32.mxu0 0.0
    %2509 = vmatmul.mubr.f32.gmra.mrb[0].mxu0 %v2437
    %v2510 = vpop.f32.mrb[0].mxu0
    %v2511 = vadd.f32 0.0, %v2510
    %v2512 = vpop.f32.mrb[0].mxu0
    %2513 = vdwg.mxu0
    %v2515 = vsel %vm1132, %v2061, 0
    %v2518 = vsel %vm1132, %v2134, 0
    %2520 = vmatprep.subr.mxu0 0.0
    %2521 = vmatpush1.msra.mxu0 %v2430
    %2522 = vmatprep.subr.mxu0 0.0
    %2523 = vmatpush1.msra.mxu0 0.0
    %2524 = vmatprep.subr.mxu0 0.0
    %2525 = vmatpush1.msra.mxu0 0.0
    %2526 = vmatprep.subr.mxu0 0.0
    %2527 = vmatpush1.msra.mxu0 0.0
    %2528 = vmatprep.subr.mxu0 0.0
    %2529 = vmatpush1.msra.mxu0 0.0
    %2530 = vmatprep.subr.mxu0 0.0
    %2531 = vmatpush1.msra.mxu0 0.0
    %2532 = vmatprep.subr.mxu0 0.0
    %2533 = vmatpush1.msra.mxu0 0.0
    %2534 = vmatprep.subr.mxu0 0.0
    %2535 = vmatpush1.msra.mxu0 0.0
    %2536 = vmatprep.subr.mxu0 0.0
    %2537 = vmatpush1.msra.mxu0 0.0
    %2538 = vmatprep.subr.mxu0 0.0
    %2539 = vmatpush1.msra.mxu0 0.0
    %2540 = vmatprep.subr.mxu0 0.0
    %2541 = vmatpush1.msra.mxu0 0.0
    %2542 = vmatprep.subr.mxu0 0.0
    %2543 = vmatpush1.msra.mxu0 0.0
    %2544 = vmatprep.subr.mxu0 0.0
    %2545 = vmatpush1.msra.mxu0 0.0
    %2546 = vmatprep.subr.mxu0 0.0
    %2547 = vmatpush1.msra.mxu0 0.0
    %2548 = vmatprep.subr.mxu0 0.0
    %2549 = vmatpush1.msra.mxu0 0.0
    %2550 = vmatprep.subr.mxu0 0.0
    %2551 = vmatpush1.msra.mxu0 0.0
    %2552 = vmatprep.subr.mxu0 0.0
    %2553 = vmatpush1.msra.mxu0 0.0
    %2554 = vmatprep.subr.mxu0 0.0
    %2555 = vmatpush1.msra.mxu0 0.0
    %2556 = vmatprep.subr.mxu0 0.0
    %2557 = vmatpush1.msra.mxu0 0.0
    %2558 = vmatprep.subr.mxu0 0.0
    %2559 = vmatpush1.msra.mxu0 0.0
    %2560 = vmatprep.subr.mxu0 0.0
    %2561 = vmatpush1.msra.mxu0 0.0
    %2562 = vmatprep.subr.mxu0 0.0
    %2563 = vmatpush1.msra.mxu0 0.0
    %2564 = vmatprep.subr.mxu0 0.0
    %2565 = vmatpush1.msra.mxu0 0.0
    %2566 = vmatprep.subr.mxu0 0.0
    %2567 = vmatpush1.msra.mxu0 0.0
    %2568 = vmatprep.subr.mxu0 0.0
    %2569 = vmatpush1.msra.mxu0 0.0
    %2570 = vmatprep.subr.mxu0 0.0
    %2571 = vmatpush1.msra.mxu0 0.0
    %2572 = vmatprep.subr.mxu0 0.0
    %2573 = vmatpush1.msra.mxu0 0.0
    %2574 = vmatprep.subr.mxu0 0.0
    %2575 = vmatpush1.msra.mxu0 0.0
    %2576 = vmatprep.subr.mxu0 0.0
    %2577 = vmatpush1.msra.mxu0 0.0
    %2578 = vmatprep.subr.mxu0 0.0
    %2579 = vmatpush1.msra.mxu0 0.0
    %2580 = vmatprep.subr.mxu0 0.0
    %2581 = vmatpush1.msra.mxu0 0.0
    %2582 = vmatprep.subr.mxu0 0.0
    %2583 = vmatpush1.msra.mxu0 0.0
    %2584 = vmatprep.mubr.f32.mxu0 0.0
    %2585 = vmatmul.mubr.f32.gmra.mrb[0].mxu0 %v2515
    %v2586 = vpop.f32.mrb[0].mxu0
    %v2587 = vadd.f32 0.0, %v2586
    %v2588 = vpop.f32.mrb[0].mxu0
    %2589 = vmatprep.mubr.f32.mxu0 0.0
    %2590 = vmatmul.mubr.f32.gmra.mrb[0].mxu0 %v2518
    %v2591 = vpop.f32.mrb[0].mxu0
    %v2592 = vadd.f32 0.0, %v2591
    %v2593 = vpop.f32.mrb[0].mxu0
    %2594 = vdwg.mxu0
    %v2596 = vsel %vm1132, %v2207, 0
    %v2599 = vsel %vm1132, %v2280, 0
    %2601 = vmatprep.subr.mxu0 0.0
    %2602 = vmatpush1.msra.mxu0 %v2431
    %2603 = vmatprep.subr.mxu0 0.0
    %2604 = vmatpush1.msra.mxu0 0.0
    %2605 = vmatprep.subr.mxu0 0.0
    %2606 = vmatpush1.msra.mxu0 0.0
    %2607 = vmatprep.subr.mxu0 0.0
    %2608 = vmatpush1.msra.mxu0 0.0
    %2609 = vmatprep.subr.mxu0 0.0
    %2610 = vmatpush1.msra.mxu0 0.0
    %2611 = vmatprep.subr.mxu0 0.0
    %2612 = vmatpush1.msra.mxu0 0.0
    %2613 = vmatprep.subr.mxu0 0.0
    %2614 = vmatpush1.msra.mxu0 0.0
    %2615 = vmatprep.subr.mxu0 0.0
    %2616 = vmatpush1.msra.mxu0 0.0
    %2617 = vmatprep.subr.mxu0 0.0
    %2618 = vmatpush1.msra.mxu0 0.0
    %2619 = vmatprep.subr.mxu0 0.0
    %2620 = vmatpush1.msra.mxu0 0.0
    %2621 = vmatprep.subr.mxu0 0.0
    %2622 = vmatpush1.msra.mxu0 0.0
    %2623 = vmatprep.subr.mxu0 0.0
    %2624 = vmatpush1.msra.mxu0 0.0
    %2625 = vmatprep.subr.mxu0 0.0
    %2626 = vmatpush1.msra.mxu0 0.0
    %2627 = vmatprep.subr.mxu0 0.0
    %2628 = vmatpush1.msra.mxu0 0.0
    %2629 = vmatprep.subr.mxu0 0.0
    %2630 = vmatpush1.msra.mxu0 0.0
    %2631 = vmatprep.subr.mxu0 0.0
    %2632 = vmatpush1.msra.mxu0 0.0
    %2633 = vmatprep.subr.mxu0 0.0
    %2634 = vmatpush1.msra.mxu0 0.0
    %2635 = vmatprep.subr.mxu0 0.0
    %2636 = vmatpush1.msra.mxu0 0.0
    %2637 = vmatprep.subr.mxu0 0.0
    %2638 = vmatpush1.msra.mxu0 0.0
    %2639 = vmatprep.subr.mxu0 0.0
    %2640 = vmatpush1.msra.mxu0 0.0
    %2641 = vmatprep.subr.mxu0 0.0
    %2642 = vmatpush1.msra.mxu0 0.0
    %2643 = vmatprep.subr.mxu0 0.0
    %2644 = vmatpush1.msra.mxu0 0.0
    %2645 = vmatprep.subr.mxu0 0.0
    %2646 = vmatpush1.msra.mxu0 0.0
    %2647 = vmatprep.subr.mxu0 0.0
    %2648 = vmatpush1.msra.mxu0 0.0
    %2649 = vmatprep.subr.mxu0 0.0
    %2650 = vmatpush1.msra.mxu0 0.0
    %2651 = vmatprep.subr.mxu0 0.0
    %2652 = vmatpush1.msra.mxu0 0.0
    %2653 = vmatprep.subr.mxu0 0.0
    %2654 = vmatpush1.msra.mxu0 0.0
    %2655 = vmatprep.subr.mxu0 0.0
    %2656 = vmatpush1.msra.mxu0 0.0
    %2657 = vmatprep.subr.mxu0 0.0
    %2658 = vmatpush1.msra.mxu0 0.0
    %2659 = vmatprep.subr.mxu0 0.0
    %2660 = vmatpush1.msra.mxu0 0.0
    %2661 = vmatprep.subr.mxu0 0.0
    %2662 = vmatpush1.msra.mxu0 0.0
    %2663 = vmatprep.subr.mxu0 0.0
    %2664 = vmatpush1.msra.mxu0 0.0
    %2665 = vmatprep.mubr.f32.mxu0 0.0
    %2666 = vmatmul.mubr.f32.gmra.mrb[0].mxu0 %v2596
    %v2667 = vpop.f32.mrb[0].mxu0
    %v2668 = vadd.f32 0.0, %v2667
    %v2669 = vpop.f32.mrb[0].mxu0
    %2670 = vmatprep.mubr.f32.mxu0 0.0
    %2671 = vmatmul.mubr.f32.gmra.mrb[0].mxu0 %v2599
    %v2672 = vpop.f32.mrb[0].mxu0
    %v2673 = vadd.f32 0.0, %v2672
    %v2674 = vpop.f32.mrb[0].mxu0
    %2675 = vdwg.mxu0
    %v2677 = vsel %vm1132, %v2353, 0
    %v2680 = vsel %vm1132, %v2426, 0
    %2682 = vmatprep.subr.mxu0 0.0
    %2683 = vmatpush1.msra.mxu0 %v2432
    %2684 = vmatprep.subr.mxu0 0.0
    %2685 = vmatpush1.msra.mxu0 0.0
    %2686 = vmatprep.subr.mxu0 0.0
    %2687 = vmatpush1.msra.mxu0 0.0
    %2688 = vmatprep.subr.mxu0 0.0
    %2689 = vmatpush1.msra.mxu0 0.0
    %2690 = vmatprep.subr.mxu0 0.0
    %2691 = vmatpush1.msra.mxu0 0.0
    %2692 = vmatprep.subr.mxu0 0.0
    %2693 = vmatpush1.msra.mxu0 0.0
    %2694 = vmatprep.subr.mxu0 0.0
    %2695 = vmatpush1.msra.mxu0 0.0
    %2696 = vmatprep.subr.mxu0 0.0
    %2697 = vmatpush1.msra.mxu0 0.0
    %2698 = vmatprep.subr.mxu0 0.0
    %2699 = vmatpush1.msra.mxu0 0.0
    %2700 = vmatprep.subr.mxu0 0.0
    %2701 = vmatpush1.msra.mxu0 0.0
    %2702 = vmatprep.subr.mxu0 0.0
    %2703 = vmatpush1.msra.mxu0 0.0
    %2704 = vmatprep.subr.mxu0 0.0
    %2705 = vmatpush1.msra.mxu0 0.0
    %2706 = vmatprep.subr.mxu0 0.0
    %2707 = vmatpush1.msra.mxu0 0.0
    %2708 = vmatprep.subr.mxu0 0.0
    %2709 = vmatpush1.msra.mxu0 0.0
    %2710 = vmatprep.subr.mxu0 0.0
    %2711 = vmatpush1.msra.mxu0 0.0
    %2712 = vmatprep.subr.mxu0 0.0
    %2713 = vmatpush1.msra.mxu0 0.0
    %2714 = vmatprep.subr.mxu0 0.0
    %2715 = vmatpush1.msra.mxu0 0.0
    %2716 = vmatprep.subr.mxu0 0.0
    %2717 = vmatpush1.msra.mxu0 0.0
    %2718 = vmatprep.subr.mxu0 0.0
    %2719 = vmatpush1.msra.mxu0 0.0
    %2720 = vmatprep.subr.mxu0 0.0
    %2721 = vmatpush1.msra.mxu0 0.0
    %2722 = vmatprep.subr.mxu0 0.0
    %2723 = vmatpush1.msra.mxu0 0.0
    %2724 = vmatprep.subr.mxu0 0.0
    %2725 = vmatpush1.msra.mxu0 0.0
    %2726 = vmatprep.subr.mxu0 0.0
    %2727 = vmatpush1.msra.mxu0 0.0
    %2728 = vmatprep.subr.mxu0 0.0
    %2729 = vmatpush1.msra.mxu0 0.0
    %2730 = vmatprep.subr.mxu0 0.0
    %2731 = vmatpush1.msra.mxu0 0.0
    %2732 = vmatprep.subr.mxu0 0.0
    %2733 = vmatpush1.msra.mxu0 0.0
    %2734 = vmatprep.subr.mxu0 0.0
    %2735 = vmatpush1.msra.mxu0 0.0
    %2736 = vmatprep.subr.mxu0 0.0
    %2737 = vmatpush1.msra.mxu0 0.0
    %2738 = vmatprep.subr.mxu0 0.0
    %2739 = vmatpush1.msra.mxu0 0.0
    %2740 = vmatprep.subr.mxu0 0.0
    %2741 = vmatpush1.msra.mxu0 0.0
    %2742 = vmatprep.subr.mxu0 0.0
    %2743 = vmatpush1.msra.mxu0 0.0
    %2744 = vmatprep.subr.mxu0 0.0
    %2745 = vmatpush1.msra.mxu0 0.0
    %2746 = vmatprep.mubr.f32.mxu0 0.0
    %2747 = vmatmul.mubr.f32.gmra.mrb[0].mxu0 %v2677
    %v2748 = vpop.f32.mrb[0].mxu0
    %v2749 = vadd.f32 0.0, %v2748
    %v2750 = vpop.f32.mrb[0].mxu0
    %2751 = vmatprep.mubr.f32.mxu0 0.0
    %2752 = vmatmul.mubr.f32.gmra.mrb[0].mxu0 %v2680
    %v2753 = vpop.f32.mrb[0].mxu0
    %v2754 = vadd.f32 0.0, %v2753
    %v2755 = vpop.f32.mrb[0].mxu0
    %2756 = vdwg.mxu0
    %v2757 = vsel %vm92, %v2506, 0.0
    %v2758 = vsel %vm92, %v2587, 0.0
    %v2759 = vadd.f32 %v2757, %v2758
    %v2760 = vsel %vm92, %v2668, 0.0
    %v2761 = vadd.f32 %v2759, %v2760
    %v2762 = vsel %vm92, %v2749, 0.0
    %v2763 = vadd.f32 %v2761, %v2762
    %v2764 = vsel %vm92, %v2511, 0.0
    %v2765 = vsel %vm92, %v2592, 0.0
    %v2766 = vadd.f32 %v2764, %v2765
    %v2767 = vsel %vm92, %v2673, 0.0
    %v2768 = vadd.f32 %v2766, %v2767
    %v2769 = vsel %vm92, %v2754, 0.0
    %v2770 = vadd.f32 %v2768, %v2769
    %v2771 = vadd.f32 %v42, %v2763
    %v2772 = vadd.f32 %v43, %v2770
    %v2773 = vld [vmem:[%s8] sm:$0x1]
    %v2774 = vld [vmem:[%s9] sm:$0x1]
    %v2775 = vsel %vm92, %v2771, 0.0
    %2776 = vadd.xlane.f32.xlu0 %v2775
    %v2777 = vpop.xlane.xlu0 %2776
    %v2778 = vsel %vm92, %v2772, 0.0
    %2779 = vadd.xlane.f32.xlu0 %v2778
    %v2780 = vpop.xlane.xlu0 %2779
    %v2781 = vrcp.pop 32.0
    %v2782 = vmul.f32 %v2777, %v2781
    %v2783 = vmul.f32 %v2780, %v2781
    %v2784 = vsub.f32 %v2771, %v2782
    %v2785 = vsub.f32 %v2772, %v2783
    %v2786 = vmul.f32 %v2784, %v2784
    %v2787 = vmul.f32 %v2785, %v2785
    %v2788 = vsel %vm92, %v2786, 0.0
    %2789 = vadd.xlane.f32.xlu0 %v2788
    %v2790 = vpop.xlane.xlu0 %2789
    %v2791 = vsel %vm92, %v2787, 0.0
    %2792 = vadd.xlane.f32.xlu0 %v2791
    %v2793 = vpop.xlane.xlu0 %2792
    %v2794 = vmul.f32 %v2790, %v2781
    %v2795 = vmul.f32 %v2793, %v2781
    %v2796 = vadd.f32 %v2794, 1e-05
    %v2797 = vadd.f32 %v2795, 1e-05
    %v2798 = vrsqrt.pop %v2796
    %v2799 = vrsqrt.pop %v2797
    %v2800 = vmul.f32 %v2784, %v2798
    %v2801 = vmul.f32 %v2785, %v2799
    %v2803 = vlaneseq
    %v2804 = vshrl.u32 %v2803, 7
    %v2805 = vsub.s32 0, %v2804
    %v2806 = vrot.slane %v2773, %v2805
    %v2808 = vmul.f32 %v2800, %v2806
    %v2809 = vmul.f32 %v2801, %v2806
    %v2811 = vlaneseq
    %v2812 = vshrl.u32 %v2811, 7
    %v2813 = vsub.s32 0, %v2812
    %v2814 = vrot.slane %v2774, %v2813
    %v2816 = vadd.f32 %v2808, %v2814
    %v2817 = vadd.f32 %v2809, %v2814
    %v2818 = vld [vmem:[%s4] sm:$0xff]
    %v2819 = vld [vmem:[%s4 + $0x8] sm:$0xff]
    %v2820 = vld [vmem:[%s4 + $0x10] sm:$0xff]
    %v2821 = vld [vmem:[%s4 + $0x18] sm:$0xff]
    %v2822 = vld [vmem:[%s6] sm:$0x1]
    %v2824 = vlaneseq
    %v2825 = vshrl.u32 %v2824, 7
    %v2826 = vsub.s32 0, %v2825
    %v2827 = vrot.slane %v2822, %v2826
    %v2830 = vsel %vm92, %v2816, 0
    %v2833 = vsel %vm92, %v2817, 0
    %2835 = vmatprep.subr.mxu0 0.0
    %2836 = vmatpush1.msra.mxu0 %v2818
    %2837 = vmatprep.subr.mxu0 0.0
    %2838 = vmatpush1.msra.mxu0 %v2819
    %2839 = vmatprep.subr.mxu0 0.0
    %2840 = vmatpush1.msra.mxu0 %v2820
    %2841 = vmatprep.subr.mxu0 0.0
    %2842 = vmatpush1.msra.mxu0 %v2821
    %2843 = vmatprep.subr.mxu0 0.0
    %2844 = vmatpush1.msra.mxu0 0.0
    %2845 = vmatprep.subr.mxu0 0.0
    %2846 = vmatpush1.msra.mxu0 0.0
    %2847 = vmatprep.subr.mxu0 0.0
    %2848 = vmatpush1.msra.mxu0 0.0
    %2849 = vmatprep.subr.mxu0 0.0
    %2850 = vmatpush1.msra.mxu0 0.0
    %2851 = vmatprep.subr.mxu0 0.0
    %2852 = vmatpush1.msra.mxu0 0.0
    %2853 = vmatprep.subr.mxu0 0.0
    %2854 = vmatpush1.msra.mxu0 0.0
    %2855 = vmatprep.subr.mxu0 0.0
    %2856 = vmatpush1.msra.mxu0 0.0
    %2857 = vmatprep.subr.mxu0 0.0
    %2858 = vmatpush1.msra.mxu0 0.0
    %2859 = vmatprep.subr.mxu0 0.0
    %2860 = vmatpush1.msra.mxu0 0.0
    %2861 = vmatprep.subr.mxu0 0.0
    %2862 = vmatpush1.msra.mxu0 0.0
    %2863 = vmatprep.subr.mxu0 0.0
    %2864 = vmatpush1.msra.mxu0 0.0
    %2865 = vmatprep.subr.mxu0 0.0
    %2866 = vmatpush1.msra.mxu0 0.0
    %2867 = vmatprep.subr.mxu0 0.0
    %2868 = vmatpush1.msra.mxu0 0.0
    %2869 = vmatprep.subr.mxu0 0.0
    %2870 = vmatpush1.msra.mxu0 0.0
    %2871 = vmatprep.subr.mxu0 0.0
    %2872 = vmatpush1.msra.mxu0 0.0
    %2873 = vmatprep.subr.mxu0 0.0
    %2874 = vmatpush1.msra.mxu0 0.0
    %2875 = vmatprep.subr.mxu0 0.0
    %2876 = vmatpush1.msra.mxu0 0.0
    %2877 = vmatprep.subr.mxu0 0.0
    %2878 = vmatpush1.msra.mxu0 0.0
    %2879 = vmatprep.subr.mxu0 0.0
    %2880 = vmatpush1.msra.mxu0 0.0
    %2881 = vmatprep.subr.mxu0 0.0
    %2882 = vmatpush1.msra.mxu0 0.0
    %2883 = vmatprep.subr.mxu0 0.0
    %2884 = vmatpush1.msra.mxu0 0.0
    %2885 = vmatprep.subr.mxu0 0.0
    %2886 = vmatpush1.msra.mxu0 0.0
    %2887 = vmatprep.subr.mxu0 0.0
    %2888 = vmatpush1.msra.mxu0 0.0
    %2889 = vmatprep.subr.mxu0 0.0
    %2890 = vmatpush1.msra.mxu0 0.0
    %2891 = vmatprep.subr.mxu0 0.0
    %2892 = vmatpush1.msra.mxu0 0.0
    %2893 = vmatprep.subr.mxu0 0.0
    %2894 = vmatpush1.msra.mxu0 0.0
    %2895 = vmatprep.subr.mxu0 0.0
    %2896 = vmatpush1.msra.mxu0 0.0
    %2897 = vmatprep.subr.mxu0 0.0
    %2898 = vmatpush1.msra.mxu0 0.0
    %2899 = vmatprep.mubr.f32.mxu0 0.0
    %2900 = vmatmul.mubr.f32.gmra.mrb[0].mxu0 %v2830
    %v2901 = vpop.f32.mrb[0].mxu0
    %v2902 = vadd.f32 %v2827, %v2901
    %v2903 = vpop.f32.mrb[0].mxu0
    %2904 = vmatprep.mubr.f32.mxu0 0.0
    %2905 = vmatmul.mubr.f32.gmra.mrb[0].mxu0 %v2833
    %v2906 = vpop.f32.mrb[0].mxu0
    %v2907 = vadd.f32 %v2827, %v2906
    %v2908 = vpop.f32.mrb[0].mxu0
    %2909 = vdwg.mxu0
    %v2910 = vmax.f32 %v2902, 0.0
    %v2911 = vmax.f32 %v2907, 0.0
    %v2912 = vld [vmem:[%s5] sm:$0xff]
    %v2913 = vld [vmem:[%s5 + $0x8] sm:$0xff]
    %v2914 = vld [vmem:[%s5 + $0x10] sm:$0xff]
    %v2915 = vld [vmem:[%s5 + $0x18] sm:$0xff]
    %v2916 = vld [vmem:[%s5 + $0x20] sm:$0xff]
    %v2917 = vld [vmem:[%s5 + $0x28] sm:$0xff]
    %v2918 = vld [vmem:[%s5 + $0x30] sm:$0xff]
    %v2919 = vld [vmem:[%s5 + $0x38] sm:$0xff]
    %v2920 = vld [vmem:[%s7] sm:$0x1]
    %v2922 = vlaneseq
    %v2923 = vshrl.u32 %v2922, 7
    %v2924 = vsub.s32 0, %v2923
    %v2925 = vrot.slane %v2920, %v2924
    %vm2927 = vcmask 523264
    %v2929 = vsel %vm2927, %v2910, 0
    %v2932 = vsel %vm2927, %v2911, 0
    %2934 = vmatprep.subr.mxu0 0.0
    %2935 = vmatpush1.msra.mxu0 %v2912
    %2936 = vmatprep.subr.mxu0 0.0
    %2937 = vmatpush1.msra.mxu0 %v2913
    %2938 = vmatprep.subr.mxu0 0.0
    %2939 = vmatpush1.msra.mxu0 %v2914
    %2940 = vmatprep.subr.mxu0 0.0
    %2941 = vmatpush1.msra.mxu0 %v2915
    %2942 = vmatprep.subr.mxu0 0.0
    %2943 = vmatpush1.msra.mxu0 %v2916
    %2944 = vmatprep.subr.mxu0 0.0
    %2945 = vmatpush1.msra.mxu0 %v2917
    %2946 = vmatprep.subr.mxu0 0.0
    %2947 = vmatpush1.msra.mxu0 %v2918
    %2948 = vmatprep.subr.mxu0 0.0
    %2949 = vmatpush1.msra.mxu0 %v2919
    %2950 = vmatprep.subr.mxu0 0.0
    %2951 = vmatpush1.msra.mxu0 0.0
    %2952 = vmatprep.subr.mxu0 0.0
    %2953 = vmatpush1.msra.mxu0 0.0
    %2954 = vmatprep.subr.mxu0 0.0
    %2955 = vmatpush1.msra.mxu0 0.0
    %2956 = vmatprep.subr.mxu0 0.0
    %2957 = vmatpush1.msra.mxu0 0.0
    %2958 = vmatprep.subr.mxu0 0.0
    %2959 = vmatpush1.msra.mxu0 0.0
    %2960 = vmatprep.subr.mxu0 0.0
    %2961 = vmatpush1.msra.mxu0 0.0
    %2962 = vmatprep.subr.mxu0 0.0
    %2963 = vmatpush1.msra.mxu0 0.0
    %2964 = vmatprep.subr.mxu0 0.0
    %2965 = vmatpush1.msra.mxu0 0.0
    %2966 = vmatprep.subr.mxu0 0.0
    %2967 = vmatpush1.msra.mxu0 0.0
    %2968 = vmatprep.subr.mxu0 0.0
    %2969 = vmatpush1.msra.mxu0 0.0
    %2970 = vmatprep.subr.mxu0 0.0
    %2971 = vmatpush1.msra.mxu0 0.0
    %2972 = vmatprep.subr.mxu0 0.0
    %2973 = vmatpush1.msra.mxu0 0.0
    %2974 = vmatprep.subr.mxu0 0.0
    %2975 = vmatpush1.msra.mxu0 0.0
    %2976 = vmatprep.subr.mxu0 0.0
    %2977 = vmatpush1.msra.mxu0 0.0
    %2978 = vmatprep.subr.mxu0 0.0
    %2979 = vmatpush1.msra.mxu0 0.0
    %2980 = vmatprep.subr.mxu0 0.0
    %2981 = vmatpush1.msra.mxu0 0.0
    %2982 = vmatprep.subr.mxu0 0.0
    %2983 = vmatpush1.msra.mxu0 0.0
    %2984 = vmatprep.subr.mxu0 0.0
    %2985 = vmatpush1.msra.mxu0 0.0
    %2986 = vmatprep.subr.mxu0 0.0
    %2987 = vmatpush1.msra.mxu0 0.0
    %2988 = vmatprep.subr.mxu0 0.0
    %2989 = vmatpush1.msra.mxu0 0.0
    %2990 = vmatprep.subr.mxu0 0.0
    %2991 = vmatpush1.msra.mxu0 0.0
    %2992 = vmatprep.subr.mxu0 0.0
    %2993 = vmatpush1.msra.mxu0 0.0
    %2994 = vmatprep.subr.mxu0 0.0
    %2995 = vmatpush1.msra.mxu0 0.0
    %2996 = vmatprep.subr.mxu0 0.0
    %2997 = vmatpush1.msra.mxu0 0.0
    %2998 = vmatprep.mubr.f32.mxu0 0.0
    %2999 = vmatmul.mubr.f32.gmra.mrb[0].mxu0 %v2929
    %v3000 = vpop.f32.mrb[0].mxu0
    %v3001 = vadd.f32 %v2925, %v3000
    %v3002 = vpop.f32.mrb[0].mxu0
    %3003 = vmatprep.mubr.f32.mxu0 0.0
    %3004 = vmatmul.mubr.f32.gmra.mrb[0].mxu0 %v2932
    %v3005 = vpop.f32.mrb[0].mxu0
    %v3006 = vadd.f32 %v2925, %v3005
    %v3007 = vpop.f32.mrb[0].mxu0
    %3008 = vdwg.mxu0
    %v3009 = vadd.f32 %v2816, %v3001
    %v3010 = vadd.f32 %v2817, %v3006
    %v3011 = vld [vmem:[%s10] sm:$0x1]
    %v3012 = vld [vmem:[%s11] sm:$0x1]
    %v3013 = vsel %vm92, %v3009, 0.0
    %3014 = vadd.xlane.f32.xlu0 %v3013
    %v3015 = vpop.xlane.xlu0 %3014
    %v3016 = vsel %vm92, %v3010, 0.0
    %3017 = vadd.xlane.f32.xlu0 %v3016
    %v3018 = vpop.xlane.xlu0 %3017
    %v3019 = vmul.f32 %v3015, %v2781
    %v3020 = vmul.f32 %v3018, %v2781
    %v3021 = vsub.f32 %v3009, %v3019
    %v3022 = vsub.f32 %v3010, %v3020
    %v3023 = vmul.f32 %v3021, %v3021
    %v3024 = vmul.f32 %v3022, %v3022
    %v3025 = vsel %vm92, %v3023, 0.0
    %3026 = vadd.xlane.f32.xlu0 %v3025
    %v3027 = vpop.xlane.xlu0 %3026
    %v3028 = vsel %vm92, %v3024, 0.0
    %3029 = vadd.xlane.f32.xlu0 %v3028
    %v3030 = vpop.xlane.xlu0 %3029
    %v3031 = vmul.f32 %v3027, %v2781
    %v3032 = vmul.f32 %v3030, %v2781
    %v3033 = vadd.f32 %v3031, 1e-05
    %v3034 = vadd.f32 %v3032, 1e-05
    %v3035 = vrsqrt.pop %v3033
    %v3036 = vrsqrt.pop %v3034
    %v3037 = vmul.f32 %v3021, %v3035
    %v3038 = vmul.f32 %v3022, %v3036
    %v3040 = vlaneseq
    %v3041 = vshrl.u32 %v3040, 7
    %v3042 = vsub.s32 0, %v3041
    %v3043 = vrot.slane %v3011, %v3042
    %v3045 = vmul.f32 %v3037, %v3043
    %v3046 = vmul.f32 %v3038, %v3043
    %v3048 = vlaneseq
    %v3049 = vshrl.u32 %v3048, 7
    %v3050 = vsub.s32 0, %v3049
    %v3051 = vrot.slane %v3012, %v3050
    %v3053 = vadd.f32 %v3045, %v3051
    %v3054 = vadd.f32 %v3046, %v3051
    %3055 = vst.msk [vmem:[#allocation2] sm:$0xff] %vm92, %v3053
    %3056 = vst.msk [vmem:[#allocation2 + $0x8] sm:$0xff] %vm92, %v3054
    // Predicated region
    $region50: #{tpu_custom_call.1} parent=1 // pred_check
      _
    $region51: #{tpu_custom_call.1} parent=1 // pred_check_branch
      %3058 = sbr.rel (0) target = $region53
    $region52: #{tpu_custom_call.1} parent=1 // pred_region
      %s3060 = ssub.s32 256, 256
      %3061 = vsyncadd [#allocation3], %s3060
      %s3062 = sshll.u32 [#allocation2], 4
      %s3063 = int_to_ptr.vmem [resolvable:$true] %s3062
      %3068 = dma.vmem_to_hbm [thread:$0]  %s3063, 256, %s12, [#allocation3], 128, 128, 8
    $region53: #{tpu_custom_call.1} parent=1 // pred_fallthru
      _
    // Predicated region
    $region54: #{tpu_custom_call.1} parent=1 // pred_check
      _
    $region55: #{tpu_custom_call.1} parent=1 // pred_check_branch
      %3070 = sbr.rel (0) target = $region57
    $region56: #{tpu_custom_call.1} parent=1 // pred_region
      %3071 = dma.done [#allocation3], 256
    $region57: #{tpu_custom_call.1} parent=1 // pred_fallthru
      _
    %3072 = vsyncpa [#allocation3], 1

</llo_original>
